<compile_context>
chip_gen: v7x
topology: tpu7x:2x2x1
jax: 0.10.0
libtpu: 0.0.40
codegen_flags: <defaults>
</compile_context>

<pallas_src>
import math
from functools import partial

import jax
import jax.numpy as jnp
from jax.experimental import pallas as pl
from jax.experimental.pallas import tpu as pltpu

VIEW = 3            # WeightedMean2 hard-codes 3 fusion weights [0.3, 0.3, 0.4]
ENC_HIDDEN = 512    # Encoder hidden width (from the module)
DDC_HIDDEN = 100    # DDC hidden width (from the module)
BN_EPS = 1e-5
LANE = 128          # lane padding target for all sub-128 feature dims
NEG_PAD = -1e30     # logit padding so padded classes vanish under softmax


# ------------------------------------------------------------------ kernel
def mvc_kernel(wfuse_ref,                                   # SMEM (3,) normalized fusion weights
               x_ref,                                        # (V, N, D_in)   bf16
               ew1_ref, eb1_ref,                             # (V, D_in, 512) bf16 / (V,1,512) f32
               ew2_ref, eb2_ref,                             # (V, 512, 512)  bf16 / (V,1,512) f32
               ew3_ref, eb3_ref,                             # (V, 512, 128)  bf16 / (V,1,128) f32  (feat padded)
               dw1_ref, db1_ref,                             # (128, 128) f32 / (1,128) f32         (padded)
               gamma_ref, beta_ref,                          # (1, 128) f32
               dw2_ref, db2_ref,                             # (128, 128) f32 / (1,128) f32  (pad cols = -1e30)
               out_ref, hid_ref):                            # (N,128) f32 each (sliced in wrapper)
    f32 = jnp.float32
    bf16 = jnp.bfloat16

    # ---- 3 encoders, statically unrolled.  Every dot is bf16 x bf16 on the
    # MXU with f32 accumulation; biases are added in f32; the (N,512)
    # activation re-cast to bf16 per layer is a handful of vregs.
    fused = None
    for v in range(VIEW):
        h = jnp.dot(x_ref[v], ew1_ref[v], preferred_element_type=f32) + eb1_ref[v]
        h = jnp.maximum(h, 0.0)
        h = jnp.dot(h.astype(bf16), ew2_ref[v], preferred_element_type=f32) + eb2_ref[v]
        h = jnp.maximum(h, 0.0)
        z = jnp.dot(h.astype(bf16), ew3_ref[v], preferred_element_type=f32) + eb3_ref[v]
        z = jnp.maximum(z, 0.0)                 # padded feature lanes are exactly 0
        contrib = wfuse_ref[v] * z              # SMEM scalar * (N,128) f32 vector
        fused = contrib if fused is None else fused + contrib

    # ---- DDC hidden: Linear -> ReLU -> BatchNorm1d (training mode => batch stats).
    # Head is tiny (128x128); keep the exact f32 path so `hidden` stays precise.
    h = jnp.dot(fused, dw1_ref[...], preferred_element_type=f32) + db1_ref[...]
    h = jnp.maximum(h, 0.0)                     # padded hidden lanes stay 0
    mean = jnp.mean(h, axis=0, keepdims=True)
    var = jnp.mean((h - mean) ** 2, axis=0, keepdims=True)   # biased var, as PyTorch BN fwd
    hidden = gamma_ref[...] * (h - mean) * jax.lax.rsqrt(var + BN_EPS) + beta_ref[...]
    hid_ref[...] = hidden                       # full-lane, unmasked store

    # ---- DDC output: Linear -> Softmax(dim=1). Padded logits are -1e30 via db2 pad.
    logits = jnp.dot(hidden, dw2_ref[...], preferred_element_type=f32) + db2_ref[...]
    m = jnp.max(logits, axis=-1, keepdims=True)
    e = jnp.exp(logits - m)
    out_ref[...] = e / jnp.sum(e, axis=-1, keepdims=True)    # exact: rows sum to 1


# ------------------------------------------------------------------ wrapper
def _nbytes(a):
    return int(math.prod(a.shape)) * a.dtype.itemsize


@partial(jax.jit, static_argnames=("class_num",))
def mvc_forward(xs, kp, *, class_num):
    n, d_in = xs.shape[1], xs.shape[2]
    # 3-element softmax over the learned fusion weights is parameter glue; it is
    # computed here (inside the same jitted executable) and passed via SMEM.
    wnorm = jax.nn.softmax(kp["fusion_w"].astype(jnp.float32), axis=0)
    xs_bf16 = xs.astype(jnp.bfloat16)           # layer-1 dot is pure bf16 x bf16

    args = (wnorm, xs_bf16,
            kp["ew1"], kp["eb1"], kp["ew2"], kp["eb2"], kp["ew3"], kp["eb3"],
            kp["dw1"], kp["db1"], kp["gamma"], kp["beta"], kp["dw2"], kp["db2"])

    # Advisory cost hint so XLA can schedule/overlap this small custom call.
    enc_flops = VIEW * 2 * n * (d_in * ENC_HIDDEN
                                + ENC_HIDDEN * ENC_HIDDEN
                                + ENC_HIDDEN * LANE)
    ddc_flops = 2 * 2 * n * LANE * LANE
    cost = pl.CostEstimate(
        flops=int(enc_flops + ddc_flops),
        transcendentals=int(2 * n * LANE),                    # softmax exp + BN rsqrt
        bytes_accessed=int(sum(_nbytes(a) for a in args) + 2 * n * LANE * 4),
    )

    smem = pl.BlockSpec(memory_space=pltpu.MemorySpace.SMEM)
    vmem = pl.BlockSpec(memory_space=pltpu.MemorySpace.VMEM)
    # NOTE: whole batch lives in one program because BatchNorm1d (training mode)
    # needs batch-wide statistics.
    # TODO(synk): for large batches, a batch-tiled grid would need a two-pass BN
    # (accumulate sum/sum-sq across tiles, then normalize) plus resident weights.
    out_pad, hid_pad = pl.pallas_call(
        mvc_kernel,
        out_shape=(jax.ShapeDtypeStruct((n, LANE), jnp.float32),
                   jax.ShapeDtypeStruct((n, LANE), jnp.float32)),
        in_specs=[smem] + [vmem] * 13,
        out_specs=(vmem, vmem),
        cost_estimate=cost,
    )(*args)
    return out_pad[:, :class_num], hid_pad[:, :DDC_HIDDEN]


# ------------------------------------------------------------------ params
def init_params(key, view, input_dim, feature_dim, class_num):
    keys = iter(jax.random.split(key, 32))

    def kaiming(shape):  # shape = (fan_in, fan_out); He normal, gain sqrt(2)
        return jax.random.normal(next(keys), shape, jnp.float32) * jnp.sqrt(2.0 / shape[0])

    def lin_bias(fan_in, n_out):  # PyTorch Linear default bias init
        bound = 1.0 / jnp.sqrt(float(fan_in))
        return jax.random.uniform(next(keys), (1, n_out), jnp.float32, -bound, bound)

    # Encoders: all views share the same input_dim here so parameters stack along view.
    # TODO(synk): per-view distinct input_dims would need per-view weight slabs (or padding).
    def stack(fn):
        return jnp.stack([fn() for _ in range(view)], axis=0)

    enc = {
        "w1": stack(lambda: kaiming((input_dim, ENC_HIDDEN))),
        "b1": stack(lambda: lin_bias(input_dim, ENC_HIDDEN)),
        "w2": stack(lambda: kaiming((ENC_HIDDEN, ENC_HIDDEN))),
        "b2": stack(lambda: lin_bias(ENC_HIDDEN, ENC_HIDDEN)),
        "w3": stack(lambda: kaiming((ENC_HIDDEN, feature_dim))),
        "b3": stack(lambda: lin_bias(ENC_HIDDEN, feature_dim)),
    }
    ddc = {
        "w1": kaiming((feature_dim, DDC_HIDDEN)),
        "b1": lin_bias(feature_dim, DDC_HIDDEN),
        "gamma": jnp.ones((1, DDC_HIDDEN), jnp.float32),   # BatchNorm1d default affine
        "beta": jnp.zeros((1, DDC_HIDDEN), jnp.float32),
        "w2": kaiming((DDC_HIDDEN, class_num)),
        "b2": lin_bias(DDC_HIDDEN, class_num),
    }
    fusion_w = jnp.array([0.3, 0.3, 0.4], jnp.float32)      # WeightedMean2 init
    return {"enc": enc, "ddc": ddc, "fusion_w": fusion_w}


def _pad_last(a, width, value=0.0):
    pad = width - a.shape[-1]
    if pad <= 0:
        return a
    cfg = [(0, 0)] * (a.ndim - 1) + [(0, pad)]
    return jnp.pad(a, cfg, constant_values=value)


def _pad_last2(a, rows, cols, col_value=0.0):
    a = _pad_last(a, cols, col_value)
    pad_r = rows - a.shape[-2]
    if pad_r > 0:
        cfg = [(0, 0)] * (a.ndim - 2) + [(0, pad_r), (0, 0)]
        a = jnp.pad(a, cfg)
    return a


def prepare_params(params):
    """One-time conversion: pad lane dims to 128 and cast the big encoder
    weight matrices to bf16 (halves the dominant HBM weight DMA; the kernel
    consumes them natively on the bf16 MXU path)."""
    enc, ddc = params["enc"], params["ddc"]
    return {
        "fusion_w": params["fusion_w"],
        # encoders (w* streamed and consumed as bf16; f32 accumulation in-kernel)
        "ew1": enc["w1"].astype(jnp.bfloat16),
        "eb1": enc["b1"],
        "ew2": enc["w2"].astype(jnp.bfloat16),
        "eb2": enc["b2"],
        "ew3": _pad_last(enc["w3"], LANE).astype(jnp.bfloat16),   # feat -> 128
        "eb3": _pad_last(enc["b3"], LANE),
        # DDC head (tiny -> keep f32, just pad to 128x128 slabs)
        "dw1": _pad_last2(ddc["w1"], LANE, LANE),
        "db1": _pad_last(ddc["b1"], LANE),
        "gamma": _pad_last(ddc["gamma"], LANE, value=1.0),
        "beta": _pad_last(ddc["beta"], LANE),
        "dw2": _pad_last2(ddc["w2"], LANE, LANE),
        "db2": _pad_last(ddc["b2"], LANE, value=NEG_PAD),         # pad classes -> -inf logits
    }


# ------------------------------------------------------------------ reference
def mvc_reference(xs, params):
    """Faithful JAX port of the PyTorch forward, using the same bf16
    activations x bf16 weights (f32 accumulation) that the kernel uses, so the
    comparison isolates the kernel math/fusion rather than quantization."""
    enc, ddc = params["enc"], params["ddc"]
    f32, bf16 = jnp.float32, jnp.bfloat16
    zs = []
    for v in range(xs.shape[0]):
        h = jnp.dot(xs[v].astype(bf16), enc["w1"][v].astype(bf16),
                    preferred_element_type=f32) + enc["b1"][v]
        h = jnp.maximum(h, 0.0)
        h = jnp.dot(h.astype(bf16), enc["w2"][v].astype(bf16),
                    preferred_element_type=f32) + enc["b2"][v]
        h = jnp.maximum(h, 0.0)
        z = jnp.dot(h.astype(bf16), enc["w3"][v].astype(bf16),
                    preferred_element_type=f32) + enc["b3"][v]
        zs.append(jnp.maximum(z, 0.0))
    w = jax.nn.softmax(params["fusion_w"], axis=0)
    fused = sum(w[v] * zs[v] for v in range(len(zs)))
    h = jnp.maximum(fused @ ddc["w1"] + ddc["b1"], 0.0)
    mean = jnp.mean(h, axis=0, keepdims=True)
    var = jnp.mean((h - mean) ** 2, axis=0, keepdims=True)
    hidden = ddc["gamma"] * (h - mean) / jnp.sqrt(var + BN_EPS) + ddc["beta"]
    out = jax.nn.softmax(hidden @ ddc["w2"] + ddc["b2"], axis=1)
    return out, hidden


# ------------------------------------------------------------------ main
if __name__ == "__main__":
    batch, input_dim, feature_dim, class_num = 8, 32, 32, 4

    key = jax.random.PRNGKey(0)
    k_x, k_p = jax.random.split(key)
    xs = jax.random.normal(k_x, (VIEW, batch, input_dim), jnp.float32)
    params = init_params(k_p, VIEW, input_dim, feature_dim, class_num)
    kparams = prepare_params(params)

    output, hidden = jax.block_until_ready(
        mvc_forward(xs, kparams, class_num=class_num))

    ref_out, ref_hid = mvc_reference(xs, params)
    assert output.shape == (batch, class_num) and hidden.shape == (batch, DDC_HIDDEN)
    assert jnp.allclose(hidden, ref_hid, rtol=5e-3, atol=5e-3)
    assert jnp.allclose(output, ref_out, rtol=5e-3, atol=5e-3)
    # rows of the class softmax sum to (almost exactly) 1 — exact division used
    assert jnp.allclose(jnp.sum(output, axis=1), 1.0, atol=1e-5)

    print("KERNEL_OK")
</pallas_src>

<mosaic_0001>
module attributes {stable_mosaic.version = 11 : i64} {
  func.func @mvc_kernel(%arg0: memref<3xf32, #tpu.memory_space<smem>>, %arg1: memref<3x8x32xbf16, #tpu.memory_space<vmem>>, %arg2: memref<3x32x512xbf16, #tpu.memory_space<vmem>>, %arg3: memref<3x1x512xf32, #tpu.memory_space<vmem>>, %arg4: memref<3x512x512xbf16, #tpu.memory_space<vmem>>, %arg5: memref<3x1x512xf32, #tpu.memory_space<vmem>>, %arg6: memref<3x512x128xbf16, #tpu.memory_space<vmem>>, %arg7: memref<3x1x128xf32, #tpu.memory_space<vmem>>, %arg8: memref<128x128xf32, #tpu.memory_space<vmem>>, %arg9: memref<1x128xf32, #tpu.memory_space<vmem>>, %arg10: memref<1x128xf32, #tpu.memory_space<vmem>>, %arg11: memref<1x128xf32, #tpu.memory_space<vmem>>, %arg12: memref<128x128xf32, #tpu.memory_space<vmem>>, %arg13: memref<1x128xf32, #tpu.memory_space<vmem>>, %arg14: memref<8x128xf32, #tpu.memory_space<vmem>>, %arg15: memref<8x128xf32, #tpu.memory_space<vmem>>) attributes {dimension_semantics = [], scalar_prefetch = 0 : i64, scratch_operands = 0 : i64, tpu.core_type = #tpu.core_type<tc>} {
    %c0 = arith.constant 0 : index
    %c0_0 = arith.constant 0 : index
    %c0_1 = arith.constant 0 : index
    %0 = vector.load %arg1[%c0, %c0_0, %c0_1] : memref<3x8x32xbf16, #tpu.memory_space<vmem>>, vector<1x8x32xbf16>
    %1 = vector.shape_cast %0 : vector<1x8x32xbf16> to vector<8x32xbf16>
    %c0_2 = arith.constant 0 : index
    %c0_3 = arith.constant 0 : index
    %c0_4 = arith.constant 0 : index
    %2 = vector.load %arg2[%c0_2, %c0_3, %c0_4] : memref<3x32x512xbf16, #tpu.memory_space<vmem>>, vector<1x32x512xbf16>
    %3 = vector.shape_cast %2 : vector<1x32x512xbf16> to vector<32x512xbf16>
    %cst = arith.constant dense<0.000000e+00> : vector<8x512xf32>
    %4 = tpu.matmul %1, %3, %cst {dimension_numbers = #tpu.dot_dimension_numbers<[1], [0], [0], [1], [0, 0, 1, 1], [], []>} : vector<8x32xbf16>, vector<32x512xbf16>, vector<8x512xf32> -> vector<8x512xf32>
    %c0_5 = arith.constant 0 : index
    %c0_6 = arith.constant 0 : index
    %c0_7 = arith.constant 0 : index
    %5 = vector.load %arg3[%c0_5, %c0_6, %c0_7] : memref<3x1x512xf32, #tpu.memory_space<vmem>>, vector<1x1x512xf32>
    %6 = vector.shape_cast %5 : vector<1x1x512xf32> to vector<1x512xf32>
    %7 = vector.broadcast %6 : vector<1x512xf32> to vector<8x512xf32>
    %8 = arith.addf %4, %7 : vector<8x512xf32>
    %cst_8 = arith.constant 0.000000e+00 : f32
    %9 = vector.broadcast %cst_8 : f32 to vector<8x512xf32>
    %10 = arith.maximumf %8, %9 : vector<8x512xf32>
    %11 = arith.truncf %10 : vector<8x512xf32> to vector<8x512xbf16>
    %c0_9 = arith.constant 0 : index
    %c0_10 = arith.constant 0 : index
    %c0_11 = arith.constant 0 : index
    %12 = vector.load %arg4[%c0_9, %c0_10, %c0_11] : memref<3x512x512xbf16, #tpu.memory_space<vmem>>, vector<1x512x512xbf16>
    %13 = vector.shape_cast %12 : vector<1x512x512xbf16> to vector<512x512xbf16>
    %cst_12 = arith.constant dense<0.000000e+00> : vector<8x512xf32>
    %14 = tpu.matmul %11, %13, %cst_12 {dimension_numbers = #tpu.dot_dimension_numbers<[1], [0], [0], [1], [0, 0, 1, 1], [], []>} : vector<8x512xbf16>, vector<512x512xbf16>, vector<8x512xf32> -> vector<8x512xf32>
    %c0_13 = arith.constant 0 : index
    %c0_14 = arith.constant 0 : index
    %c0_15 = arith.constant 0 : index
    %15 = vector.load %arg5[%c0_13, %c0_14, %c0_15] : memref<3x1x512xf32, #tpu.memory_space<vmem>>, vector<1x1x512xf32>
    %16 = vector.shape_cast %15 : vector<1x1x512xf32> to vector<1x512xf32>
    %17 = vector.broadcast %16 : vector<1x512xf32> to vector<8x512xf32>
    %18 = arith.addf %14, %17 : vector<8x512xf32>
    %cst_16 = arith.constant 0.000000e+00 : f32
    %19 = vector.broadcast %cst_16 : f32 to vector<8x512xf32>
    %20 = arith.maximumf %18, %19 : vector<8x512xf32>
    %21 = arith.truncf %20 : vector<8x512xf32> to vector<8x512xbf16>
    %c0_17 = arith.constant 0 : index
    %c0_18 = arith.constant 0 : index
    %c0_19 = arith.constant 0 : index
    %22 = vector.load %arg6[%c0_17, %c0_18, %c0_19] : memref<3x512x128xbf16, #tpu.memory_space<vmem>>, vector<1x512x128xbf16>
    %23 = vector.shape_cast %22 : vector<1x512x128xbf16> to vector<512x128xbf16>
    %cst_20 = arith.constant dense<0.000000e+00> : vector<8x128xf32>
    %24 = tpu.matmul %21, %23, %cst_20 {dimension_numbers = #tpu.dot_dimension_numbers<[1], [0], [0], [1], [0, 0, 1, 1], [], []>} : vector<8x512xbf16>, vector<512x128xbf16>, vector<8x128xf32> -> vector<8x128xf32>
    %c0_21 = arith.constant 0 : index
    %c0_22 = arith.constant 0 : index
    %c0_23 = arith.constant 0 : index
    %25 = vector.load %arg7[%c0_21, %c0_22, %c0_23] : memref<3x1x128xf32, #tpu.memory_space<vmem>>, vector<1x1x128xf32>
    %26 = vector.shape_cast %25 : vector<1x1x128xf32> to vector<1x128xf32>
    %27 = vector.broadcast %26 : vector<1x128xf32> to vector<8x128xf32>
    %28 = arith.addf %24, %27 : vector<8x128xf32>
    %cst_24 = arith.constant 0.000000e+00 : f32
    %29 = vector.broadcast %cst_24 : f32 to vector<8x128xf32>
    %30 = arith.maximumf %28, %29 : vector<8x128xf32>
    %c0_25 = arith.constant 0 : index
    %31 = memref.load %arg0[%c0_25] : memref<3xf32, #tpu.memory_space<smem>>
    %32 = vector.broadcast %31 : f32 to vector<8x128xf32>
    %33 = arith.mulf %32, %30 : vector<8x128xf32>
    %c1 = arith.constant 1 : index
    %c0_26 = arith.constant 0 : index
    %c0_27 = arith.constant 0 : index
    %34 = vector.load %arg1[%c1, %c0_26, %c0_27] : memref<3x8x32xbf16, #tpu.memory_space<vmem>>, vector<1x8x32xbf16>
    %35 = vector.shape_cast %34 : vector<1x8x32xbf16> to vector<8x32xbf16>
    %c1_28 = arith.constant 1 : index
    %c0_29 = arith.constant 0 : index
    %c0_30 = arith.constant 0 : index
    %36 = vector.load %arg2[%c1_28, %c0_29, %c0_30] : memref<3x32x512xbf16, #tpu.memory_space<vmem>>, vector<1x32x512xbf16>
    %37 = vector.shape_cast %36 : vector<1x32x512xbf16> to vector<32x512xbf16>
    %cst_31 = arith.constant dense<0.000000e+00> : vector<8x512xf32>
    %38 = tpu.matmul %35, %37, %cst_31 {dimension_numbers = #tpu.dot_dimension_numbers<[1], [0], [0], [1], [0, 0, 1, 1], [], []>} : vector<8x32xbf16>, vector<32x512xbf16>, vector<8x512xf32> -> vector<8x512xf32>
    %c1_32 = arith.constant 1 : index
    %c0_33 = arith.constant 0 : index
    %c0_34 = arith.constant 0 : index
    %39 = vector.load %arg3[%c1_32, %c0_33, %c0_34] : memref<3x1x512xf32, #tpu.memory_space<vmem>>, vector<1x1x512xf32>
    %40 = vector.shape_cast %39 : vector<1x1x512xf32> to vector<1x512xf32>
    %41 = vector.broadcast %40 : vector<1x512xf32> to vector<8x512xf32>
    %42 = arith.addf %38, %41 : vector<8x512xf32>
    %cst_35 = arith.constant 0.000000e+00 : f32
    %43 = vector.broadcast %cst_35 : f32 to vector<8x512xf32>
    %44 = arith.maximumf %42, %43 : vector<8x512xf32>
    %45 = arith.truncf %44 : vector<8x512xf32> to vector<8x512xbf16>
    %c1_36 = arith.constant 1 : index
    %c0_37 = arith.constant 0 : index
    %c0_38 = arith.constant 0 : index
    %46 = vector.load %arg4[%c1_36, %c0_37, %c0_38] : memref<3x512x512xbf16, #tpu.memory_space<vmem>>, vector<1x512x512xbf16>
    %47 = vector.shape_cast %46 : vector<1x512x512xbf16> to vector<512x512xbf16>
    %cst_39 = arith.constant dense<0.000000e+00> : vector<8x512xf32>
    %48 = tpu.matmul %45, %47, %cst_39 {dimension_numbers = #tpu.dot_dimension_numbers<[1], [0], [0], [1], [0, 0, 1, 1], [], []>} : vector<8x512xbf16>, vector<512x512xbf16>, vector<8x512xf32> -> vector<8x512xf32>
    %c1_40 = arith.constant 1 : index
    %c0_41 = arith.constant 0 : index
    %c0_42 = arith.constant 0 : index
    %49 = vector.load %arg5[%c1_40, %c0_41, %c0_42] : memref<3x1x512xf32, #tpu.memory_space<vmem>>, vector<1x1x512xf32>
    %50 = vector.shape_cast %49 : vector<1x1x512xf32> to vector<1x512xf32>
    %51 = vector.broadcast %50 : vector<1x512xf32> to vector<8x512xf32>
    %52 = arith.addf %48, %51 : vector<8x512xf32>
    %cst_43 = arith.constant 0.000000e+00 : f32
    %53 = vector.broadcast %cst_43 : f32 to vector<8x512xf32>
    %54 = arith.maximumf %52, %53 : vector<8x512xf32>
    %55 = arith.truncf %54 : vector<8x512xf32> to vector<8x512xbf16>
    %c1_44 = arith.constant 1 : index
    %c0_45 = arith.constant 0 : index
    %c0_46 = arith.constant 0 : index
    %56 = vector.load %arg6[%c1_44, %c0_45, %c0_46] : memref<3x512x128xbf16, #tpu.memory_space<vmem>>, vector<1x512x128xbf16>
    %57 = vector.shape_cast %56 : vector<1x512x128xbf16> to vector<512x128xbf16>
    %cst_47 = arith.constant dense<0.000000e+00> : vector<8x128xf32>
    %58 = tpu.matmul %55, %57, %cst_47 {dimension_numbers = #tpu.dot_dimension_numbers<[1], [0], [0], [1], [0, 0, 1, 1], [], []>} : vector<8x512xbf16>, vector<512x128xbf16>, vector<8x128xf32> -> vector<8x128xf32>
    %c1_48 = arith.constant 1 : index
    %c0_49 = arith.constant 0 : index
    %c0_50 = arith.constant 0 : index
    %59 = vector.load %arg7[%c1_48, %c0_49, %c0_50] : memref<3x1x128xf32, #tpu.memory_space<vmem>>, vector<1x1x128xf32>
    %60 = vector.shape_cast %59 : vector<1x1x128xf32> to vector<1x128xf32>
    %61 = vector.broadcast %60 : vector<1x128xf32> to vector<8x128xf32>
    %62 = arith.addf %58, %61 : vector<8x128xf32>
    %cst_51 = arith.constant 0.000000e+00 : f32
    %63 = vector.broadcast %cst_51 : f32 to vector<8x128xf32>
    %64 = arith.maximumf %62, %63 : vector<8x128xf32>
    %c1_52 = arith.constant 1 : index
    %65 = memref.load %arg0[%c1_52] : memref<3xf32, #tpu.memory_space<smem>>
    %66 = vector.broadcast %65 : f32 to vector<8x128xf32>
    %67 = arith.mulf %66, %64 : vector<8x128xf32>
    %68 = arith.addf %33, %67 : vector<8x128xf32>
    %c2 = arith.constant 2 : index
    %c0_53 = arith.constant 0 : index
    %c0_54 = arith.constant 0 : index
    %69 = vector.load %arg1[%c2, %c0_53, %c0_54] : memref<3x8x32xbf16, #tpu.memory_space<vmem>>, vector<1x8x32xbf16>
    %70 = vector.shape_cast %69 : vector<1x8x32xbf16> to vector<8x32xbf16>
    %c2_55 = arith.constant 2 : index
    %c0_56 = arith.constant 0 : index
    %c0_57 = arith.constant 0 : index
    %71 = vector.load %arg2[%c2_55, %c0_56, %c0_57] : memref<3x32x512xbf16, #tpu.memory_space<vmem>>, vector<1x32x512xbf16>
    %72 = vector.shape_cast %71 : vector<1x32x512xbf16> to vector<32x512xbf16>
    %cst_58 = arith.constant dense<0.000000e+00> : vector<8x512xf32>
    %73 = tpu.matmul %70, %72, %cst_58 {dimension_numbers = #tpu.dot_dimension_numbers<[1], [0], [0], [1], [0, 0, 1, 1], [], []>} : vector<8x32xbf16>, vector<32x512xbf16>, vector<8x512xf32> -> vector<8x512xf32>
    %c2_59 = arith.constant 2 : index
    %c0_60 = arith.constant 0 : index
    %c0_61 = arith.constant 0 : index
    %74 = vector.load %arg3[%c2_59, %c0_60, %c0_61] : memref<3x1x512xf32, #tpu.memory_space<vmem>>, vector<1x1x512xf32>
    %75 = vector.shape_cast %74 : vector<1x1x512xf32> to vector<1x512xf32>
    %76 = vector.broadcast %75 : vector<1x512xf32> to vector<8x512xf32>
    %77 = arith.addf %73, %76 : vector<8x512xf32>
    %cst_62 = arith.constant 0.000000e+00 : f32
    %78 = vector.broadcast %cst_62 : f32 to vector<8x512xf32>
    %79 = arith.maximumf %77, %78 : vector<8x512xf32>
    %80 = arith.truncf %79 : vector<8x512xf32> to vector<8x512xbf16>
    %c2_63 = arith.constant 2 : index
    %c0_64 = arith.constant 0 : index
    %c0_65 = arith.constant 0 : index
    %81 = vector.load %arg4[%c2_63, %c0_64, %c0_65] : memref<3x512x512xbf16, #tpu.memory_space<vmem>>, vector<1x512x512xbf16>
    %82 = vector.shape_cast %81 : vector<1x512x512xbf16> to vector<512x512xbf16>
    %cst_66 = arith.constant dense<0.000000e+00> : vector<8x512xf32>
    %83 = tpu.matmul %80, %82, %cst_66 {dimension_numbers = #tpu.dot_dimension_numbers<[1], [0], [0], [1], [0, 0, 1, 1], [], []>} : vector<8x512xbf16>, vector<512x512xbf16>, vector<8x512xf32> -> vector<8x512xf32>
    %c2_67 = arith.constant 2 : index
    %c0_68 = arith.constant 0 : index
    %c0_69 = arith.constant 0 : index
    %84 = vector.load %arg5[%c2_67, %c0_68, %c0_69] : memref<3x1x512xf32, #tpu.memory_space<vmem>>, vector<1x1x512xf32>
    %85 = vector.shape_cast %84 : vector<1x1x512xf32> to vector<1x512xf32>
    %86 = vector.broadcast %85 : vector<1x512xf32> to vector<8x512xf32>
    %87 = arith.addf %83, %86 : vector<8x512xf32>
    %cst_70 = arith.constant 0.000000e+00 : f32
    %88 = vector.broadcast %cst_70 : f32 to vector<8x512xf32>
    %89 = arith.maximumf %87, %88 : vector<8x512xf32>
    %90 = arith.truncf %89 : vector<8x512xf32> to vector<8x512xbf16>
    %c2_71 = arith.constant 2 : index
    %c0_72 = arith.constant 0 : index
    %c0_73 = arith.constant 0 : index
    %91 = vector.load %arg6[%c2_71, %c0_72, %c0_73] : memref<3x512x128xbf16, #tpu.memory_space<vmem>>, vector<1x512x128xbf16>
    %92 = vector.shape_cast %91 : vector<1x512x128xbf16> to vector<512x128xbf16>
    %cst_74 = arith.constant dense<0.000000e+00> : vector<8x128xf32>
    %93 = tpu.matmul %90, %92, %cst_74 {dimension_numbers = #tpu.dot_dimension_numbers<[1], [0], [0], [1], [0, 0, 1, 1], [], []>} : vector<8x512xbf16>, vector<512x128xbf16>, vector<8x128xf32> -> vector<8x128xf32>
    %c2_75 = arith.constant 2 : index
    %c0_76 = arith.constant 0 : index
    %c0_77 = arith.constant 0 : index
    %94 = vector.load %arg7[%c2_75, %c0_76, %c0_77] : memref<3x1x128xf32, #tpu.memory_space<vmem>>, vector<1x1x128xf32>
    %95 = vector.shape_cast %94 : vector<1x1x128xf32> to vector<1x128xf32>
    %96 = vector.broadcast %95 : vector<1x128xf32> to vector<8x128xf32>
    %97 = arith.addf %93, %96 : vector<8x128xf32>
    %cst_78 = arith.constant 0.000000e+00 : f32
    %98 = vector.broadcast %cst_78 : f32 to vector<8x128xf32>
    %99 = arith.maximumf %97, %98 : vector<8x128xf32>
    %c2_79 = arith.constant 2 : index
    %100 = memref.load %arg0[%c2_79] : memref<3xf32, #tpu.memory_space<smem>>
    %101 = vector.broadcast %100 : f32 to vector<8x128xf32>
    %102 = arith.mulf %101, %99 : vector<8x128xf32>
    %103 = arith.addf %68, %102 : vector<8x128xf32>
    %c0_80 = arith.constant 0 : index
    %c0_81 = arith.constant 0 : index
    %104 = vector.load %arg8[%c0_80, %c0_81] : memref<128x128xf32, #tpu.memory_space<vmem>>, vector<128x128xf32>
    %cst_82 = arith.constant dense<0.000000e+00> : vector<8x128xf32>
    %105 = tpu.matmul %103, %104, %cst_82 {dimension_numbers = #tpu.dot_dimension_numbers<[1], [0], [0], [1], [0, 0, 1, 1], [], []>} : vector<8x128xf32>, vector<128x128xf32>, vector<8x128xf32> -> vector<8x128xf32>
    %c0_83 = arith.constant 0 : index
    %c0_84 = arith.constant 0 : index
    %106 = vector.load %arg9[%c0_83, %c0_84] : memref<1x128xf32, #tpu.memory_space<vmem>>, vector<1x128xf32>
    %107 = vector.broadcast %106 : vector<1x128xf32> to vector<8x128xf32>
    %108 = arith.addf %105, %107 : vector<8x128xf32>
    %cst_85 = arith.constant 0.000000e+00 : f32
    %109 = vector.broadcast %cst_85 : f32 to vector<8x128xf32>
    %110 = arith.maximumf %108, %109 : vector<8x128xf32>
    %cst_86 = arith.constant dense<0.000000e+00> : vector<128xf32>
    %111 = vector.multi_reduction <add>, %110, %cst_86 [0] : vector<8x128xf32> to vector<128xf32>
    %112 = vector.shape_cast %111 : vector<128xf32> to vector<1x128xf32>
    %cst_87 = arith.constant 8.000000e+00 : f32
    %113 = vector.broadcast %cst_87 : f32 to vector<1x128xf32>
    %114 = arith.divf %112, %113 : vector<1x128xf32>
    %115 = vector.broadcast %114 : vector<1x128xf32> to vector<8x128xf32>
    %116 = arith.subf %110, %115 : vector<8x128xf32>
    %117 = arith.mulf %116, %116 : vector<8x128xf32>
    %cst_88 = arith.constant dense<0.000000e+00> : vector<128xf32>
    %118 = vector.multi_reduction <add>, %117, %cst_88 [0] : vector<8x128xf32> to vector<128xf32>
    %119 = vector.shape_cast %118 : vector<128xf32> to vector<1x128xf32>
    %cst_89 = arith.constant 8.000000e+00 : f32
    %120 = vector.broadcast %cst_89 : f32 to vector<1x128xf32>
    %121 = arith.divf %119, %120 : vector<1x128xf32>
    %c0_90 = arith.constant 0 : index
    %c0_91 = arith.constant 0 : index
    %122 = vector.load %arg10[%c0_90, %c0_91] : memref<1x128xf32, #tpu.memory_space<vmem>>, vector<1x128xf32>
    %123 = vector.broadcast %114 : vector<1x128xf32> to vector<8x128xf32>
    %124 = arith.subf %110, %123 : vector<8x128xf32>
    %125 = vector.broadcast %122 : vector<1x128xf32> to vector<8x128xf32>
    %126 = arith.mulf %125, %124 : vector<8x128xf32>
    %cst_92 = arith.constant 9.99999974E-6 : f32
    %127 = vector.broadcast %cst_92 : f32 to vector<1x128xf32>
    %128 = arith.addf %121, %127 : vector<1x128xf32>
    %129 = math.rsqrt %128 : vector<1x128xf32>
    %130 = vector.broadcast %129 : vector<1x128xf32> to vector<8x128xf32>
    %131 = arith.mulf %126, %130 : vector<8x128xf32>
    %c0_93 = arith.constant 0 : index
    %c0_94 = arith.constant 0 : index
    %132 = vector.load %arg11[%c0_93, %c0_94] : memref<1x128xf32, #tpu.memory_space<vmem>>, vector<1x128xf32>
    %133 = vector.broadcast %132 : vector<1x128xf32> to vector<8x128xf32>
    %134 = arith.addf %131, %133 : vector<8x128xf32>
    %c0_95 = arith.constant 0 : index
    %c0_96 = arith.constant 0 : index
    %135 = vector.load %arg15[%c0_95, %c0_96] : memref<8x128xf32, #tpu.memory_space<vmem>>, vector<8x128xf32>
    tpu.vector_store %arg15[%c0_95, %c0_96], %134 {strides = array<i32>} : memref<8x128xf32, #tpu.memory_space<vmem>>, vector<8x128xf32>,
    %c0_97 = arith.constant 0 : index
    %c0_98 = arith.constant 0 : index
    %136 = vector.load %arg12[%c0_97, %c0_98] : memref<128x128xf32, #tpu.memory_space<vmem>>, vector<128x128xf32>
    %cst_99 = arith.constant dense<0.000000e+00> : vector<8x128xf32>
    %137 = tpu.matmul %134, %136, %cst_99 {dimension_numbers = #tpu.dot_dimension_numbers<[1], [0], [0], [1], [0, 0, 1, 1], [], []>} : vector<8x128xf32>, vector<128x128xf32>, vector<8x128xf32> -> vector<8x128xf32>
    %c0_100 = arith.constant 0 : index
    %c0_101 = arith.constant 0 : index
    %138 = vector.load %arg13[%c0_100, %c0_101] : memref<1x128xf32, #tpu.memory_space<vmem>>, vector<1x128xf32>
    %139 = vector.broadcast %138 : vector<1x128xf32> to vector<8x128xf32>
    %140 = arith.addf %137, %139 : vector<8x128xf32>
    %cst_102 = arith.constant dense<0xFF800000> : vector<8xf32>
    %141 = vector.multi_reduction <maximumf>, %140, %cst_102 [1] : vector<8x128xf32> to vector<8xf32>
    %142 = vector.shape_cast %141 : vector<8xf32> to vector<8x1xf32>
    %143 = vector.broadcast %142 : vector<8x1xf32> to vector<8x128xf32>
    %144 = arith.subf %140, %143 : vector<8x128xf32>
    %145 = math.exp %144 : vector<8x128xf32>
    %cst_103 = arith.constant dense<0.000000e+00> : vector<8xf32>
    %146 = vector.multi_reduction <add>, %145, %cst_103 [1] : vector<8x128xf32> to vector<8xf32>
    %147 = vector.shape_cast %146 : vector<8xf32> to vector<8x1xf32>
    %148 = vector.broadcast %147 : vector<8x1xf32> to vector<8x128xf32>
    %149 = arith.divf %145, %148 : vector<8x128xf32>
    %c0_104 = arith.constant 0 : index
    %c0_105 = arith.constant 0 : index
    %150 = vector.load %arg14[%c0_104, %c0_105] : memref<8x128xf32, #tpu.memory_space<vmem>>, vector<8x128xf32>
    tpu.vector_store %arg14[%c0_104, %c0_105], %149 {strides = array<i32>} : memref<8x128xf32, #tpu.memory_space<vmem>>, vector<8x128xf32>,
    return
  }
}

</mosaic_0001>

<llo_original>
// kernel: mvc_forward.1
$region0: #{mvc_forward.1}
  #allocation0 [shape = 'u32[]', space=smem, size = 0x4, offset = 0x4, fixed_abs, tag = 'smem constant byte address 0x4 - core index']
  #allocation1 [shape = 'u32[144,128]{1,0:T(1,128)}', space=vmem, size = 0x12000, scoped, tag = 'internal scratch']
  %s0 = inlined_call_operand.vmem [shape: f32[3], index: 0, kind: input, shape index: {}]
  %s1 = inlined_call_operand.vmem [shape: bf16[3,8,32], index: 1, kind: input, shape index: {}]
  %s2 = inlined_call_operand.hbm [shape: bf16[3,32,512], index: 2, kind: input, shape index: {}]
  %s3 = inlined_call_operand.hbm [shape: f32[3,1,512], index: 3, kind: input, shape index: {}]
  %s4 = inlined_call_operand.hbm [shape: bf16[3,512,512], index: 4, kind: input, shape index: {}]
  %s5 = inlined_call_operand.hbm [shape: f32[3,1,512], index: 5, kind: input, shape index: {}]
  %s6 = inlined_call_operand.hbm [shape: bf16[3,512,128], index: 6, kind: input, shape index: {}]
  %s7 = inlined_call_operand.hbm [shape: f32[3,1,128], index: 7, kind: input, shape index: {}]
  %s8 = inlined_call_operand.hbm [shape: f32[128,128], index: 8, kind: input, shape index: {}]
  %s9 = inlined_call_operand.hbm [shape: f32[1,128], index: 9, kind: input, shape index: {}]
  %s10 = inlined_call_operand.hbm [shape: f32[1,128], index: 10, kind: input, shape index: {}]
  %s11 = inlined_call_operand.hbm [shape: f32[1,128], index: 11, kind: input, shape index: {}]
  %s12 = inlined_call_operand.hbm [shape: f32[128,128], index: 12, kind: input, shape index: {}]
  %s13 = inlined_call_operand.hbm [shape: f32[1,128], index: 13, kind: input, shape index: {}]
  %s14 = inlined_call_operand.vmem [shape: f32[8,128], index: 14, kind: output, shape index: {0}]
  %s15 = inlined_call_operand.hbm [shape: f32[8,128], index: 15, kind: output, shape index: {1}]
  %16 = xla_tuple %s14, %s15
  %s17 = sld [smem:[#allocation0]]
  $region126: #{mvc_forward.1} parent=0
    _
  %s19 = ssub.s32 1, %s17
  %s20 = scalar_select 0, %s19, %s17
  $region1: #{mvc_forward.1} parent=0
    #allocation2 [shape = 'u8[512]{0}', space=smem, size = 0x200, scoped, tag = 'input window, operand 0, single buffered']
    #allocation3 [shape = 's32[1]{0}', space=sflag, size = 0x4, scoped, tag = 'scoped memory for mvc_forward.1']
    #allocation4 [shape = 's32[1]{0}', space=sflag, size = 0x4, scoped, tag = 'scoped memory for mvc_forward.1']
    #allocation5 [shape = 's32[1]{0}', space=sflag, size = 0x4, scoped, tag = 'scoped memory for mvc_forward.1']
    #allocation6 [shape = 'u8[98304]{0}', space=vmem, size = 0x18000, scoped, tag = 'input window, operand 2, single buffered']
    #allocation7 [shape = 'u8[6144]{0}', space=vmem, size = 0x1800, scoped, tag = 'input window, operand 3, single buffered']
    #allocation8 [shape = 's32[1]{0}', space=sflag, size = 0x4, scoped, tag = 'scoped memory for mvc_forward.1']
    #allocation9 [shape = 'u8[1572864]{0}', space=vmem, size = 0x180000, scoped, tag = 'input window, operand 4, single buffered']
    #allocation10 [shape = 'u8[6144]{0}', space=vmem, size = 0x1800, scoped, tag = 'input window, operand 5, single buffered']
    #allocation11 [shape = 's32[1]{0}', space=sflag, size = 0x4, scoped, tag = 'scoped memory for mvc_forward.1']
    #allocation12 [shape = 'u8[393216]{0}', space=vmem, size = 0x60000, scoped, tag = 'input window, operand 6, single buffered']
    #allocation13 [shape = 'u8[1536]{0}', space=vmem, size = 0x800, scoped, tag = 'input window, operand 7, single buffered']
    #allocation14 [shape = 's32[1]{0}', space=sflag, size = 0x4, scoped, tag = 'scoped memory for mvc_forward.1']
    #allocation15 [shape = 'u8[65536]{0}', space=vmem, size = 0x10000, scoped, tag = 'input window, operand 8, single buffered']
    #allocation16 [shape = 'u8[512]{0}', space=vmem, size = 0x400, scoped, tag = 'input window, operand 9, single buffered']
    #allocation17 [shape = 's32[1]{0}', space=sflag, size = 0x4, scoped, tag = 'scoped memory for mvc_forward.1']
    #allocation18 [shape = 'u8[512]{0}', space=vmem, size = 0x400, scoped, tag = 'input window, operand 10, single buffered']
    #allocation19 [shape = 'u8[512]{0}', space=vmem, size = 0x400, scoped, tag = 'input window, operand 11, single buffered']
    #allocation20 [shape = 's32[1]{0}', space=sflag, size = 0x4, scoped, tag = 'scoped memory for mvc_forward.1']
    #allocation21 [shape = 'u8[65536]{0}', space=vmem, size = 0x10000, scoped, tag = 'input window, operand 12, single buffered']
    #allocation22 [shape = 'u8[512]{0}', space=vmem, size = 0x400, scoped, tag = 'input window, operand 13, single buffered']
    #allocation23 [shape = 's32[1]{0}', space=sflag, size = 0x4, scoped, tag = 'scoped memory for mvc_forward.1']
    #allocation24 [shape = 'u8[4096]{0}', space=vmem, size = 0x1000, scoped, tag = 'output window, operand 1, single buffered']
    %21 = vsyncpa [#allocation5], 0
    %22 = vsyncpa [#allocation3], 0
    %23 = vsyncpa [#allocation8], 0
    %24 = vsyncpa [#allocation11], 0
    %25 = vsyncpa [#allocation14], 0
    %26 = vsyncpa [#allocation17], 0
    %27 = vsyncpa [#allocation20], 0
    %28 = vsyncpa [#allocation23], 0
    %29 = vsyncpa [#allocation4], 0
    // Predicated region
    $region2: #{mvc_forward.1} parent=1 // pred_check
      _
    $region3: #{mvc_forward.1} parent=1 // pred_check_branch
      %31 = sbr.rel (0) target = $region5
    $region4: #{mvc_forward.1} parent=1 // pred_region
      %s33 = ssub.s32 16, 16
      %34 = vsyncadd [#allocation5], %s33
      %s36 = sshll.u32 %s0, 4
      %s37 = int_to_ptr.vmem [resolvable:$true] %s36
      %39 = dma.vmem_to_smem %s37, 16, [#allocation2], [#allocation5]
    $region5: #{mvc_forward.1} parent=1 // pred_fallthru
      _
    // Predicated region
    $region6: #{mvc_forward.1} parent=1 // pred_check
      _
    $region7: #{mvc_forward.1} parent=1 // pred_check_branch
      %41 = sbr.rel (0) target = $region9
    $region8: #{mvc_forward.1} parent=1 // pred_region
      _
    $region9: #{mvc_forward.1} parent=1 // pred_fallthru
      _
    // Predicated region
    $region10: #{mvc_forward.1} parent=1 // pred_check
      _
    $region11: #{mvc_forward.1} parent=1 // pred_check_branch
      %43 = sbr.rel (0) target = $region13
    $region12: #{mvc_forward.1} parent=1 // pred_region
      %s45 = ssub.s32 3072, 3072
      %46 = vsyncadd [#allocation3], %s45
      %s47 = sshll.u32 [#allocation6], 4
      %s48 = int_to_ptr.vmem [resolvable:$true] %s47
      %53 = dma.hbm_to_vmem [thread:$0]  %s2, 3072, %s48, [#allocation3], 256, 256, 16
    $region13: #{mvc_forward.1} parent=1 // pred_fallthru
      _
    // Predicated region
    $region14: #{mvc_forward.1} parent=1 // pred_check
      _
    $region15: #{mvc_forward.1} parent=1 // pred_check_branch
      %55 = sbr.rel (0) target = $region17
    $region16: #{mvc_forward.1} parent=1 // pred_region
      %s57 = ssub.s32 192, 192
      %58 = vsyncadd [#allocation8], %s57
      %s59 = sshll.u32 [#allocation7], 4
      %s60 = int_to_ptr.vmem [resolvable:$true] %s59
      %65 = dma.hbm_to_vmem [thread:$0]  %s3, 192, %s60, [#allocation8], 64, 64, 4
    $region17: #{mvc_forward.1} parent=1 // pred_fallthru
      _
    // Predicated region
    $region18: #{mvc_forward.1} parent=1 // pred_check
      _
    $region19: #{mvc_forward.1} parent=1 // pred_check_branch
      %67 = sbr.rel (0) target = $region21
    $region20: #{mvc_forward.1} parent=1 // pred_region
      %s69 = ssub.s32 49152, 49152
      %70 = vsyncadd [#allocation8], %s69
      %s71 = sshll.u32 [#allocation9], 4
      %s72 = int_to_ptr.vmem [resolvable:$true] %s71
      %77 = dma.hbm_to_vmem [thread:$0]  %s4, 49152, %s72, [#allocation8], 256, 256, 16
    $region21: #{mvc_forward.1} parent=1 // pred_fallthru
      _
    // Predicated region
    $region22: #{mvc_forward.1} parent=1 // pred_check
      _
    $region23: #{mvc_forward.1} parent=1 // pred_check_branch
      %79 = sbr.rel (0) target = $region25
    $region24: #{mvc_forward.1} parent=1 // pred_region
      %s81 = ssub.s32 192, 192
      %82 = vsyncadd [#allocation11], %s81
      %s83 = sshll.u32 [#allocation10], 4
      %s84 = int_to_ptr.vmem [resolvable:$true] %s83
      %89 = dma.hbm_to_vmem [thread:$0]  %s5, 192, %s84, [#allocation11], 64, 64, 4
    $region25: #{mvc_forward.1} parent=1 // pred_fallthru
      _
    // Predicated region
    $region26: #{mvc_forward.1} parent=1 // pred_check
      _
    $region27: #{mvc_forward.1} parent=1 // pred_check_branch
      %91 = sbr.rel (0) target = $region29
    $region28: #{mvc_forward.1} parent=1 // pred_region
      %s93 = ssub.s32 12288, 12288
      %94 = vsyncadd [#allocation11], %s93
      %s95 = sshll.u32 [#allocation12], 4
      %s96 = int_to_ptr.vmem [resolvable:$true] %s95
      %101 = dma.hbm_to_vmem [thread:$0]  %s6, 12288, %s96, [#allocation11], 64, 64, 4
    $region29: #{mvc_forward.1} parent=1 // pred_fallthru
      _
    // Predicated region
    $region30: #{mvc_forward.1} parent=1 // pred_check
      _
    $region31: #{mvc_forward.1} parent=1 // pred_check_branch
      %103 = sbr.rel (0) target = $region33
    $region32: #{mvc_forward.1} parent=1 // pred_region
      %s105 = ssub.s32 48, 48
      %106 = vsyncadd [#allocation14], %s105
      %s107 = sshll.u32 [#allocation13], 4
      %s108 = int_to_ptr.vmem [resolvable:$true] %s107
      %113 = dma.hbm_to_vmem [thread:$0]  %s7, 48, %s108, [#allocation14], 16, 16, 1
    $region33: #{mvc_forward.1} parent=1 // pred_fallthru
      _
    // Predicated region
    $region34: #{mvc_forward.1} parent=1 // pred_check
      _
    $region35: #{mvc_forward.1} parent=1 // pred_check_branch
      %115 = sbr.rel (0) target = $region37
    $region36: #{mvc_forward.1} parent=1 // pred_region
      %s117 = ssub.s32 2048, 2048
      %118 = vsyncadd [#allocation14], %s117
      %s119 = sshll.u32 [#allocation15], 4
      %s120 = int_to_ptr.vmem [resolvable:$true] %s119
      %125 = dma.hbm_to_vmem [thread:$0]  %s8, 2048, %s120, [#allocation14], 128, 128, 8
    $region37: #{mvc_forward.1} parent=1 // pred_fallthru
      _
    // Predicated region
    $region38: #{mvc_forward.1} parent=1 // pred_check
      _
    $region39: #{mvc_forward.1} parent=1 // pred_check_branch
      %127 = sbr.rel (0) target = $region41
    $region40: #{mvc_forward.1} parent=1 // pred_region
      %s129 = ssub.s32 16, 16
      %130 = vsyncadd [#allocation17], %s129
      %s132 = sshll.u32 [#allocation16], 4
      %s133 = int_to_ptr.vmem [resolvable:$true] %s132
      %135 = dma.hbm_to_vmem [thread:$0]  %s9, 16, %s133, [#allocation17]
    $region41: #{mvc_forward.1} parent=1 // pred_fallthru
      _
    // Predicated region
    $region42: #{mvc_forward.1} parent=1 // pred_check
      _
    $region43: #{mvc_forward.1} parent=1 // pred_check_branch
      %137 = sbr.rel (0) target = $region45
    $region44: #{mvc_forward.1} parent=1 // pred_region
      %s139 = ssub.s32 16, 16
      %140 = vsyncadd [#allocation17], %s139
      %s142 = sshll.u32 [#allocation18], 4
      %s143 = int_to_ptr.vmem [resolvable:$true] %s142
      %145 = dma.hbm_to_vmem [thread:$0]  %s10, 16, %s143, [#allocation17]
    $region45: #{mvc_forward.1} parent=1 // pred_fallthru
      _
    // Predicated region
    $region46: #{mvc_forward.1} parent=1 // pred_check
      _
    $region47: #{mvc_forward.1} parent=1 // pred_check_branch
      %147 = sbr.rel (0) target = $region49
    $region48: #{mvc_forward.1} parent=1 // pred_region
      %s149 = ssub.s32 16, 16
      %150 = vsyncadd [#allocation20], %s149
      %s152 = sshll.u32 [#allocation19], 4
      %s153 = int_to_ptr.vmem [resolvable:$true] %s152
      %155 = dma.hbm_to_vmem [thread:$0]  %s11, 16, %s153, [#allocation20]
    $region49: #{mvc_forward.1} parent=1 // pred_fallthru
      _
    // Predicated region
    $region50: #{mvc_forward.1} parent=1 // pred_check
      _
    $region51: #{mvc_forward.1} parent=1 // pred_check_branch
      %157 = sbr.rel (0) target = $region53
    $region52: #{mvc_forward.1} parent=1 // pred_region
      %s159 = ssub.s32 2048, 2048
      %160 = vsyncadd [#allocation20], %s159
      %s161 = sshll.u32 [#allocation21], 4
      %s162 = int_to_ptr.vmem [resolvable:$true] %s161
      %167 = dma.hbm_to_vmem [thread:$0]  %s12, 2048, %s162, [#allocation20], 128, 128, 8
    $region53: #{mvc_forward.1} parent=1 // pred_fallthru
      _
    // Predicated region
    $region54: #{mvc_forward.1} parent=1 // pred_check
      _
    $region55: #{mvc_forward.1} parent=1 // pred_check_branch
      %169 = sbr.rel (0) target = $region57
    $region56: #{mvc_forward.1} parent=1 // pred_region
      %s171 = ssub.s32 16, 16
      %172 = vsyncadd [#allocation23], %s171
      %s174 = sshll.u32 [#allocation22], 4
      %s175 = int_to_ptr.vmem [resolvable:$true] %s174
      %177 = dma.hbm_to_vmem [thread:$0]  %s13, 16, %s175, [#allocation23]
    $region57: #{mvc_forward.1} parent=1 // pred_fallthru
      _
    // Predicated region
    $region58: #{mvc_forward.1} parent=1 // pred_check
      _
    $region59: #{mvc_forward.1} parent=1 // pred_check_branch
      %179 = sbr.rel (0) target = $region61
    $region60: #{mvc_forward.1} parent=1 // pred_region
      %180 = dma.done [#allocation5], 16
    $region61: #{mvc_forward.1} parent=1 // pred_fallthru
      _
    // Predicated region
    $region62: #{mvc_forward.1} parent=1 // pred_check
      _
    $region63: #{mvc_forward.1} parent=1 // pred_check_branch
      %182 = sbr.rel (0) target = $region65
    $region64: #{mvc_forward.1} parent=1 // pred_region
      %183 = dma.done [#allocation3], 3072
    $region65: #{mvc_forward.1} parent=1 // pred_fallthru
      _
    // Predicated region
    $region66: #{mvc_forward.1} parent=1 // pred_check
      _
    $region67: #{mvc_forward.1} parent=1 // pred_check_branch
      %185 = sbr.rel (0) target = $region69
    $region68: #{mvc_forward.1} parent=1 // pred_region
      %186 = dma.done [#allocation8], 192
    $region69: #{mvc_forward.1} parent=1 // pred_fallthru
      _
    // Predicated region
    $region70: #{mvc_forward.1} parent=1 // pred_check
      _
    $region71: #{mvc_forward.1} parent=1 // pred_check_branch
      %188 = sbr.rel (0) target = $region73
    $region72: #{mvc_forward.1} parent=1 // pred_region
      %189 = dma.done [#allocation8], 49152
    $region73: #{mvc_forward.1} parent=1 // pred_fallthru
      _
    // Predicated region
    $region74: #{mvc_forward.1} parent=1 // pred_check
      _
    $region75: #{mvc_forward.1} parent=1 // pred_check_branch
      %191 = sbr.rel (0) target = $region77
    $region76: #{mvc_forward.1} parent=1 // pred_region
      %192 = dma.done [#allocation11], 192
    $region77: #{mvc_forward.1} parent=1 // pred_fallthru
      _
    // Predicated region
    $region78: #{mvc_forward.1} parent=1 // pred_check
      _
    $region79: #{mvc_forward.1} parent=1 // pred_check_branch
      %194 = sbr.rel (0) target = $region81
    $region80: #{mvc_forward.1} parent=1 // pred_region
      %195 = dma.done [#allocation11], 12288
    $region81: #{mvc_forward.1} parent=1 // pred_fallthru
      _
    // Predicated region
    $region82: #{mvc_forward.1} parent=1 // pred_check
      _
    $region83: #{mvc_forward.1} parent=1 // pred_check_branch
      %197 = sbr.rel (0) target = $region85
    $region84: #{mvc_forward.1} parent=1 // pred_region
      %198 = dma.done [#allocation14], 48
    $region85: #{mvc_forward.1} parent=1 // pred_fallthru
      _
    // Predicated region
    $region86: #{mvc_forward.1} parent=1 // pred_check
      _
    $region87: #{mvc_forward.1} parent=1 // pred_check_branch
      %200 = sbr.rel (0) target = $region89
    $region88: #{mvc_forward.1} parent=1 // pred_region
      %201 = dma.done [#allocation14], 2048
    $region89: #{mvc_forward.1} parent=1 // pred_fallthru
      _
    // Predicated region
    $region90: #{mvc_forward.1} parent=1 // pred_check
      _
    $region91: #{mvc_forward.1} parent=1 // pred_check_branch
      %203 = sbr.rel (0) target = $region93
    $region92: #{mvc_forward.1} parent=1 // pred_region
      %204 = dma.done [#allocation17], 16
    $region93: #{mvc_forward.1} parent=1 // pred_fallthru
      _
    // Predicated region
    $region94: #{mvc_forward.1} parent=1 // pred_check
      _
    $region95: #{mvc_forward.1} parent=1 // pred_check_branch
      %206 = sbr.rel (0) target = $region97
    $region96: #{mvc_forward.1} parent=1 // pred_region
      %207 = dma.done [#allocation17], 16
    $region97: #{mvc_forward.1} parent=1 // pred_fallthru
      _
    // Predicated region
    $region98: #{mvc_forward.1} parent=1 // pred_check
      _
    $region99: #{mvc_forward.1} parent=1 // pred_check_branch
      %209 = sbr.rel (0) target = $region101
    $region100: #{mvc_forward.1} parent=1 // pred_region
      %210 = dma.done [#allocation20], 16
    $region101: #{mvc_forward.1} parent=1 // pred_fallthru
      _
    // Predicated region
    $region102: #{mvc_forward.1} parent=1 // pred_check
      _
    $region103: #{mvc_forward.1} parent=1 // pred_check_branch
      %212 = sbr.rel (0) target = $region105
    $region104: #{mvc_forward.1} parent=1 // pred_region
      %213 = dma.done [#allocation20], 2048
    $region105: #{mvc_forward.1} parent=1 // pred_fallthru
      _
    // Predicated region
    $region106: #{mvc_forward.1} parent=1 // pred_check
      _
    $region107: #{mvc_forward.1} parent=1 // pred_check_branch
      %215 = sbr.rel (0) target = $region109
    $region108: #{mvc_forward.1} parent=1 // pred_region
      %216 = dma.done [#allocation23], 16
    $region109: #{mvc_forward.1} parent=1 // pred_fallthru
      _
    %217 = sfence
    %v219 = vld [vmem:[%s1] sm:$0xf]
    %v220 = vld [vmem:[#allocation6] sm:$0xff]
    %v221 = vld [vmem:[#allocation6 + $0x8] sm:$0xff]
    %v222 = vld [vmem:[#allocation6 + $0x10] sm:$0xff]
    %v223 = vld [vmem:[#allocation6 + $0x18] sm:$0xff]
    %v224 = vld [vmem:[#allocation6 + $0x20] sm:$0xff]
    %v225 = vld [vmem:[#allocation6 + $0x28] sm:$0xff]
    %v226 = vld [vmem:[#allocation6 + $0x30] sm:$0xff]
    %v227 = vld [vmem:[#allocation6 + $0x38] sm:$0xff]
    %v228 = vld [vmem:[#allocation7] sm:$0xf]
    %v230 = vlaneseq
    %v231 = vshrl.u32 %v230, 7
    %v232 = vsub.s32 0, %v231
    %v233 = vrot.slane %v228, %v232
    %v234 = vlaneseq
    %v235 = vshrl.u32 %v234, 7
    %v236 = vsub.s32 1, %v235
    %v237 = vrot.slane %v228, %v236
    %v238 = vlaneseq
    %v239 = vshrl.u32 %v238, 7
    %v240 = vsub.s32 2, %v239
    %v241 = vrot.slane %v228, %v240
    %v242 = vlaneseq
    %v243 = vshrl.u32 %v242, 7
    %v244 = vsub.s32 3, %v243
    %v245 = vrot.slane %v228, %v244
    %v258 = vunpack.c.l.b16 %v220
    %v259 = vunpack.c.h.b16 %v220
    %v260 = vunpack.c.l.b16 %v221
    %v261 = vunpack.c.h.b16 %v221
    %v262 = vunpack.c.l.b16 %v222
    %v263 = vunpack.c.h.b16 %v222
    %v264 = vunpack.c.l.b16 %v223
    %v265 = vunpack.c.h.b16 %v223
    %v266 = vunpack.c.l.b16 %v224
    %v267 = vunpack.c.h.b16 %v224
    %v268 = vunpack.c.l.b16 %v225
    %v269 = vunpack.c.h.b16 %v225
    %v270 = vunpack.c.l.b16 %v226
    %v271 = vunpack.c.h.b16 %v226
    %v272 = vunpack.c.l.b16 %v227
    %v273 = vunpack.c.h.b16 %v227
    %v274 = vpack.c.b16 %v262, %v258
    %v275 = vpack.c.b16 %v263, %v259
    %v276 = vpack.c.b16 %v264, %v260
    %v277 = vpack.c.b16 %v265, %v261
    %v278 = vpack.c.b16 %v270, %v266
    %v279 = vpack.c.b16 %v271, %v267
    %v280 = vpack.c.b16 %v272, %v268
    %v281 = vpack.c.b16 %v273, %v269
    %vm290 = vcmask 261120
    %v292 = vsel %vm290, %v219, 0
    %294 = vmatprep.subr.bf16.mxu0 %v275
    %295 = vmatpush1.bf16.msra.mxu0 %v274
    %296 = vmatprep.subr.bf16.mxu0 %v279
    %297 = vmatpush1.bf16.msra.mxu0 %v278
    %298 = vmatprep.subr.bf16.mxu0 0
    %299 = vmatpush1.bf16.msra.mxu0 0
    %300 = vmatprep.subr.bf16.mxu0 0
    %301 = vmatpush1.bf16.msra.mxu0 0
    %302 = vmatprep.subr.bf16.mxu0 0
    %303 = vmatpush1.bf16.msra.mxu0 0
    %304 = vmatprep.subr.bf16.mxu0 0
    %305 = vmatpush1.bf16.msra.mxu0 0
    %306 = vmatprep.subr.bf16.mxu0 0
    %307 = vmatpush1.bf16.msra.mxu0 0
    %308 = vmatprep.subr.bf16.mxu0 0
    %309 = vmatpush1.bf16.msra.mxu0 0
    %310 = vmatprep.subr.bf16.mxu0 0
    %311 = vmatpush1.bf16.msra.mxu0 0
    %312 = vmatprep.subr.bf16.mxu0 0
    %313 = vmatpush1.bf16.msra.mxu0 0
    %314 = vmatprep.subr.bf16.mxu0 0
    %315 = vmatpush1.bf16.msra.mxu0 0
    %316 = vmatprep.subr.bf16.mxu0 0
    %317 = vmatpush1.bf16.msra.mxu0 0
    %318 = vmatprep.subr.bf16.mxu0 0
    %319 = vmatpush1.bf16.msra.mxu0 0
    %320 = vmatprep.subr.bf16.mxu0 0
    %321 = vmatpush1.bf16.msra.mxu0 0
    %322 = vmatprep.subr.bf16.mxu0 0
    %323 = vmatpush1.bf16.msra.mxu0 0
    %324 = vmatprep.subr.bf16.mxu0 0
    %325 = vmatpush1.bf16.msra.mxu0 0
    %326 = vmatprep.mubr.bf16.mxu0 0
    %327 = vmatmul.mubr.bf16.gmra.mrb[0].mxu0 %v292
    %v328 = vpop.f32.mrb[0].mxu0
    %v329 = vadd.f32 %v233, %v328
    %v330 = vpop.f32.mrb[0].mxu0
    %v331 = vadd.f32 %v237, %v330
    %v332 = vpop.f32.mrb[0].mxu0
    %v333 = vpop.f32.mrb[0].mxu0
    %334 = vdwg.mxu0
    %335 = vmatprep.subr.bf16.mxu0 %v277
    %336 = vmatpush1.bf16.msra.mxu0 %v276
    %337 = vmatprep.subr.bf16.mxu0 %v281
    %338 = vmatpush1.bf16.msra.mxu0 %v280
    %339 = vmatprep.subr.bf16.mxu0 0
    %340 = vmatpush1.bf16.msra.mxu0 0
    %341 = vmatprep.subr.bf16.mxu0 0
    %342 = vmatpush1.bf16.msra.mxu0 0
    %343 = vmatprep.subr.bf16.mxu0 0
    %344 = vmatpush1.bf16.msra.mxu0 0
    %345 = vmatprep.subr.bf16.mxu0 0
    %346 = vmatpush1.bf16.msra.mxu0 0
    %347 = vmatprep.subr.bf16.mxu0 0
    %348 = vmatpush1.bf16.msra.mxu0 0
    %349 = vmatprep.subr.bf16.mxu0 0
    %350 = vmatpush1.bf16.msra.mxu0 0
    %351 = vmatprep.subr.bf16.mxu0 0
    %352 = vmatpush1.bf16.msra.mxu0 0
    %353 = vmatprep.subr.bf16.mxu0 0
    %354 = vmatpush1.bf16.msra.mxu0 0
    %355 = vmatprep.subr.bf16.mxu0 0
    %356 = vmatpush1.bf16.msra.mxu0 0
    %357 = vmatprep.subr.bf16.mxu0 0
    %358 = vmatpush1.bf16.msra.mxu0 0
    %359 = vmatprep.subr.bf16.mxu0 0
    %360 = vmatpush1.bf16.msra.mxu0 0
    %361 = vmatprep.subr.bf16.mxu0 0
    %362 = vmatpush1.bf16.msra.mxu0 0
    %363 = vmatprep.subr.bf16.mxu0 0
    %364 = vmatpush1.bf16.msra.mxu0 0
    %365 = vmatprep.subr.bf16.mxu0 0
    %366 = vmatpush1.bf16.msra.mxu0 0
    %367 = vmatprep.mubr.bf16.mxu0 0
    %368 = vmatmul.mubr.bf16.gmra.mrb[0].mxu0 %v292
    %v369 = vpop.f32.mrb[0].mxu0
    %v370 = vadd.f32 %v241, %v369
    %v371 = vpop.f32.mrb[0].mxu0
    %v372 = vadd.f32 %v245, %v371
    %v373 = vpop.f32.mrb[0].mxu0
    %v374 = vpop.f32.mrb[0].mxu0
    %375 = vdwg.mxu0
    %v376 = vmax.f32 %v329, 0.0
    %v377 = vmax.f32 %v331, 0.0
    %v378 = vmax.f32 %v370, 0.0
    %v379 = vmax.f32 %v372, 0.0
    %v380 = vpack.c.bf16 %v376, %v376
    %v381 = vpack.c.bf16 %v377, %v377
    %v382 = vpack.c.bf16 %v378, %v378
    %v383 = vpack.c.bf16 %v379, %v379
    %v384 = vld [vmem:[#allocation9] sm:$0xff]
    %v385 = vld [vmem:[#allocation9 + $0x8] sm:$0xff]
    %v386 = vld [vmem:[#allocation9 + $0x10] sm:$0xff]
    %v387 = vld [vmem:[#allocation9 + $0x18] sm:$0xff]
    %v388 = vld [vmem:[#allocation9 + $0x20] sm:$0xff]
    %v389 = vld [vmem:[#allocation9 + $0x28] sm:$0xff]
    %v390 = vld [vmem:[#allocation9 + $0x30] sm:$0xff]
    %v391 = vld [vmem:[#allocation9 + $0x38] sm:$0xff]
    %v392 = vld [vmem:[#allocation9 + $0x40] sm:$0xff]
    %v393 = vld [vmem:[#allocation9 + $0x48] sm:$0xff]
    %v394 = vld [vmem:[#allocation9 + $0x50] sm:$0xff]
    %v395 = vld [vmem:[#allocation9 + $0x58] sm:$0xff]
    %v396 = vld [vmem:[#allocation9 + $0x60] sm:$0xff]
    %v397 = vld [vmem:[#allocation9 + $0x68] sm:$0xff]
    %v398 = vld [vmem:[#allocation9 + $0x70] sm:$0xff]
    %v399 = vld [vmem:[#allocation9 + $0x78] sm:$0xff]
    %v400 = vld [vmem:[#allocation9 + $0x80] sm:$0xff]
    %v401 = vld [vmem:[#allocation9 + $0x88] sm:$0xff]
    %v402 = vld [vmem:[#allocation9 + $0x90] sm:$0xff]
    %v403 = vld [vmem:[#allocation9 + $0x98] sm:$0xff]
    %v404 = vld [vmem:[#allocation9 + $0xa0] sm:$0xff]
    %v405 = vld [vmem:[#allocation9 + $0xa8] sm:$0xff]
    %v406 = vld [vmem:[#allocation9 + $0xb0] sm:$0xff]
    %v407 = vld [vmem:[#allocation9 + $0xb8] sm:$0xff]
    %v408 = vld [vmem:[#allocation9 + $0xc0] sm:$0xff]
    %v409 = vld [vmem:[#allocation9 + $0xc8] sm:$0xff]
    %v410 = vld [vmem:[#allocation9 + $0xd0] sm:$0xff]
    %v411 = vld [vmem:[#allocation9 + $0xd8] sm:$0xff]
    %v412 = vld [vmem:[#allocation9 + $0xe0] sm:$0xff]
    %v413 = vld [vmem:[#allocation9 + $0xe8] sm:$0xff]
    %v414 = vld [vmem:[#allocation9 + $0xf0] sm:$0xff]
    %v415 = vld [vmem:[#allocation9 + $0xf8] sm:$0xff]
    %v416 = vld [vmem:[#allocation9 + $0x100] sm:$0xff]
    %v417 = vld [vmem:[#allocation9 + $0x108] sm:$0xff]
    %v418 = vld [vmem:[#allocation9 + $0x110] sm:$0xff]
    %v419 = vld [vmem:[#allocation9 + $0x118] sm:$0xff]
    %v420 = vld [vmem:[#allocation9 + $0x120] sm:$0xff]
    %v421 = vld [vmem:[#allocation9 + $0x128] sm:$0xff]
    %v422 = vld [vmem:[#allocation9 + $0x130] sm:$0xff]
    %v423 = vld [vmem:[#allocation9 + $0x138] sm:$0xff]
    %v424 = vld [vmem:[#allocation9 + $0x140] sm:$0xff]
    %v425 = vld [vmem:[#allocation9 + $0x148] sm:$0xff]
    %v426 = vld [vmem:[#allocation9 + $0x150] sm:$0xff]
    %v427 = vld [vmem:[#allocation9 + $0x158] sm:$0xff]
    %v428 = vld [vmem:[#allocation9 + $0x160] sm:$0xff]
    %v429 = vld [vmem:[#allocation9 + $0x168] sm:$0xff]
    %v430 = vld [vmem:[#allocation9 + $0x170] sm:$0xff]
    %v431 = vld [vmem:[#allocation9 + $0x178] sm:$0xff]
    %v432 = vld [vmem:[#allocation9 + $0x180] sm:$0xff]
    %v433 = vld [vmem:[#allocation9 + $0x188] sm:$0xff]
    %v434 = vld [vmem:[#allocation9 + $0x190] sm:$0xff]
    %v435 = vld [vmem:[#allocation9 + $0x198] sm:$0xff]
    %v436 = vld [vmem:[#allocation9 + $0x1a0] sm:$0xff]
    %v437 = vld [vmem:[#allocation9 + $0x1a8] sm:$0xff]
    %v438 = vld [vmem:[#allocation9 + $0x1b0] sm:$0xff]
    %v439 = vld [vmem:[#allocation9 + $0x1b8] sm:$0xff]
    %v440 = vld [vmem:[#allocation9 + $0x1c0] sm:$0xff]
    %v441 = vld [vmem:[#allocation9 + $0x1c8] sm:$0xff]
    %v442 = vld [vmem:[#allocation9 + $0x1d0] sm:$0xff]
    %v443 = vld [vmem:[#allocation9 + $0x1d8] sm:$0xff]
    %v444 = vld [vmem:[#allocation9 + $0x1e0] sm:$0xff]
    %v445 = vld [vmem:[#allocation9 + $0x1e8] sm:$0xff]
    %v446 = vld [vmem:[#allocation9 + $0x1f0] sm:$0xff]
    %v447 = vld [vmem:[#allocation9 + $0x1f8] sm:$0xff]
    %v448 = vld [vmem:[#allocation9 + $0x200] sm:$0xff]
    %v449 = vld [vmem:[#allocation9 + $0x208] sm:$0xff]
    %v450 = vld [vmem:[#allocation9 + $0x210] sm:$0xff]
    %v451 = vld [vmem:[#allocation9 + $0x218] sm:$0xff]
    %v452 = vld [vmem:[#allocation9 + $0x220] sm:$0xff]
    %v453 = vld [vmem:[#allocation9 + $0x228] sm:$0xff]
    %v454 = vld [vmem:[#allocation9 + $0x230] sm:$0xff]
    %v455 = vld [vmem:[#allocation9 + $0x238] sm:$0xff]
    %v456 = vld [vmem:[#allocation9 + $0x240] sm:$0xff]
    %v457 = vld [vmem:[#allocation9 + $0x248] sm:$0xff]
    %v458 = vld [vmem:[#allocation9 + $0x250] sm:$0xff]
    %v459 = vld [vmem:[#allocation9 + $0x258] sm:$0xff]
    %v460 = vld [vmem:[#allocation9 + $0x260] sm:$0xff]
    %v461 = vld [vmem:[#allocation9 + $0x268] sm:$0xff]
    %v462 = vld [vmem:[#allocation9 + $0x270] sm:$0xff]
    %v463 = vld [vmem:[#allocation9 + $0x278] sm:$0xff]
    %v464 = vld [vmem:[#allocation9 + $0x280] sm:$0xff]
    %v465 = vld [vmem:[#allocation9 + $0x288] sm:$0xff]
    %v466 = vld [vmem:[#allocation9 + $0x290] sm:$0xff]
    %v467 = vld [vmem:[#allocation9 + $0x298] sm:$0xff]
    %v468 = vld [vmem:[#allocation9 + $0x2a0] sm:$0xff]
    %v469 = vld [vmem:[#allocation9 + $0x2a8] sm:$0xff]
    %v470 = vld [vmem:[#allocation9 + $0x2b0] sm:$0xff]
    %v471 = vld [vmem:[#allocation9 + $0x2b8] sm:$0xff]
    %v472 = vld [vmem:[#allocation9 + $0x2c0] sm:$0xff]
    %v473 = vld [vmem:[#allocation9 + $0x2c8] sm:$0xff]
    %v474 = vld [vmem:[#allocation9 + $0x2d0] sm:$0xff]
    %v475 = vld [vmem:[#allocation9 + $0x2d8] sm:$0xff]
    %v476 = vld [vmem:[#allocation9 + $0x2e0] sm:$0xff]
    %v477 = vld [vmem:[#allocation9 + $0x2e8] sm:$0xff]
    %v478 = vld [vmem:[#allocation9 + $0x2f0] sm:$0xff]
    %v479 = vld [vmem:[#allocation9 + $0x2f8] sm:$0xff]
    %v480 = vld [vmem:[#allocation9 + $0x300] sm:$0xff]
    %v481 = vld [vmem:[#allocation9 + $0x308] sm:$0xff]
    %v482 = vld [vmem:[#allocation9 + $0x310] sm:$0xff]
    %v483 = vld [vmem:[#allocation9 + $0x318] sm:$0xff]
    %v484 = vld [vmem:[#allocation9 + $0x320] sm:$0xff]
    %v485 = vld [vmem:[#allocation9 + $0x328] sm:$0xff]
    %v486 = vld [vmem:[#allocation9 + $0x330] sm:$0xff]
    %v487 = vld [vmem:[#allocation9 + $0x338] sm:$0xff]
    %v488 = vld [vmem:[#allocation9 + $0x340] sm:$0xff]
    %v489 = vld [vmem:[#allocation9 + $0x348] sm:$0xff]
    %v490 = vld [vmem:[#allocation9 + $0x350] sm:$0xff]
    %v491 = vld [vmem:[#allocation9 + $0x358] sm:$0xff]
    %v492 = vld [vmem:[#allocation9 + $0x360] sm:$0xff]
    %v493 = vld [vmem:[#allocation9 + $0x368] sm:$0xff]
    %v494 = vld [vmem:[#allocation9 + $0x370] sm:$0xff]
    %v495 = vld [vmem:[#allocation9 + $0x378] sm:$0xff]
    %v496 = vld [vmem:[#allocation9 + $0x380] sm:$0xff]
    %v497 = vld [vmem:[#allocation9 + $0x388] sm:$0xff]
    %v498 = vld [vmem:[#allocation9 + $0x390] sm:$0xff]
    %v499 = vld [vmem:[#allocation9 + $0x398] sm:$0xff]
    %v500 = vld [vmem:[#allocation9 + $0x3a0] sm:$0xff]
    %v501 = vld [vmem:[#allocation9 + $0x3a8] sm:$0xff]
    %v502 = vld [vmem:[#allocation9 + $0x3b0] sm:$0xff]
    %v503 = vld [vmem:[#allocation9 + $0x3b8] sm:$0xff]
    %v504 = vld [vmem:[#allocation9 + $0x3c0] sm:$0xff]
    %v505 = vld [vmem:[#allocation9 + $0x3c8] sm:$0xff]
    %v506 = vld [vmem:[#allocation9 + $0x3d0] sm:$0xff]
    %v507 = vld [vmem:[#allocation9 + $0x3d8] sm:$0xff]
    %v508 = vld [vmem:[#allocation9 + $0x3e0] sm:$0xff]
    %v509 = vld [vmem:[#allocation9 + $0x3e8] sm:$0xff]
    %v510 = vld [vmem:[#allocation9 + $0x3f0] sm:$0xff]
    %v511 = vld [vmem:[#allocation9 + $0x3f8] sm:$0xff]
    %v512 = vld [vmem:[#allocation10] sm:$0xf]
    %v514 = vlaneseq
    %v515 = vshrl.u32 %v514, 7
    %v516 = vsub.s32 0, %v515
    %v517 = vrot.slane %v512, %v516
    %v518 = vlaneseq
    %v519 = vshrl.u32 %v518, 7
    %v520 = vsub.s32 1, %v519
    %v521 = vrot.slane %v512, %v520
    %v522 = vlaneseq
    %v523 = vshrl.u32 %v522, 7
    %v524 = vsub.s32 2, %v523
    %v525 = vrot.slane %v512, %v524
    %v526 = vlaneseq
    %v527 = vshrl.u32 %v526, 7
    %v528 = vsub.s32 3, %v527
    %v529 = vrot.slane %v512, %v528
    %v662 = vunpack.c.l.b16 %v384
    %v663 = vunpack.c.h.b16 %v384
    %v664 = vunpack.c.l.b16 %v385
    %v665 = vunpack.c.h.b16 %v385
    %v666 = vunpack.c.l.b16 %v386
    %v667 = vunpack.c.h.b16 %v386
    %v668 = vunpack.c.l.b16 %v387
    %v669 = vunpack.c.h.b16 %v387
    %v670 = vunpack.c.l.b16 %v388
    %v671 = vunpack.c.h.b16 %v388
    %v672 = vunpack.c.l.b16 %v389
    %v673 = vunpack.c.h.b16 %v389
    %v674 = vunpack.c.l.b16 %v390
    %v675 = vunpack.c.h.b16 %v390
    %v676 = vunpack.c.l.b16 %v391
    %v677 = vunpack.c.h.b16 %v391
    %v678 = vunpack.c.l.b16 %v392
    %v679 = vunpack.c.h.b16 %v392
    %v680 = vunpack.c.l.b16 %v393
    %v681 = vunpack.c.h.b16 %v393
    %v682 = vunpack.c.l.b16 %v394
    %v683 = vunpack.c.h.b16 %v394
    %v684 = vunpack.c.l.b16 %v395
    %v685 = vunpack.c.h.b16 %v395
    %v686 = vunpack.c.l.b16 %v396
    %v687 = vunpack.c.h.b16 %v396
    %v688 = vunpack.c.l.b16 %v397
    %v689 = vunpack.c.h.b16 %v397
    %v690 = vunpack.c.l.b16 %v398
    %v691 = vunpack.c.h.b16 %v398
    %v692 = vunpack.c.l.b16 %v399
    %v693 = vunpack.c.h.b16 %v399
    %v694 = vunpack.c.l.b16 %v400
    %v695 = vunpack.c.h.b16 %v400
    %v696 = vunpack.c.l.b16 %v401
    %v697 = vunpack.c.h.b16 %v401
    %v698 = vunpack.c.l.b16 %v402
    %v699 = vunpack.c.h.b16 %v402
    %v700 = vunpack.c.l.b16 %v403
    %v701 = vunpack.c.h.b16 %v403
    %v702 = vunpack.c.l.b16 %v404
    %v703 = vunpack.c.h.b16 %v404
    %v704 = vunpack.c.l.b16 %v405
    %v705 = vunpack.c.h.b16 %v405
    %v706 = vunpack.c.l.b16 %v406
    %v707 = vunpack.c.h.b16 %v406
    %v708 = vunpack.c.l.b16 %v407
    %v709 = vunpack.c.h.b16 %v407
    %v710 = vunpack.c.l.b16 %v408
    %v711 = vunpack.c.h.b16 %v408
    %v712 = vunpack.c.l.b16 %v409
    %v713 = vunpack.c.h.b16 %v409
    %v714 = vunpack.c.l.b16 %v410
    %v715 = vunpack.c.h.b16 %v410
    %v716 = vunpack.c.l.b16 %v411
    %v717 = vunpack.c.h.b16 %v411
    %v718 = vunpack.c.l.b16 %v412
    %v719 = vunpack.c.h.b16 %v412
    %v720 = vunpack.c.l.b16 %v413
    %v721 = vunpack.c.h.b16 %v413
    %v722 = vunpack.c.l.b16 %v414
    %v723 = vunpack.c.h.b16 %v414
    %v724 = vunpack.c.l.b16 %v415
    %v725 = vunpack.c.h.b16 %v415
    %v726 = vunpack.c.l.b16 %v416
    %v727 = vunpack.c.h.b16 %v416
    %v728 = vunpack.c.l.b16 %v417
    %v729 = vunpack.c.h.b16 %v417
    %v730 = vunpack.c.l.b16 %v418
    %v731 = vunpack.c.h.b16 %v418
    %v732 = vunpack.c.l.b16 %v419
    %v733 = vunpack.c.h.b16 %v419
    %v734 = vunpack.c.l.b16 %v420
    %v735 = vunpack.c.h.b16 %v420
    %v736 = vunpack.c.l.b16 %v421
    %v737 = vunpack.c.h.b16 %v421
    %v738 = vunpack.c.l.b16 %v422
    %v739 = vunpack.c.h.b16 %v422
    %v740 = vunpack.c.l.b16 %v423
    %v741 = vunpack.c.h.b16 %v423
    %v742 = vunpack.c.l.b16 %v424
    %v743 = vunpack.c.h.b16 %v424
    %v744 = vunpack.c.l.b16 %v425
    %v745 = vunpack.c.h.b16 %v425
    %v746 = vunpack.c.l.b16 %v426
    %v747 = vunpack.c.h.b16 %v426
    %v748 = vunpack.c.l.b16 %v427
    %v749 = vunpack.c.h.b16 %v427
    %v750 = vunpack.c.l.b16 %v428
    %v751 = vunpack.c.h.b16 %v428
    %v752 = vunpack.c.l.b16 %v429
    %v753 = vunpack.c.h.b16 %v429
    %v754 = vunpack.c.l.b16 %v430
    %v755 = vunpack.c.h.b16 %v430
    %v756 = vunpack.c.l.b16 %v431
    %v757 = vunpack.c.h.b16 %v431
    %v758 = vunpack.c.l.b16 %v432
    %v759 = vunpack.c.h.b16 %v432
    %v760 = vunpack.c.l.b16 %v433
    %v761 = vunpack.c.h.b16 %v433
    %v762 = vunpack.c.l.b16 %v434
    %v763 = vunpack.c.h.b16 %v434
    %v764 = vunpack.c.l.b16 %v435
    %v765 = vunpack.c.h.b16 %v435
    %v766 = vunpack.c.l.b16 %v436
    %v767 = vunpack.c.h.b16 %v436
    %v768 = vunpack.c.l.b16 %v437
    %v769 = vunpack.c.h.b16 %v437
    %v770 = vunpack.c.l.b16 %v438
    %v771 = vunpack.c.h.b16 %v438
    %v772 = vunpack.c.l.b16 %v439
    %v773 = vunpack.c.h.b16 %v439
    %v774 = vunpack.c.l.b16 %v440
    %v775 = vunpack.c.h.b16 %v440
    %v776 = vunpack.c.l.b16 %v441
    %v777 = vunpack.c.h.b16 %v441
    %v778 = vunpack.c.l.b16 %v442
    %v779 = vunpack.c.h.b16 %v442
    %v780 = vunpack.c.l.b16 %v443
    %v781 = vunpack.c.h.b16 %v443
    %v782 = vunpack.c.l.b16 %v444
    %v783 = vunpack.c.h.b16 %v444
    %v784 = vunpack.c.l.b16 %v445
    %v785 = vunpack.c.h.b16 %v445
    %v786 = vunpack.c.l.b16 %v446
    %v787 = vunpack.c.h.b16 %v446
    %v788 = vunpack.c.l.b16 %v447
    %v789 = vunpack.c.h.b16 %v447
    %v790 = vunpack.c.l.b16 %v448
    %v791 = vunpack.c.h.b16 %v448
    %v792 = vunpack.c.l.b16 %v449
    %v793 = vunpack.c.h.b16 %v449
    %v794 = vunpack.c.l.b16 %v450
    %v795 = vunpack.c.h.b16 %v450
    %v796 = vunpack.c.l.b16 %v451
    %v797 = vunpack.c.h.b16 %v451
    %v798 = vunpack.c.l.b16 %v452
    %v799 = vunpack.c.h.b16 %v452
    %v800 = vunpack.c.l.b16 %v453
    %v801 = vunpack.c.h.b16 %v453
    %v802 = vunpack.c.l.b16 %v454
    %v803 = vunpack.c.h.b16 %v454
    %v804 = vunpack.c.l.b16 %v455
    %v805 = vunpack.c.h.b16 %v455
    %v806 = vunpack.c.l.b16 %v456
    %v807 = vunpack.c.h.b16 %v456
    %v808 = vunpack.c.l.b16 %v457
    %v809 = vunpack.c.h.b16 %v457
    %v810 = vunpack.c.l.b16 %v458
    %v811 = vunpack.c.h.b16 %v458
    %v812 = vunpack.c.l.b16 %v459
    %v813 = vunpack.c.h.b16 %v459
    %v814 = vunpack.c.l.b16 %v460
    %v815 = vunpack.c.h.b16 %v460
    %v816 = vunpack.c.l.b16 %v461
    %v817 = vunpack.c.h.b16 %v461
    %v818 = vunpack.c.l.b16 %v462
    %v819 = vunpack.c.h.b16 %v462
    %v820 = vunpack.c.l.b16 %v463
    %v821 = vunpack.c.h.b16 %v463
    %v822 = vunpack.c.l.b16 %v464
    %v823 = vunpack.c.h.b16 %v464
    %v824 = vunpack.c.l.b16 %v465
    %v825 = vunpack.c.h.b16 %v465
    %v826 = vunpack.c.l.b16 %v466
    %v827 = vunpack.c.h.b16 %v466
    %v828 = vunpack.c.l.b16 %v467
    %v829 = vunpack.c.h.b16 %v467
    %v830 = vunpack.c.l.b16 %v468
    %v831 = vunpack.c.h.b16 %v468
    %v832 = vunpack.c.l.b16 %v469
    %v833 = vunpack.c.h.b16 %v469
    %v834 = vunpack.c.l.b16 %v470
    %v835 = vunpack.c.h.b16 %v470
    %v836 = vunpack.c.l.b16 %v471
    %v837 = vunpack.c.h.b16 %v471
    %v838 = vunpack.c.l.b16 %v472
    %v839 = vunpack.c.h.b16 %v472
    %v840 = vunpack.c.l.b16 %v473
    %v841 = vunpack.c.h.b16 %v473
    %v842 = vunpack.c.l.b16 %v474
    %v843 = vunpack.c.h.b16 %v474
    %v844 = vunpack.c.l.b16 %v475
    %v845 = vunpack.c.h.b16 %v475
    %v846 = vunpack.c.l.b16 %v476
    %v847 = vunpack.c.h.b16 %v476
    %v848 = vunpack.c.l.b16 %v477
    %v849 = vunpack.c.h.b16 %v477
    %v850 = vunpack.c.l.b16 %v478
    %v851 = vunpack.c.h.b16 %v478
    %v852 = vunpack.c.l.b16 %v479
    %v853 = vunpack.c.h.b16 %v479
    %v854 = vunpack.c.l.b16 %v480
    %v855 = vunpack.c.h.b16 %v480
    %v856 = vunpack.c.l.b16 %v481
    %v857 = vunpack.c.h.b16 %v481
    %v858 = vunpack.c.l.b16 %v482
    %v859 = vunpack.c.h.b16 %v482
    %v860 = vunpack.c.l.b16 %v483
    %v861 = vunpack.c.h.b16 %v483
    %v862 = vunpack.c.l.b16 %v484
    %v863 = vunpack.c.h.b16 %v484
    %v864 = vunpack.c.l.b16 %v485
    %v865 = vunpack.c.h.b16 %v485
    %v866 = vunpack.c.l.b16 %v486
    %v867 = vunpack.c.h.b16 %v486
    %v868 = vunpack.c.l.b16 %v487
    %v869 = vunpack.c.h.b16 %v487
    %v870 = vunpack.c.l.b16 %v488
    %v871 = vunpack.c.h.b16 %v488
    %v872 = vunpack.c.l.b16 %v489
    %v873 = vunpack.c.h.b16 %v489
    %v874 = vunpack.c.l.b16 %v490
    %v875 = vunpack.c.h.b16 %v490
    %v876 = vunpack.c.l.b16 %v491
    %v877 = vunpack.c.h.b16 %v491
    %v878 = vunpack.c.l.b16 %v492
    %v879 = vunpack.c.h.b16 %v492
    %v880 = vunpack.c.l.b16 %v493
    %v881 = vunpack.c.h.b16 %v493
    %v882 = vunpack.c.l.b16 %v494
    %v883 = vunpack.c.h.b16 %v494
    %v884 = vunpack.c.l.b16 %v495
    %v885 = vunpack.c.h.b16 %v495
    %v886 = vunpack.c.l.b16 %v496
    %v887 = vunpack.c.h.b16 %v496
    %v888 = vunpack.c.l.b16 %v497
    %v889 = vunpack.c.h.b16 %v497
    %v890 = vunpack.c.l.b16 %v498
    %v891 = vunpack.c.h.b16 %v498
    %v892 = vunpack.c.l.b16 %v499
    %v893 = vunpack.c.h.b16 %v499
    %v894 = vunpack.c.l.b16 %v500
    %v895 = vunpack.c.h.b16 %v500
    %v896 = vunpack.c.l.b16 %v501
    %v897 = vunpack.c.h.b16 %v501
    %v898 = vunpack.c.l.b16 %v502
    %v899 = vunpack.c.h.b16 %v502
    %v900 = vunpack.c.l.b16 %v503
    %v901 = vunpack.c.h.b16 %v503
    %v902 = vunpack.c.l.b16 %v504
    %v903 = vunpack.c.h.b16 %v504
    %v904 = vunpack.c.l.b16 %v505
    %v905 = vunpack.c.h.b16 %v505
    %v906 = vunpack.c.l.b16 %v506
    %v907 = vunpack.c.h.b16 %v506
    %v908 = vunpack.c.l.b16 %v507
    %v909 = vunpack.c.h.b16 %v507
    %v910 = vunpack.c.l.b16 %v508
    %v911 = vunpack.c.h.b16 %v508
    %v912 = vunpack.c.l.b16 %v509
    %v913 = vunpack.c.h.b16 %v509
    %v914 = vunpack.c.l.b16 %v510
    %v915 = vunpack.c.h.b16 %v510
    %v916 = vunpack.c.l.b16 %v511
    %v917 = vunpack.c.h.b16 %v511
    %v918 = vpack.c.b16 %v666, %v662
    %v919 = vpack.c.b16 %v667, %v663
    %v920 = vpack.c.b16 %v668, %v664
    %v921 = vpack.c.b16 %v669, %v665
    %v922 = vpack.c.b16 %v674, %v670
    %v923 = vpack.c.b16 %v675, %v671
    %v924 = vpack.c.b16 %v676, %v672
    %v925 = vpack.c.b16 %v677, %v673
    %v926 = vpack.c.b16 %v682, %v678
    %v927 = vpack.c.b16 %v683, %v679
    %v928 = vpack.c.b16 %v684, %v680
    %v929 = vpack.c.b16 %v685, %v681
    %v930 = vpack.c.b16 %v690, %v686
    %v931 = vpack.c.b16 %v691, %v687
    %v932 = vpack.c.b16 %v692, %v688
    %v933 = vpack.c.b16 %v693, %v689
    %v934 = vpack.c.b16 %v698, %v694
    %v935 = vpack.c.b16 %v699, %v695
    %v936 = vpack.c.b16 %v700, %v696
    %v937 = vpack.c.b16 %v701, %v697
    %v938 = vpack.c.b16 %v706, %v702
    %v939 = vpack.c.b16 %v707, %v703
    %v940 = vpack.c.b16 %v708, %v704
    %v941 = vpack.c.b16 %v709, %v705
    %v942 = vpack.c.b16 %v714, %v710
    %v943 = vpack.c.b16 %v715, %v711
    %v944 = vpack.c.b16 %v716, %v712
    %v945 = vpack.c.b16 %v717, %v713
    %v946 = vpack.c.b16 %v722, %v718
    %v947 = vpack.c.b16 %v723, %v719
    %v948 = vpack.c.b16 %v724, %v720
    %v949 = vpack.c.b16 %v725, %v721
    %v950 = vpack.c.b16 %v730, %v726
    %v951 = vpack.c.b16 %v731, %v727
    %v952 = vpack.c.b16 %v732, %v728
    %v953 = vpack.c.b16 %v733, %v729
    %v954 = vpack.c.b16 %v738, %v734
    %v955 = vpack.c.b16 %v739, %v735
    %v956 = vpack.c.b16 %v740, %v736
    %v957 = vpack.c.b16 %v741, %v737
    %v958 = vpack.c.b16 %v746, %v742
    %v959 = vpack.c.b16 %v747, %v743
    %v960 = vpack.c.b16 %v748, %v744
    %v961 = vpack.c.b16 %v749, %v745
    %v962 = vpack.c.b16 %v754, %v750
    %v963 = vpack.c.b16 %v755, %v751
    %v964 = vpack.c.b16 %v756, %v752
    %v965 = vpack.c.b16 %v757, %v753
    %v966 = vpack.c.b16 %v762, %v758
    %v967 = vpack.c.b16 %v763, %v759
    %v968 = vpack.c.b16 %v764, %v760
    %v969 = vpack.c.b16 %v765, %v761
    %v970 = vpack.c.b16 %v770, %v766
    %v971 = vpack.c.b16 %v771, %v767
    %v972 = vpack.c.b16 %v772, %v768
    %v973 = vpack.c.b16 %v773, %v769
    %v974 = vpack.c.b16 %v778, %v774
    %v975 = vpack.c.b16 %v779, %v775
    %v976 = vpack.c.b16 %v780, %v776
    %v977 = vpack.c.b16 %v781, %v777
    %v978 = vpack.c.b16 %v786, %v782
    %v979 = vpack.c.b16 %v787, %v783
    %v980 = vpack.c.b16 %v788, %v784
    %v981 = vpack.c.b16 %v789, %v785
    %v982 = vpack.c.b16 %v794, %v790
    %v983 = vpack.c.b16 %v795, %v791
    %v984 = vpack.c.b16 %v796, %v792
    %v985 = vpack.c.b16 %v797, %v793
    %v986 = vpack.c.b16 %v802, %v798
    %v987 = vpack.c.b16 %v803, %v799
    %v988 = vpack.c.b16 %v804, %v800
    %v989 = vpack.c.b16 %v805, %v801
    %v990 = vpack.c.b16 %v810, %v806
    %v991 = vpack.c.b16 %v811, %v807
    %v992 = vpack.c.b16 %v812, %v808
    %v993 = vpack.c.b16 %v813, %v809
    %v994 = vpack.c.b16 %v818, %v814
    %v995 = vpack.c.b16 %v819, %v815
    %v996 = vpack.c.b16 %v820, %v816
    %v997 = vpack.c.b16 %v821, %v817
    %v998 = vpack.c.b16 %v826, %v822
    %v999 = vpack.c.b16 %v827, %v823
    %v1000 = vpack.c.b16 %v828, %v824
    %v1001 = vpack.c.b16 %v829, %v825
    %v1002 = vpack.c.b16 %v834, %v830
    %v1003 = vpack.c.b16 %v835, %v831
    %v1004 = vpack.c.b16 %v836, %v832
    %v1005 = vpack.c.b16 %v837, %v833
    %v1006 = vpack.c.b16 %v842, %v838
    %v1007 = vpack.c.b16 %v843, %v839
    %v1008 = vpack.c.b16 %v844, %v840
    %v1009 = vpack.c.b16 %v845, %v841
    %v1010 = vpack.c.b16 %v850, %v846
    %v1011 = vpack.c.b16 %v851, %v847
    %v1012 = vpack.c.b16 %v852, %v848
    %v1013 = vpack.c.b16 %v853, %v849
    %v1014 = vpack.c.b16 %v858, %v854
    %v1015 = vpack.c.b16 %v859, %v855
    %v1016 = vpack.c.b16 %v860, %v856
    %v1017 = vpack.c.b16 %v861, %v857
    %v1018 = vpack.c.b16 %v866, %v862
    %v1019 = vpack.c.b16 %v867, %v863
    %v1020 = vpack.c.b16 %v868, %v864
    %v1021 = vpack.c.b16 %v869, %v865
    %v1022 = vpack.c.b16 %v874, %v870
    %v1023 = vpack.c.b16 %v875, %v871
    %v1024 = vpack.c.b16 %v876, %v872
    %v1025 = vpack.c.b16 %v877, %v873
    %v1026 = vpack.c.b16 %v882, %v878
    %v1027 = vpack.c.b16 %v883, %v879
    %v1028 = vpack.c.b16 %v884, %v880
    %v1029 = vpack.c.b16 %v885, %v881
    %v1030 = vpack.c.b16 %v890, %v886
    %v1031 = vpack.c.b16 %v891, %v887
    %v1032 = vpack.c.b16 %v892, %v888
    %v1033 = vpack.c.b16 %v893, %v889
    %v1034 = vpack.c.b16 %v898, %v894
    %v1035 = vpack.c.b16 %v899, %v895
    %v1036 = vpack.c.b16 %v900, %v896
    %v1037 = vpack.c.b16 %v901, %v897
    %v1038 = vpack.c.b16 %v906, %v902
    %v1039 = vpack.c.b16 %v907, %v903
    %v1040 = vpack.c.b16 %v908, %v904
    %v1041 = vpack.c.b16 %v909, %v905
    %v1042 = vpack.c.b16 %v914, %v910
    %v1043 = vpack.c.b16 %v915, %v911
    %v1044 = vpack.c.b16 %v916, %v912
    %v1045 = vpack.c.b16 %v917, %v913
    %1174 = vmatprep.subr.bf16.mxu0 %v919
    %1175 = vmatpush1.bf16.msra.mxu0 %v918
    %1176 = vmatprep.subr.bf16.mxu0 %v923
    %1177 = vmatpush1.bf16.msra.mxu0 %v922
    %1178 = vmatprep.subr.bf16.mxu0 %v927
    %1179 = vmatpush1.bf16.msra.mxu0 %v926
    %1180 = vmatprep.subr.bf16.mxu0 %v931
    %1181 = vmatpush1.bf16.msra.mxu0 %v930
    %1182 = vmatprep.subr.bf16.mxu0 %v935
    %1183 = vmatpush1.bf16.msra.mxu0 %v934
    %1184 = vmatprep.subr.bf16.mxu0 %v939
    %1185 = vmatpush1.bf16.msra.mxu0 %v938
    %1186 = vmatprep.subr.bf16.mxu0 %v943
    %1187 = vmatpush1.bf16.msra.mxu0 %v942
    %1188 = vmatprep.subr.bf16.mxu0 %v947
    %1189 = vmatpush1.bf16.msra.mxu0 %v946
    %1190 = vmatprep.subr.bf16.mxu0 %v951
    %1191 = vmatpush1.bf16.msra.mxu0 %v950
    %1192 = vmatprep.subr.bf16.mxu0 %v955
    %1193 = vmatpush1.bf16.msra.mxu0 %v954
    %1194 = vmatprep.subr.bf16.mxu0 %v959
    %1195 = vmatpush1.bf16.msra.mxu0 %v958
    %1196 = vmatprep.subr.bf16.mxu0 %v963
    %1197 = vmatpush1.bf16.msra.mxu0 %v962
    %1198 = vmatprep.subr.bf16.mxu0 %v967
    %1199 = vmatpush1.bf16.msra.mxu0 %v966
    %1200 = vmatprep.subr.bf16.mxu0 %v971
    %1201 = vmatpush1.bf16.msra.mxu0 %v970
    %1202 = vmatprep.subr.bf16.mxu0 %v975
    %1203 = vmatpush1.bf16.msra.mxu0 %v974
    %1204 = vmatprep.subr.bf16.mxu0 %v979
    %1205 = vmatpush1.bf16.msra.mxu0 %v978
    %1206 = vmatprep.mubr.bf16.mxu0 %v381
    %1207 = vmatmul.mubr.bf16.gmra.mrb[0].mxu0 %v380
    %v1208 = vpop.f32.mrb[0].mxu0
    %v1209 = vadd.f32 %v517, %v1208
    %v1210 = vpop.f32.mrb[0].mxu0
    %v1211 = vadd.f32 %v521, %v1210
    %v1212 = vpop.f32.mrb[0].mxu0
    %v1213 = vpop.f32.mrb[0].mxu0
    %1214 = vdwg.mxu0
    %1215 = vmatprep.subr.bf16.mxu0 %v983
    %1216 = vmatpush1.bf16.msra.mxu0 %v982
    %1217 = vmatprep.subr.bf16.mxu0 %v987
    %1218 = vmatpush1.bf16.msra.mxu0 %v986
    %1219 = vmatprep.subr.bf16.mxu0 %v991
    %1220 = vmatpush1.bf16.msra.mxu0 %v990
    %1221 = vmatprep.subr.bf16.mxu0 %v995
    %1222 = vmatpush1.bf16.msra.mxu0 %v994
    %1223 = vmatprep.subr.bf16.mxu0 %v999
    %1224 = vmatpush1.bf16.msra.mxu0 %v998
    %1225 = vmatprep.subr.bf16.mxu0 %v1003
    %1226 = vmatpush1.bf16.msra.mxu0 %v1002
    %1227 = vmatprep.subr.bf16.mxu0 %v1007
    %1228 = vmatpush1.bf16.msra.mxu0 %v1006
    %1229 = vmatprep.subr.bf16.mxu0 %v1011
    %1230 = vmatpush1.bf16.msra.mxu0 %v1010
    %1231 = vmatprep.subr.bf16.mxu0 %v1015
    %1232 = vmatpush1.bf16.msra.mxu0 %v1014
    %1233 = vmatprep.subr.bf16.mxu0 %v1019
    %1234 = vmatpush1.bf16.msra.mxu0 %v1018
    %1235 = vmatprep.subr.bf16.mxu0 %v1023
    %1236 = vmatpush1.bf16.msra.mxu0 %v1022
    %1237 = vmatprep.subr.bf16.mxu0 %v1027
    %1238 = vmatpush1.bf16.msra.mxu0 %v1026
    %1239 = vmatprep.subr.bf16.mxu0 %v1031
    %1240 = vmatpush1.bf16.msra.mxu0 %v1030
    %1241 = vmatprep.subr.bf16.mxu0 %v1035
    %1242 = vmatpush1.bf16.msra.mxu0 %v1034
    %1243 = vmatprep.subr.bf16.mxu0 %v1039
    %1244 = vmatpush1.bf16.msra.mxu0 %v1038
    %1245 = vmatprep.subr.bf16.mxu0 %v1043
    %1246 = vmatpush1.bf16.msra.mxu0 %v1042
    %1247 = vmatprep.mubr.bf16.mxu0 %v383
    %1248 = vmatmul.mubr.bf16.gmra.mrb[0].mxu0 %v382
    %v1249 = vpop.f32.mrb[0].mxu0
    %v1250 = vadd.f32 %v1209, %v1249
    %v1251 = vpop.f32.mrb[0].mxu0
    %v1252 = vadd.f32 %v1211, %v1251
    %v1253 = vpop.f32.mrb[0].mxu0
    %v1254 = vpop.f32.mrb[0].mxu0
    %1255 = vdwg.mxu0
    %1256 = vmatprep.subr.bf16.mxu0 %v921
    %1257 = vmatpush1.bf16.msra.mxu0 %v920
    %1258 = vmatprep.subr.bf16.mxu0 %v925
    %1259 = vmatpush1.bf16.msra.mxu0 %v924
    %1260 = vmatprep.subr.bf16.mxu0 %v929
    %1261 = vmatpush1.bf16.msra.mxu0 %v928
    %1262 = vmatprep.subr.bf16.mxu0 %v933
    %1263 = vmatpush1.bf16.msra.mxu0 %v932
    %1264 = vmatprep.subr.bf16.mxu0 %v937
    %1265 = vmatpush1.bf16.msra.mxu0 %v936
    %1266 = vmatprep.subr.bf16.mxu0 %v941
    %1267 = vmatpush1.bf16.msra.mxu0 %v940
    %1268 = vmatprep.subr.bf16.mxu0 %v945
    %1269 = vmatpush1.bf16.msra.mxu0 %v944
    %1270 = vmatprep.subr.bf16.mxu0 %v949
    %1271 = vmatpush1.bf16.msra.mxu0 %v948
    %1272 = vmatprep.subr.bf16.mxu0 %v953
    %1273 = vmatpush1.bf16.msra.mxu0 %v952
    %1274 = vmatprep.subr.bf16.mxu0 %v957
    %1275 = vmatpush1.bf16.msra.mxu0 %v956
    %1276 = vmatprep.subr.bf16.mxu0 %v961
    %1277 = vmatpush1.bf16.msra.mxu0 %v960
    %1278 = vmatprep.subr.bf16.mxu0 %v965
    %1279 = vmatpush1.bf16.msra.mxu0 %v964
    %1280 = vmatprep.subr.bf16.mxu0 %v969
    %1281 = vmatpush1.bf16.msra.mxu0 %v968
    %1282 = vmatprep.subr.bf16.mxu0 %v973
    %1283 = vmatpush1.bf16.msra.mxu0 %v972
    %1284 = vmatprep.subr.bf16.mxu0 %v977
    %1285 = vmatpush1.bf16.msra.mxu0 %v976
    %1286 = vmatprep.subr.bf16.mxu0 %v981
    %1287 = vmatpush1.bf16.msra.mxu0 %v980
    %1288 = vmatprep.mubr.bf16.mxu0 %v381
    %1289 = vmatmul.mubr.bf16.gmra.mrb[0].mxu0 %v380
    %v1290 = vpop.f32.mrb[0].mxu0
    %v1291 = vadd.f32 %v525, %v1290
    %v1292 = vpop.f32.mrb[0].mxu0
    %v1293 = vadd.f32 %v529, %v1292
    %v1294 = vpop.f32.mrb[0].mxu0
    %v1295 = vpop.f32.mrb[0].mxu0
    %1296 = vdwg.mxu0
    %1297 = vmatprep.subr.bf16.mxu0 %v985
    %1298 = vmatpush1.bf16.msra.mxu0 %v984
    %1299 = vmatprep.subr.bf16.mxu0 %v989
    %1300 = vmatpush1.bf16.msra.mxu0 %v988
    %1301 = vmatprep.subr.bf16.mxu0 %v993
    %1302 = vmatpush1.bf16.msra.mxu0 %v992
    %1303 = vmatprep.subr.bf16.mxu0 %v997
    %1304 = vmatpush1.bf16.msra.mxu0 %v996
    %1305 = vmatprep.subr.bf16.mxu0 %v1001
    %1306 = vmatpush1.bf16.msra.mxu0 %v1000
    %1307 = vmatprep.subr.bf16.mxu0 %v1005
    %1308 = vmatpush1.bf16.msra.mxu0 %v1004
    %1309 = vmatprep.subr.bf16.mxu0 %v1009
    %1310 = vmatpush1.bf16.msra.mxu0 %v1008
    %1311 = vmatprep.subr.bf16.mxu0 %v1013
    %1312 = vmatpush1.bf16.msra.mxu0 %v1012
    %1313 = vmatprep.subr.bf16.mxu0 %v1017
    %1314 = vmatpush1.bf16.msra.mxu0 %v1016
    %1315 = vmatprep.subr.bf16.mxu0 %v1021
    %1316 = vmatpush1.bf16.msra.mxu0 %v1020
    %1317 = vmatprep.subr.bf16.mxu0 %v1025
    %1318 = vmatpush1.bf16.msra.mxu0 %v1024
    %1319 = vmatprep.subr.bf16.mxu0 %v1029
    %1320 = vmatpush1.bf16.msra.mxu0 %v1028
    %1321 = vmatprep.subr.bf16.mxu0 %v1033
    %1322 = vmatpush1.bf16.msra.mxu0 %v1032
    %1323 = vmatprep.subr.bf16.mxu0 %v1037
    %1324 = vmatpush1.bf16.msra.mxu0 %v1036
    %1325 = vmatprep.subr.bf16.mxu0 %v1041
    %1326 = vmatpush1.bf16.msra.mxu0 %v1040
    %1327 = vmatprep.subr.bf16.mxu0 %v1045
    %1328 = vmatpush1.bf16.msra.mxu0 %v1044
    %1329 = vmatprep.mubr.bf16.mxu0 %v383
    %1330 = vmatmul.mubr.bf16.gmra.mrb[0].mxu0 %v382
    %v1331 = vpop.f32.mrb[0].mxu0
    %v1332 = vadd.f32 %v1291, %v1331
    %v1333 = vpop.f32.mrb[0].mxu0
    %v1334 = vadd.f32 %v1293, %v1333
    %v1335 = vpop.f32.mrb[0].mxu0
    %v1336 = vpop.f32.mrb[0].mxu0
    %1337 = vdwg.mxu0
    %v1338 = vmax.f32 %v1250, 0.0
    %v1339 = vmax.f32 %v1252, 0.0
    %v1340 = vmax.f32 %v1332, 0.0
    %v1341 = vmax.f32 %v1334, 0.0
    %v1342 = vpack.c.bf16 %v1338, %v1338
    %v1343 = vpack.c.bf16 %v1339, %v1339
    %v1344 = vpack.c.bf16 %v1340, %v1340
    %v1345 = vpack.c.bf16 %v1341, %v1341
    %v1346 = vld [vmem:[#allocation12] sm:$0xf]
    %v1347 = vld [vmem:[#allocation12 + $0x4] sm:$0xf]
    %v1348 = vld [vmem:[#allocation12 + $0x8] sm:$0xf]
    %v1349 = vld [vmem:[#allocation12 + $0xc] sm:$0xf]
    %v1350 = vld [vmem:[#allocation12 + $0x10] sm:$0xf]
    %v1351 = vld [vmem:[#allocation12 + $0x14] sm:$0xf]
    %v1352 = vld [vmem:[#allocation12 + $0x18] sm:$0xf]
    %v1353 = vld [vmem:[#allocation12 + $0x1c] sm:$0xf]
    %v1354 = vld [vmem:[#allocation12 + $0x20] sm:$0xf]
    %v1355 = vld [vmem:[#allocation12 + $0x24] sm:$0xf]
    %v1356 = vld [vmem:[#allocation12 + $0x28] sm:$0xf]
    %v1357 = vld [vmem:[#allocation12 + $0x2c] sm:$0xf]
    %v1358 = vld [vmem:[#allocation12 + $0x30] sm:$0xf]
    %v1359 = vld [vmem:[#allocation12 + $0x34] sm:$0xf]
    %v1360 = vld [vmem:[#allocation12 + $0x38] sm:$0xf]
    %v1361 = vld [vmem:[#allocation12 + $0x3c] sm:$0xf]
    %v1362 = vld [vmem:[#allocation12 + $0x40] sm:$0xf]
    %v1363 = vld [vmem:[#allocation12 + $0x44] sm:$0xf]
    %v1364 = vld [vmem:[#allocation12 + $0x48] sm:$0xf]
    %v1365 = vld [vmem:[#allocation12 + $0x4c] sm:$0xf]
    %v1366 = vld [vmem:[#allocation12 + $0x50] sm:$0xf]
    %v1367 = vld [vmem:[#allocation12 + $0x54] sm:$0xf]
    %v1368 = vld [vmem:[#allocation12 + $0x58] sm:$0xf]
    %v1369 = vld [vmem:[#allocation12 + $0x5c] sm:$0xf]
    %v1370 = vld [vmem:[#allocation12 + $0x60] sm:$0xf]
    %v1371 = vld [vmem:[#allocation12 + $0x64] sm:$0xf]
    %v1372 = vld [vmem:[#allocation12 + $0x68] sm:$0xf]
    %v1373 = vld [vmem:[#allocation12 + $0x6c] sm:$0xf]
    %v1374 = vld [vmem:[#allocation12 + $0x70] sm:$0xf]
    %v1375 = vld [vmem:[#allocation12 + $0x74] sm:$0xf]
    %v1376 = vld [vmem:[#allocation12 + $0x78] sm:$0xf]
    %v1377 = vld [vmem:[#allocation12 + $0x7c] sm:$0xf]
    %v1378 = vld [vmem:[#allocation12 + $0x80] sm:$0xf]
    %v1379 = vld [vmem:[#allocation12 + $0x84] sm:$0xf]
    %v1380 = vld [vmem:[#allocation12 + $0x88] sm:$0xf]
    %v1381 = vld [vmem:[#allocation12 + $0x8c] sm:$0xf]
    %v1382 = vld [vmem:[#allocation12 + $0x90] sm:$0xf]
    %v1383 = vld [vmem:[#allocation12 + $0x94] sm:$0xf]
    %v1384 = vld [vmem:[#allocation12 + $0x98] sm:$0xf]
    %v1385 = vld [vmem:[#allocation12 + $0x9c] sm:$0xf]
    %v1386 = vld [vmem:[#allocation12 + $0xa0] sm:$0xf]
    %v1387 = vld [vmem:[#allocation12 + $0xa4] sm:$0xf]
    %v1388 = vld [vmem:[#allocation12 + $0xa8] sm:$0xf]
    %v1389 = vld [vmem:[#allocation12 + $0xac] sm:$0xf]
    %v1390 = vld [vmem:[#allocation12 + $0xb0] sm:$0xf]
    %v1391 = vld [vmem:[#allocation12 + $0xb4] sm:$0xf]
    %v1392 = vld [vmem:[#allocation12 + $0xb8] sm:$0xf]
    %v1393 = vld [vmem:[#allocation12 + $0xbc] sm:$0xf]
    %v1394 = vld [vmem:[#allocation12 + $0xc0] sm:$0xf]
    %v1395 = vld [vmem:[#allocation12 + $0xc4] sm:$0xf]
    %v1396 = vld [vmem:[#allocation12 + $0xc8] sm:$0xf]
    %v1397 = vld [vmem:[#allocation12 + $0xcc] sm:$0xf]
    %v1398 = vld [vmem:[#allocation12 + $0xd0] sm:$0xf]
    %v1399 = vld [vmem:[#allocation12 + $0xd4] sm:$0xf]
    %v1400 = vld [vmem:[#allocation12 + $0xd8] sm:$0xf]
    %v1401 = vld [vmem:[#allocation12 + $0xdc] sm:$0xf]
    %v1402 = vld [vmem:[#allocation12 + $0xe0] sm:$0xf]
    %v1403 = vld [vmem:[#allocation12 + $0xe4] sm:$0xf]
    %v1404 = vld [vmem:[#allocation12 + $0xe8] sm:$0xf]
    %v1405 = vld [vmem:[#allocation12 + $0xec] sm:$0xf]
    %v1406 = vld [vmem:[#allocation12 + $0xf0] sm:$0xf]
    %v1407 = vld [vmem:[#allocation12 + $0xf4] sm:$0xf]
    %v1408 = vld [vmem:[#allocation12 + $0xf8] sm:$0xf]
    %v1409 = vld [vmem:[#allocation12 + $0xfc] sm:$0xf]
    %v1410 = vld [vmem:[#allocation13] sm:$0x1]
    %v1412 = vlaneseq
    %v1413 = vshrl.u32 %v1412, 7
    %v1414 = vsub.s32 0, %v1413
    %v1415 = vrot.slane %v1410, %v1414
    %v1481 = vunpack.c.l.b16 %v1346
    %v1482 = vunpack.c.l.b16 %v1347
    %v1483 = vunpack.c.l.b16 %v1348
    %v1484 = vunpack.c.l.b16 %v1349
    %v1485 = vunpack.c.l.b16 %v1350
    %v1486 = vunpack.c.l.b16 %v1351
    %v1487 = vunpack.c.l.b16 %v1352
    %v1488 = vunpack.c.l.b16 %v1353
    %v1489 = vunpack.c.l.b16 %v1354
    %v1490 = vunpack.c.l.b16 %v1355
    %v1491 = vunpack.c.l.b16 %v1356
    %v1492 = vunpack.c.l.b16 %v1357
    %v1493 = vunpack.c.l.b16 %v1358
    %v1494 = vunpack.c.l.b16 %v1359
    %v1495 = vunpack.c.l.b16 %v1360
    %v1496 = vunpack.c.l.b16 %v1361
    %v1497 = vunpack.c.l.b16 %v1362
    %v1498 = vunpack.c.l.b16 %v1363
    %v1499 = vunpack.c.l.b16 %v1364
    %v1500 = vunpack.c.l.b16 %v1365
    %v1501 = vunpack.c.l.b16 %v1366
    %v1502 = vunpack.c.l.b16 %v1367
    %v1503 = vunpack.c.l.b16 %v1368
    %v1504 = vunpack.c.l.b16 %v1369
    %v1505 = vunpack.c.l.b16 %v1370
    %v1506 = vunpack.c.l.b16 %v1371
    %v1507 = vunpack.c.l.b16 %v1372
    %v1508 = vunpack.c.l.b16 %v1373
    %v1509 = vunpack.c.l.b16 %v1374
    %v1510 = vunpack.c.l.b16 %v1375
    %v1511 = vunpack.c.l.b16 %v1376
    %v1512 = vunpack.c.l.b16 %v1377
    %v1513 = vunpack.c.l.b16 %v1378
    %v1514 = vunpack.c.l.b16 %v1379
    %v1515 = vunpack.c.l.b16 %v1380
    %v1516 = vunpack.c.l.b16 %v1381
    %v1517 = vunpack.c.l.b16 %v1382
    %v1518 = vunpack.c.l.b16 %v1383
    %v1519 = vunpack.c.l.b16 %v1384
    %v1520 = vunpack.c.l.b16 %v1385
    %v1521 = vunpack.c.l.b16 %v1386
    %v1522 = vunpack.c.l.b16 %v1387
    %v1523 = vunpack.c.l.b16 %v1388
    %v1524 = vunpack.c.l.b16 %v1389
    %v1525 = vunpack.c.l.b16 %v1390
    %v1526 = vunpack.c.l.b16 %v1391
    %v1527 = vunpack.c.l.b16 %v1392
    %v1528 = vunpack.c.l.b16 %v1393
    %v1529 = vunpack.c.l.b16 %v1394
    %v1530 = vunpack.c.l.b16 %v1395
    %v1531 = vunpack.c.l.b16 %v1396
    %v1532 = vunpack.c.l.b16 %v1397
    %v1533 = vunpack.c.l.b16 %v1398
    %v1534 = vunpack.c.l.b16 %v1399
    %v1535 = vunpack.c.l.b16 %v1400
    %v1536 = vunpack.c.l.b16 %v1401
    %v1537 = vunpack.c.l.b16 %v1402
    %v1538 = vunpack.c.l.b16 %v1403
    %v1539 = vunpack.c.l.b16 %v1404
    %v1540 = vunpack.c.l.b16 %v1405
    %v1541 = vunpack.c.l.b16 %v1406
    %v1542 = vunpack.c.l.b16 %v1407
    %v1543 = vunpack.c.l.b16 %v1408
    %v1544 = vunpack.c.l.b16 %v1409
    %v1545 = vpack.c.b16 %v1482, %v1481
    %v1546 = vpack.c.b16 %v1484, %v1483
    %v1547 = vpack.c.b16 %v1486, %v1485
    %v1548 = vpack.c.b16 %v1488, %v1487
    %v1549 = vpack.c.b16 %v1490, %v1489
    %v1550 = vpack.c.b16 %v1492, %v1491
    %v1551 = vpack.c.b16 %v1494, %v1493
    %v1552 = vpack.c.b16 %v1496, %v1495
    %v1553 = vpack.c.b16 %v1498, %v1497
    %v1554 = vpack.c.b16 %v1500, %v1499
    %v1555 = vpack.c.b16 %v1502, %v1501
    %v1556 = vpack.c.b16 %v1504, %v1503
    %v1557 = vpack.c.b16 %v1506, %v1505
    %v1558 = vpack.c.b16 %v1508, %v1507
    %v1559 = vpack.c.b16 %v1510, %v1509
    %v1560 = vpack.c.b16 %v1512, %v1511
    %v1561 = vpack.c.b16 %v1514, %v1513
    %v1562 = vpack.c.b16 %v1516, %v1515
    %v1563 = vpack.c.b16 %v1518, %v1517
    %v1564 = vpack.c.b16 %v1520, %v1519
    %v1565 = vpack.c.b16 %v1522, %v1521
    %v1566 = vpack.c.b16 %v1524, %v1523
    %v1567 = vpack.c.b16 %v1526, %v1525
    %v1568 = vpack.c.b16 %v1528, %v1527
    %v1569 = vpack.c.b16 %v1530, %v1529
    %v1570 = vpack.c.b16 %v1532, %v1531
    %v1571 = vpack.c.b16 %v1534, %v1533
    %v1572 = vpack.c.b16 %v1536, %v1535
    %v1573 = vpack.c.b16 %v1538, %v1537
    %v1574 = vpack.c.b16 %v1540, %v1539
    %v1575 = vpack.c.b16 %v1542, %v1541
    %v1576 = vpack.c.b16 %v1544, %v1543
    %1609 = vmatprep.subr.bf16.mxu0 0
    %1610 = vmatpush1.bf16.msra.mxu0 %v1545
    %1611 = vmatprep.subr.bf16.mxu0 0
    %1612 = vmatpush1.bf16.msra.mxu0 %v1546
    %1613 = vmatprep.subr.bf16.mxu0 0
    %1614 = vmatpush1.bf16.msra.mxu0 %v1547
    %1615 = vmatprep.subr.bf16.mxu0 0
    %1616 = vmatpush1.bf16.msra.mxu0 %v1548
    %1617 = vmatprep.subr.bf16.mxu0 0
    %1618 = vmatpush1.bf16.msra.mxu0 %v1549
    %1619 = vmatprep.subr.bf16.mxu0 0
    %1620 = vmatpush1.bf16.msra.mxu0 %v1550
    %1621 = vmatprep.subr.bf16.mxu0 0
    %1622 = vmatpush1.bf16.msra.mxu0 %v1551
    %1623 = vmatprep.subr.bf16.mxu0 0
    %1624 = vmatpush1.bf16.msra.mxu0 %v1552
    %1625 = vmatprep.subr.bf16.mxu0 0
    %1626 = vmatpush1.bf16.msra.mxu0 %v1553
    %1627 = vmatprep.subr.bf16.mxu0 0
    %1628 = vmatpush1.bf16.msra.mxu0 %v1554
    %1629 = vmatprep.subr.bf16.mxu0 0
    %1630 = vmatpush1.bf16.msra.mxu0 %v1555
    %1631 = vmatprep.subr.bf16.mxu0 0
    %1632 = vmatpush1.bf16.msra.mxu0 %v1556
    %1633 = vmatprep.subr.bf16.mxu0 0
    %1634 = vmatpush1.bf16.msra.mxu0 %v1557
    %1635 = vmatprep.subr.bf16.mxu0 0
    %1636 = vmatpush1.bf16.msra.mxu0 %v1558
    %1637 = vmatprep.subr.bf16.mxu0 0
    %1638 = vmatpush1.bf16.msra.mxu0 %v1559
    %1639 = vmatprep.subr.bf16.mxu0 0
    %1640 = vmatpush1.bf16.msra.mxu0 %v1560
    %1641 = vmatprep.mubr.bf16.mxu0 %v1343
    %1642 = vmatmul.mubr.bf16.gmra.mrb[0].mxu0 %v1342
    %v1643 = vpop.f32.mrb[0].mxu0
    %v1644 = vadd.f32 %v1415, %v1643
    %v1645 = vpop.f32.mrb[0].mxu0
    %v1646 = vpop.f32.mrb[0].mxu0
    %v1647 = vpop.f32.mrb[0].mxu0
    %1648 = vdwg.mxu0
    %1649 = vmatprep.subr.bf16.mxu0 0
    %1650 = vmatpush1.bf16.msra.mxu0 %v1561
    %1651 = vmatprep.subr.bf16.mxu0 0
    %1652 = vmatpush1.bf16.msra.mxu0 %v1562
    %1653 = vmatprep.subr.bf16.mxu0 0
    %1654 = vmatpush1.bf16.msra.mxu0 %v1563
    %1655 = vmatprep.subr.bf16.mxu0 0
    %1656 = vmatpush1.bf16.msra.mxu0 %v1564
    %1657 = vmatprep.subr.bf16.mxu0 0
    %1658 = vmatpush1.bf16.msra.mxu0 %v1565
    %1659 = vmatprep.subr.bf16.mxu0 0
    %1660 = vmatpush1.bf16.msra.mxu0 %v1566
    %1661 = vmatprep.subr.bf16.mxu0 0
    %1662 = vmatpush1.bf16.msra.mxu0 %v1567
    %1663 = vmatprep.subr.bf16.mxu0 0
    %1664 = vmatpush1.bf16.msra.mxu0 %v1568
    %1665 = vmatprep.subr.bf16.mxu0 0
    %1666 = vmatpush1.bf16.msra.mxu0 %v1569
    %1667 = vmatprep.subr.bf16.mxu0 0
    %1668 = vmatpush1.bf16.msra.mxu0 %v1570
    %1669 = vmatprep.subr.bf16.mxu0 0
    %1670 = vmatpush1.bf16.msra.mxu0 %v1571
    %1671 = vmatprep.subr.bf16.mxu0 0
    %1672 = vmatpush1.bf16.msra.mxu0 %v1572
    %1673 = vmatprep.subr.bf16.mxu0 0
    %1674 = vmatpush1.bf16.msra.mxu0 %v1573
    %1675 = vmatprep.subr.bf16.mxu0 0
    %1676 = vmatpush1.bf16.msra.mxu0 %v1574
    %1677 = vmatprep.subr.bf16.mxu0 0
    %1678 = vmatpush1.bf16.msra.mxu0 %v1575
    %1679 = vmatprep.subr.bf16.mxu0 0
    %1680 = vmatpush1.bf16.msra.mxu0 %v1576
    %1681 = vmatprep.mubr.bf16.mxu0 %v1345
    %1682 = vmatmul.mubr.bf16.gmra.mrb[0].mxu0 %v1344
    %v1683 = vpop.f32.mrb[0].mxu0
    %v1684 = vadd.f32 %v1644, %v1683
    %v1685 = vpop.f32.mrb[0].mxu0
    %v1686 = vpop.f32.mrb[0].mxu0
    %v1687 = vpop.f32.mrb[0].mxu0
    %1688 = vdwg.mxu0
    %v1689 = vmax.f32 %v1684, 0.0
    %s1690 = sld [smem:[#allocation2]]
    %v1691 = vstv %s1690
    %v1692 = vmul.f32 %v1691, %v1689
    %s1693 = scalar_lea.vmem %s1, 4
    %v1694 = vld [vmem:[%s1693] sm:$0xf]
    %s1695 = scalar_lea.vmem [#allocation6], 64
    %v1696 = vld [vmem:[%s1695] sm:$0xff]
    %v1697 = vld [vmem:[%s1695 + $0x8] sm:$0xff]
    %v1698 = vld [vmem:[%s1695 + $0x10] sm:$0xff]
    %v1699 = vld [vmem:[%s1695 + $0x18] sm:$0xff]
    %v1700 = vld [vmem:[%s1695 + $0x20] sm:$0xff]
    %v1701 = vld [vmem:[%s1695 + $0x28] sm:$0xff]
    %v1702 = vld [vmem:[%s1695 + $0x30] sm:$0xff]
    %v1703 = vld [vmem:[%s1695 + $0x38] sm:$0xff]
    %s1704 = scalar_lea.vmem [#allocation7], 4
    %v1705 = vld [vmem:[%s1704] sm:$0xf]
    %v1707 = vlaneseq
    %v1708 = vshrl.u32 %v1707, 7
    %v1709 = vsub.s32 0, %v1708
    %v1710 = vrot.slane %v1705, %v1709
    %v1711 = vlaneseq
    %v1712 = vshrl.u32 %v1711, 7
    %v1713 = vsub.s32 1, %v1712
    %v1714 = vrot.slane %v1705, %v1713
    %v1715 = vlaneseq
    %v1716 = vshrl.u32 %v1715, 7
    %v1717 = vsub.s32 2, %v1716
    %v1718 = vrot.slane %v1705, %v1717
    %v1719 = vlaneseq
    %v1720 = vshrl.u32 %v1719, 7
    %v1721 = vsub.s32 3, %v1720
    %v1722 = vrot.slane %v1705, %v1721
    %v1735 = vunpack.c.l.b16 %v1696
    %v1736 = vunpack.c.h.b16 %v1696
    %v1737 = vunpack.c.l.b16 %v1697
    %v1738 = vunpack.c.h.b16 %v1697
    %v1739 = vunpack.c.l.b16 %v1698
    %v1740 = vunpack.c.h.b16 %v1698
    %v1741 = vunpack.c.l.b16 %v1699
    %v1742 = vunpack.c.h.b16 %v1699
    %v1743 = vunpack.c.l.b16 %v1700
    %v1744 = vunpack.c.h.b16 %v1700
    %v1745 = vunpack.c.l.b16 %v1701
    %v1746 = vunpack.c.h.b16 %v1701
    %v1747 = vunpack.c.l.b16 %v1702
    %v1748 = vunpack.c.h.b16 %v1702
    %v1749 = vunpack.c.l.b16 %v1703
    %v1750 = vunpack.c.h.b16 %v1703
    %v1751 = vpack.c.b16 %v1739, %v1735
    %v1752 = vpack.c.b16 %v1740, %v1736
    %v1753 = vpack.c.b16 %v1741, %v1737
    %v1754 = vpack.c.b16 %v1742, %v1738
    %v1755 = vpack.c.b16 %v1747, %v1743
    %v1756 = vpack.c.b16 %v1748, %v1744
    %v1757 = vpack.c.b16 %v1749, %v1745
    %v1758 = vpack.c.b16 %v1750, %v1746
    %v1768 = vsel %vm290, %v1694, 0
    %1770 = vmatprep.subr.bf16.mxu0 %v1752
    %1771 = vmatpush1.bf16.msra.mxu0 %v1751
    %1772 = vmatprep.subr.bf16.mxu0 %v1756
    %1773 = vmatpush1.bf16.msra.mxu0 %v1755
    %1774 = vmatprep.subr.bf16.mxu0 0
    %1775 = vmatpush1.bf16.msra.mxu0 0
    %1776 = vmatprep.subr.bf16.mxu0 0
    %1777 = vmatpush1.bf16.msra.mxu0 0
    %1778 = vmatprep.subr.bf16.mxu0 0
    %1779 = vmatpush1.bf16.msra.mxu0 0
    %1780 = vmatprep.subr.bf16.mxu0 0
    %1781 = vmatpush1.bf16.msra.mxu0 0
    %1782 = vmatprep.subr.bf16.mxu0 0
    %1783 = vmatpush1.bf16.msra.mxu0 0
    %1784 = vmatprep.subr.bf16.mxu0 0
    %1785 = vmatpush1.bf16.msra.mxu0 0
    %1786 = vmatprep.subr.bf16.mxu0 0
    %1787 = vmatpush1.bf16.msra.mxu0 0
    %1788 = vmatprep.subr.bf16.mxu0 0
    %1789 = vmatpush1.bf16.msra.mxu0 0
    %1790 = vmatprep.subr.bf16.mxu0 0
    %1791 = vmatpush1.bf16.msra.mxu0 0
    %1792 = vmatprep.subr.bf16.mxu0 0
    %1793 = vmatpush1.bf16.msra.mxu0 0
    %1794 = vmatprep.subr.bf16.mxu0 0
    %1795 = vmatpush1.bf16.msra.mxu0 0
    %1796 = vmatprep.subr.bf16.mxu0 0
    %1797 = vmatpush1.bf16.msra.mxu0 0
    %1798 = vmatprep.subr.bf16.mxu0 0
    %1799 = vmatpush1.bf16.msra.mxu0 0
    %1800 = vmatprep.subr.bf16.mxu0 0
    %1801 = vmatpush1.bf16.msra.mxu0 0
    %1802 = vmatprep.mubr.bf16.mxu0 0
    %1803 = vmatmul.mubr.bf16.gmra.mrb[0].mxu0 %v1768
    %v1804 = vpop.f32.mrb[0].mxu0
    %v1805 = vadd.f32 %v1710, %v1804
    %v1806 = vpop.f32.mrb[0].mxu0
    %v1807 = vadd.f32 %v1714, %v1806
    %v1808 = vpop.f32.mrb[0].mxu0
    %v1809 = vpop.f32.mrb[0].mxu0
    %1810 = vdwg.mxu0
    %1811 = vmatprep.subr.bf16.mxu0 %v1754
    %1812 = vmatpush1.bf16.msra.mxu0 %v1753
    %1813 = vmatprep.subr.bf16.mxu0 %v1758
    %1814 = vmatpush1.bf16.msra.mxu0 %v1757
    %1815 = vmatprep.subr.bf16.mxu0 0
    %1816 = vmatpush1.bf16.msra.mxu0 0
    %1817 = vmatprep.subr.bf16.mxu0 0
    %1818 = vmatpush1.bf16.msra.mxu0 0
    %1819 = vmatprep.subr.bf16.mxu0 0
    %1820 = vmatpush1.bf16.msra.mxu0 0
    %1821 = vmatprep.subr.bf16.mxu0 0
    %1822 = vmatpush1.bf16.msra.mxu0 0
    %1823 = vmatprep.subr.bf16.mxu0 0
    %1824 = vmatpush1.bf16.msra.mxu0 0
    %1825 = vmatprep.subr.bf16.mxu0 0
    %1826 = vmatpush1.bf16.msra.mxu0 0
    %1827 = vmatprep.subr.bf16.mxu0 0
    %1828 = vmatpush1.bf16.msra.mxu0 0
    %1829 = vmatprep.subr.bf16.mxu0 0
    %1830 = vmatpush1.bf16.msra.mxu0 0
    %1831 = vmatprep.subr.bf16.mxu0 0
    %1832 = vmatpush1.bf16.msra.mxu0 0
    %1833 = vmatprep.subr.bf16.mxu0 0
    %1834 = vmatpush1.bf16.msra.mxu0 0
    %1835 = vmatprep.subr.bf16.mxu0 0
    %1836 = vmatpush1.bf16.msra.mxu0 0
    %1837 = vmatprep.subr.bf16.mxu0 0
    %1838 = vmatpush1.bf16.msra.mxu0 0
    %1839 = vmatprep.subr.bf16.mxu0 0
    %1840 = vmatpush1.bf16.msra.mxu0 0
    %1841 = vmatprep.subr.bf16.mxu0 0
    %1842 = vmatpush1.bf16.msra.mxu0 0
    %1843 = vmatprep.mubr.bf16.mxu0 0
    %1844 = vmatmul.mubr.bf16.gmra.mrb[0].mxu0 %v1768
    %v1845 = vpop.f32.mrb[0].mxu0
    %v1846 = vadd.f32 %v1718, %v1845
    %v1847 = vpop.f32.mrb[0].mxu0
    %v1848 = vadd.f32 %v1722, %v1847
    %v1849 = vpop.f32.mrb[0].mxu0
    %v1850 = vpop.f32.mrb[0].mxu0
    %1851 = vdwg.mxu0
    %v1852 = vmax.f32 %v1805, 0.0
    %v1853 = vmax.f32 %v1807, 0.0
    %v1854 = vmax.f32 %v1846, 0.0
    %v1855 = vmax.f32 %v1848, 0.0
    %v1856 = vpack.c.bf16 %v1852, %v1852
    %v1857 = vpack.c.bf16 %v1853, %v1853
    %v1858 = vpack.c.bf16 %v1854, %v1854
    %v1859 = vpack.c.bf16 %v1855, %v1855
    %s1860 = scalar_lea.vmem [#allocation9], 1024
    %v1861 = vld [vmem:[%s1860] sm:$0xff]
    %v1862 = vld [vmem:[%s1860 + $0x8] sm:$0xff]
    %v1863 = vld [vmem:[%s1860 + $0x10] sm:$0xff]
    %v1864 = vld [vmem:[%s1860 + $0x18] sm:$0xff]
    %v1865 = vld [vmem:[%s1860 + $0x20] sm:$0xff]
    %v1866 = vld [vmem:[%s1860 + $0x28] sm:$0xff]
    %v1867 = vld [vmem:[%s1860 + $0x30] sm:$0xff]
    %v1868 = vld [vmem:[%s1860 + $0x38] sm:$0xff]
    %v1869 = vld [vmem:[%s1860 + $0x40] sm:$0xff]
    %v1870 = vld [vmem:[%s1860 + $0x48] sm:$0xff]
    %v1871 = vld [vmem:[%s1860 + $0x50] sm:$0xff]
    %v1872 = vld [vmem:[%s1860 + $0x58] sm:$0xff]
    %v1873 = vld [vmem:[%s1860 + $0x60] sm:$0xff]
    %v1874 = vld [vmem:[%s1860 + $0x68] sm:$0xff]
    %v1875 = vld [vmem:[%s1860 + $0x70] sm:$0xff]
    %v1876 = vld [vmem:[%s1860 + $0x78] sm:$0xff]
    %v1877 = vld [vmem:[%s1860 + $0x80] sm:$0xff]
    %v1878 = vld [vmem:[%s1860 + $0x88] sm:$0xff]
    %v1879 = vld [vmem:[%s1860 + $0x90] sm:$0xff]
    %v1880 = vld [vmem:[%s1860 + $0x98] sm:$0xff]
    %v1881 = vld [vmem:[%s1860 + $0xa0] sm:$0xff]
    %v1882 = vld [vmem:[%s1860 + $0xa8] sm:$0xff]
    %v1883 = vld [vmem:[%s1860 + $0xb0] sm:$0xff]
    %v1884 = vld [vmem:[%s1860 + $0xb8] sm:$0xff]
    %v1885 = vld [vmem:[%s1860 + $0xc0] sm:$0xff]
    %v1886 = vld [vmem:[%s1860 + $0xc8] sm:$0xff]
    %v1887 = vld [vmem:[%s1860 + $0xd0] sm:$0xff]
    %v1888 = vld [vmem:[%s1860 + $0xd8] sm:$0xff]
    %v1889 = vld [vmem:[%s1860 + $0xe0] sm:$0xff]
    %v1890 = vld [vmem:[%s1860 + $0xe8] sm:$0xff]
    %v1891 = vld [vmem:[%s1860 + $0xf0] sm:$0xff]
    %v1892 = vld [vmem:[%s1860 + $0xf8] sm:$0xff]
    %v1893 = vld [vmem:[%s1860 + $0x100] sm:$0xff]
    %v1894 = vld [vmem:[%s1860 + $0x108] sm:$0xff]
    %v1895 = vld [vmem:[%s1860 + $0x110] sm:$0xff]
    %v1896 = vld [vmem:[%s1860 + $0x118] sm:$0xff]
    %v1897 = vld [vmem:[%s1860 + $0x120] sm:$0xff]
    %v1898 = vld [vmem:[%s1860 + $0x128] sm:$0xff]
    %v1899 = vld [vmem:[%s1860 + $0x130] sm:$0xff]
    %v1900 = vld [vmem:[%s1860 + $0x138] sm:$0xff]
    %v1901 = vld [vmem:[%s1860 + $0x140] sm:$0xff]
    %v1902 = vld [vmem:[%s1860 + $0x148] sm:$0xff]
    %v1903 = vld [vmem:[%s1860 + $0x150] sm:$0xff]
    %v1904 = vld [vmem:[%s1860 + $0x158] sm:$0xff]
    %v1905 = vld [vmem:[%s1860 + $0x160] sm:$0xff]
    %v1906 = vld [vmem:[%s1860 + $0x168] sm:$0xff]
    %v1907 = vld [vmem:[%s1860 + $0x170] sm:$0xff]
    %v1908 = vld [vmem:[%s1860 + $0x178] sm:$0xff]
    %v1909 = vld [vmem:[%s1860 + $0x180] sm:$0xff]
    %v1910 = vld [vmem:[%s1860 + $0x188] sm:$0xff]
    %v1911 = vld [vmem:[%s1860 + $0x190] sm:$0xff]
    %v1912 = vld [vmem:[%s1860 + $0x198] sm:$0xff]
    %v1913 = vld [vmem:[%s1860 + $0x1a0] sm:$0xff]
    %v1914 = vld [vmem:[%s1860 + $0x1a8] sm:$0xff]
    %v1915 = vld [vmem:[%s1860 + $0x1b0] sm:$0xff]
    %v1916 = vld [vmem:[%s1860 + $0x1b8] sm:$0xff]
    %v1917 = vld [vmem:[%s1860 + $0x1c0] sm:$0xff]
    %v1918 = vld [vmem:[%s1860 + $0x1c8] sm:$0xff]
    %v1919 = vld [vmem:[%s1860 + $0x1d0] sm:$0xff]
    %v1920 = vld [vmem:[%s1860 + $0x1d8] sm:$0xff]
    %v1921 = vld [vmem:[%s1860 + $0x1e0] sm:$0xff]
    %v1922 = vld [vmem:[%s1860 + $0x1e8] sm:$0xff]
    %v1923 = vld [vmem:[%s1860 + $0x1f0] sm:$0xff]
    %v1924 = vld [vmem:[%s1860 + $0x1f8] sm:$0xff]
    %v1925 = vld [vmem:[%s1860 + $0x200] sm:$0xff]
    %v1926 = vld [vmem:[%s1860 + $0x208] sm:$0xff]
    %v1927 = vld [vmem:[%s1860 + $0x210] sm:$0xff]
    %v1928 = vld [vmem:[%s1860 + $0x218] sm:$0xff]
    %v1929 = vld [vmem:[%s1860 + $0x220] sm:$0xff]
    %v1930 = vld [vmem:[%s1860 + $0x228] sm:$0xff]
    %v1931 = vld [vmem:[%s1860 + $0x230] sm:$0xff]
    %v1932 = vld [vmem:[%s1860 + $0x238] sm:$0xff]
    %v1933 = vld [vmem:[%s1860 + $0x240] sm:$0xff]
    %v1934 = vld [vmem:[%s1860 + $0x248] sm:$0xff]
    %v1935 = vld [vmem:[%s1860 + $0x250] sm:$0xff]
    %v1936 = vld [vmem:[%s1860 + $0x258] sm:$0xff]
    %v1937 = vld [vmem:[%s1860 + $0x260] sm:$0xff]
    %v1938 = vld [vmem:[%s1860 + $0x268] sm:$0xff]
    %v1939 = vld [vmem:[%s1860 + $0x270] sm:$0xff]
    %v1940 = vld [vmem:[%s1860 + $0x278] sm:$0xff]
    %v1941 = vld [vmem:[%s1860 + $0x280] sm:$0xff]
    %v1942 = vld [vmem:[%s1860 + $0x288] sm:$0xff]
    %v1943 = vld [vmem:[%s1860 + $0x290] sm:$0xff]
    %v1944 = vld [vmem:[%s1860 + $0x298] sm:$0xff]
    %v1945 = vld [vmem:[%s1860 + $0x2a0] sm:$0xff]
    %v1946 = vld [vmem:[%s1860 + $0x2a8] sm:$0xff]
    %v1947 = vld [vmem:[%s1860 + $0x2b0] sm:$0xff]
    %v1948 = vld [vmem:[%s1860 + $0x2b8] sm:$0xff]
    %v1949 = vld [vmem:[%s1860 + $0x2c0] sm:$0xff]
    %v1950 = vld [vmem:[%s1860 + $0x2c8] sm:$0xff]
    %v1951 = vld [vmem:[%s1860 + $0x2d0] sm:$0xff]
    %v1952 = vld [vmem:[%s1860 + $0x2d8] sm:$0xff]
    %v1953 = vld [vmem:[%s1860 + $0x2e0] sm:$0xff]
    %v1954 = vld [vmem:[%s1860 + $0x2e8] sm:$0xff]
    %v1955 = vld [vmem:[%s1860 + $0x2f0] sm:$0xff]
    %v1956 = vld [vmem:[%s1860 + $0x2f8] sm:$0xff]
    %v1957 = vld [vmem:[%s1860 + $0x300] sm:$0xff]
    %v1958 = vld [vmem:[%s1860 + $0x308] sm:$0xff]
    %v1959 = vld [vmem:[%s1860 + $0x310] sm:$0xff]
    %v1960 = vld [vmem:[%s1860 + $0x318] sm:$0xff]
    %v1961 = vld [vmem:[%s1860 + $0x320] sm:$0xff]
    %v1962 = vld [vmem:[%s1860 + $0x328] sm:$0xff]
    %v1963 = vld [vmem:[%s1860 + $0x330] sm:$0xff]
    %v1964 = vld [vmem:[%s1860 + $0x338] sm:$0xff]
    %v1965 = vld [vmem:[%s1860 + $0x340] sm:$0xff]
    %v1966 = vld [vmem:[%s1860 + $0x348] sm:$0xff]
    %v1967 = vld [vmem:[%s1860 + $0x350] sm:$0xff]
    %v1968 = vld [vmem:[%s1860 + $0x358] sm:$0xff]
    %v1969 = vld [vmem:[%s1860 + $0x360] sm:$0xff]
    %v1970 = vld [vmem:[%s1860 + $0x368] sm:$0xff]
    %v1971 = vld [vmem:[%s1860 + $0x370] sm:$0xff]
    %v1972 = vld [vmem:[%s1860 + $0x378] sm:$0xff]
    %v1973 = vld [vmem:[%s1860 + $0x380] sm:$0xff]
    %v1974 = vld [vmem:[%s1860 + $0x388] sm:$0xff]
    %v1975 = vld [vmem:[%s1860 + $0x390] sm:$0xff]
    %v1976 = vld [vmem:[%s1860 + $0x398] sm:$0xff]
    %v1977 = vld [vmem:[%s1860 + $0x3a0] sm:$0xff]
    %v1978 = vld [vmem:[%s1860 + $0x3a8] sm:$0xff]
    %v1979 = vld [vmem:[%s1860 + $0x3b0] sm:$0xff]
    %v1980 = vld [vmem:[%s1860 + $0x3b8] sm:$0xff]
    %v1981 = vld [vmem:[%s1860 + $0x3c0] sm:$0xff]
    %v1982 = vld [vmem:[%s1860 + $0x3c8] sm:$0xff]
    %v1983 = vld [vmem:[%s1860 + $0x3d0] sm:$0xff]
    %v1984 = vld [vmem:[%s1860 + $0x3d8] sm:$0xff]
    %v1985 = vld [vmem:[%s1860 + $0x3e0] sm:$0xff]
    %v1986 = vld [vmem:[%s1860 + $0x3e8] sm:$0xff]
    %v1987 = vld [vmem:[%s1860 + $0x3f0] sm:$0xff]
    %v1988 = vld [vmem:[%s1860 + $0x3f8] sm:$0xff]
    %s1989 = scalar_lea.vmem [#allocation10], 4
    %v1990 = vld [vmem:[%s1989] sm:$0xf]
    %v1992 = vlaneseq
    %v1993 = vshrl.u32 %v1992, 7
    %v1994 = vsub.s32 0, %v1993
    %v1995 = vrot.slane %v1990, %v1994
    %v1996 = vlaneseq
    %v1997 = vshrl.u32 %v1996, 7
    %v1998 = vsub.s32 1, %v1997
    %v1999 = vrot.slane %v1990, %v1998
    %v2000 = vlaneseq
    %v2001 = vshrl.u32 %v2000, 7
    %v2002 = vsub.s32 2, %v2001
    %v2003 = vrot.slane %v1990, %v2002
    %v2004 = vlaneseq
    %v2005 = vshrl.u32 %v2004, 7
    %v2006 = vsub.s32 3, %v2005
    %v2007 = vrot.slane %v1990, %v2006
    %v2140 = vunpack.c.l.b16 %v1861
    %v2141 = vunpack.c.h.b16 %v1861
    %v2142 = vunpack.c.l.b16 %v1862
    %v2143 = vunpack.c.h.b16 %v1862
    %v2144 = vunpack.c.l.b16 %v1863
    %v2145 = vunpack.c.h.b16 %v1863
    %v2146 = vunpack.c.l.b16 %v1864
    %v2147 = vunpack.c.h.b16 %v1864
    %v2148 = vunpack.c.l.b16 %v1865
    %v2149 = vunpack.c.h.b16 %v1865
    %v2150 = vunpack.c.l.b16 %v1866
    %v2151 = vunpack.c.h.b16 %v1866
    %v2152 = vunpack.c.l.b16 %v1867
    %v2153 = vunpack.c.h.b16 %v1867
    %v2154 = vunpack.c.l.b16 %v1868
    %v2155 = vunpack.c.h.b16 %v1868
    %v2156 = vunpack.c.l.b16 %v1869
    %v2157 = vunpack.c.h.b16 %v1869
    %v2158 = vunpack.c.l.b16 %v1870
    %v2159 = vunpack.c.h.b16 %v1870
    %v2160 = vunpack.c.l.b16 %v1871
    %v2161 = vunpack.c.h.b16 %v1871
    %v2162 = vunpack.c.l.b16 %v1872
    %v2163 = vunpack.c.h.b16 %v1872
    %v2164 = vunpack.c.l.b16 %v1873
    %v2165 = vunpack.c.h.b16 %v1873
    %v2166 = vunpack.c.l.b16 %v1874
    %v2167 = vunpack.c.h.b16 %v1874
    %v2168 = vunpack.c.l.b16 %v1875
    %v2169 = vunpack.c.h.b16 %v1875
    %v2170 = vunpack.c.l.b16 %v1876
    %v2171 = vunpack.c.h.b16 %v1876
    %v2172 = vunpack.c.l.b16 %v1877
    %v2173 = vunpack.c.h.b16 %v1877
    %v2174 = vunpack.c.l.b16 %v1878
    %v2175 = vunpack.c.h.b16 %v1878
    %v2176 = vunpack.c.l.b16 %v1879
    %v2177 = vunpack.c.h.b16 %v1879
    %v2178 = vunpack.c.l.b16 %v1880
    %v2179 = vunpack.c.h.b16 %v1880
    %v2180 = vunpack.c.l.b16 %v1881
    %v2181 = vunpack.c.h.b16 %v1881
    %v2182 = vunpack.c.l.b16 %v1882
    %v2183 = vunpack.c.h.b16 %v1882
    %v2184 = vunpack.c.l.b16 %v1883
    %v2185 = vunpack.c.h.b16 %v1883
    %v2186 = vunpack.c.l.b16 %v1884
    %v2187 = vunpack.c.h.b16 %v1884
    %v2188 = vunpack.c.l.b16 %v1885
    %v2189 = vunpack.c.h.b16 %v1885
    %v2190 = vunpack.c.l.b16 %v1886
    %v2191 = vunpack.c.h.b16 %v1886
    %v2192 = vunpack.c.l.b16 %v1887
    %v2193 = vunpack.c.h.b16 %v1887
    %v2194 = vunpack.c.l.b16 %v1888
    %v2195 = vunpack.c.h.b16 %v1888
    %v2196 = vunpack.c.l.b16 %v1889
    %v2197 = vunpack.c.h.b16 %v1889
    %v2198 = vunpack.c.l.b16 %v1890
    %v2199 = vunpack.c.h.b16 %v1890
    %v2200 = vunpack.c.l.b16 %v1891
    %v2201 = vunpack.c.h.b16 %v1891
    %v2202 = vunpack.c.l.b16 %v1892
    %v2203 = vunpack.c.h.b16 %v1892
    %v2204 = vunpack.c.l.b16 %v1893
    %v2205 = vunpack.c.h.b16 %v1893
    %v2206 = vunpack.c.l.b16 %v1894
    %v2207 = vunpack.c.h.b16 %v1894
    %v2208 = vunpack.c.l.b16 %v1895
    %v2209 = vunpack.c.h.b16 %v1895
    %v2210 = vunpack.c.l.b16 %v1896
    %v2211 = vunpack.c.h.b16 %v1896
    %v2212 = vunpack.c.l.b16 %v1897
    %v2213 = vunpack.c.h.b16 %v1897
    %v2214 = vunpack.c.l.b16 %v1898
    %v2215 = vunpack.c.h.b16 %v1898
    %v2216 = vunpack.c.l.b16 %v1899
    %v2217 = vunpack.c.h.b16 %v1899
    %v2218 = vunpack.c.l.b16 %v1900
    %v2219 = vunpack.c.h.b16 %v1900
    %v2220 = vunpack.c.l.b16 %v1901
    %v2221 = vunpack.c.h.b16 %v1901
    %v2222 = vunpack.c.l.b16 %v1902
    %v2223 = vunpack.c.h.b16 %v1902
    %v2224 = vunpack.c.l.b16 %v1903
    %v2225 = vunpack.c.h.b16 %v1903
    %v2226 = vunpack.c.l.b16 %v1904
    %v2227 = vunpack.c.h.b16 %v1904
    %v2228 = vunpack.c.l.b16 %v1905
    %v2229 = vunpack.c.h.b16 %v1905
    %v2230 = vunpack.c.l.b16 %v1906
    %v2231 = vunpack.c.h.b16 %v1906
    %v2232 = vunpack.c.l.b16 %v1907
    %v2233 = vunpack.c.h.b16 %v1907
    %v2234 = vunpack.c.l.b16 %v1908
    %v2235 = vunpack.c.h.b16 %v1908
    %v2236 = vunpack.c.l.b16 %v1909
    %v2237 = vunpack.c.h.b16 %v1909
    %v2238 = vunpack.c.l.b16 %v1910
    %v2239 = vunpack.c.h.b16 %v1910
    %v2240 = vunpack.c.l.b16 %v1911
    %v2241 = vunpack.c.h.b16 %v1911
    %v2242 = vunpack.c.l.b16 %v1912
    %v2243 = vunpack.c.h.b16 %v1912
    %v2244 = vunpack.c.l.b16 %v1913
    %v2245 = vunpack.c.h.b16 %v1913
    %v2246 = vunpack.c.l.b16 %v1914
    %v2247 = vunpack.c.h.b16 %v1914
    %v2248 = vunpack.c.l.b16 %v1915
    %v2249 = vunpack.c.h.b16 %v1915
    %v2250 = vunpack.c.l.b16 %v1916
    %v2251 = vunpack.c.h.b16 %v1916
    %v2252 = vunpack.c.l.b16 %v1917
    %v2253 = vunpack.c.h.b16 %v1917
    %v2254 = vunpack.c.l.b16 %v1918
    %v2255 = vunpack.c.h.b16 %v1918
    %v2256 = vunpack.c.l.b16 %v1919
    %v2257 = vunpack.c.h.b16 %v1919
    %v2258 = vunpack.c.l.b16 %v1920
    %v2259 = vunpack.c.h.b16 %v1920
    %v2260 = vunpack.c.l.b16 %v1921
    %v2261 = vunpack.c.h.b16 %v1921
    %v2262 = vunpack.c.l.b16 %v1922
    %v2263 = vunpack.c.h.b16 %v1922
    %v2264 = vunpack.c.l.b16 %v1923
    %v2265 = vunpack.c.h.b16 %v1923
    %v2266 = vunpack.c.l.b16 %v1924
    %v2267 = vunpack.c.h.b16 %v1924
    %v2268 = vunpack.c.l.b16 %v1925
    %v2269 = vunpack.c.h.b16 %v1925
    %v2270 = vunpack.c.l.b16 %v1926
    %v2271 = vunpack.c.h.b16 %v1926
    %v2272 = vunpack.c.l.b16 %v1927
    %v2273 = vunpack.c.h.b16 %v1927
    %v2274 = vunpack.c.l.b16 %v1928
    %v2275 = vunpack.c.h.b16 %v1928
    %v2276 = vunpack.c.l.b16 %v1929
    %v2277 = vunpack.c.h.b16 %v1929
    %v2278 = vunpack.c.l.b16 %v1930
    %v2279 = vunpack.c.h.b16 %v1930
    %v2280 = vunpack.c.l.b16 %v1931
    %v2281 = vunpack.c.h.b16 %v1931
    %v2282 = vunpack.c.l.b16 %v1932
    %v2283 = vunpack.c.h.b16 %v1932
    %v2284 = vunpack.c.l.b16 %v1933
    %v2285 = vunpack.c.h.b16 %v1933
    %v2286 = vunpack.c.l.b16 %v1934
    %v2287 = vunpack.c.h.b16 %v1934
    %v2288 = vunpack.c.l.b16 %v1935
    %v2289 = vunpack.c.h.b16 %v1935
    %v2290 = vunpack.c.l.b16 %v1936
    %v2291 = vunpack.c.h.b16 %v1936
    %v2292 = vunpack.c.l.b16 %v1937
    %v2293 = vunpack.c.h.b16 %v1937
    %v2294 = vunpack.c.l.b16 %v1938
    %v2295 = vunpack.c.h.b16 %v1938
    %v2296 = vunpack.c.l.b16 %v1939
    %v2297 = vunpack.c.h.b16 %v1939
    %v2298 = vunpack.c.l.b16 %v1940
    %v2299 = vunpack.c.h.b16 %v1940
    %v2300 = vunpack.c.l.b16 %v1941
    %v2301 = vunpack.c.h.b16 %v1941
    %v2302 = vunpack.c.l.b16 %v1942
    %v2303 = vunpack.c.h.b16 %v1942
    %v2304 = vunpack.c.l.b16 %v1943
    %v2305 = vunpack.c.h.b16 %v1943
    %v2306 = vunpack.c.l.b16 %v1944
    %v2307 = vunpack.c.h.b16 %v1944
    %v2308 = vunpack.c.l.b16 %v1945
    %v2309 = vunpack.c.h.b16 %v1945
    %v2310 = vunpack.c.l.b16 %v1946
    %v2311 = vunpack.c.h.b16 %v1946
    %v2312 = vunpack.c.l.b16 %v1947
    %v2313 = vunpack.c.h.b16 %v1947
    %v2314 = vunpack.c.l.b16 %v1948
    %v2315 = vunpack.c.h.b16 %v1948
    %v2316 = vunpack.c.l.b16 %v1949
    %v2317 = vunpack.c.h.b16 %v1949
    %v2318 = vunpack.c.l.b16 %v1950
    %v2319 = vunpack.c.h.b16 %v1950
    %v2320 = vunpack.c.l.b16 %v1951
    %v2321 = vunpack.c.h.b16 %v1951
    %v2322 = vunpack.c.l.b16 %v1952
    %v2323 = vunpack.c.h.b16 %v1952
    %v2324 = vunpack.c.l.b16 %v1953
    %v2325 = vunpack.c.h.b16 %v1953
    %v2326 = vunpack.c.l.b16 %v1954
    %v2327 = vunpack.c.h.b16 %v1954
    %v2328 = vunpack.c.l.b16 %v1955
    %v2329 = vunpack.c.h.b16 %v1955
    %v2330 = vunpack.c.l.b16 %v1956
    %v2331 = vunpack.c.h.b16 %v1956
    %v2332 = vunpack.c.l.b16 %v1957
    %v2333 = vunpack.c.h.b16 %v1957
    %v2334 = vunpack.c.l.b16 %v1958
    %v2335 = vunpack.c.h.b16 %v1958
    %v2336 = vunpack.c.l.b16 %v1959
    %v2337 = vunpack.c.h.b16 %v1959
    %v2338 = vunpack.c.l.b16 %v1960
    %v2339 = vunpack.c.h.b16 %v1960
    %v2340 = vunpack.c.l.b16 %v1961
    %v2341 = vunpack.c.h.b16 %v1961
    %v2342 = vunpack.c.l.b16 %v1962
    %v2343 = vunpack.c.h.b16 %v1962
    %v2344 = vunpack.c.l.b16 %v1963
    %v2345 = vunpack.c.h.b16 %v1963
    %v2346 = vunpack.c.l.b16 %v1964
    %v2347 = vunpack.c.h.b16 %v1964
    %v2348 = vunpack.c.l.b16 %v1965
    %v2349 = vunpack.c.h.b16 %v1965
    %v2350 = vunpack.c.l.b16 %v1966
    %v2351 = vunpack.c.h.b16 %v1966
    %v2352 = vunpack.c.l.b16 %v1967
    %v2353 = vunpack.c.h.b16 %v1967
    %v2354 = vunpack.c.l.b16 %v1968
    %v2355 = vunpack.c.h.b16 %v1968
    %v2356 = vunpack.c.l.b16 %v1969
    %v2357 = vunpack.c.h.b16 %v1969
    %v2358 = vunpack.c.l.b16 %v1970
    %v2359 = vunpack.c.h.b16 %v1970
    %v2360 = vunpack.c.l.b16 %v1971
    %v2361 = vunpack.c.h.b16 %v1971
    %v2362 = vunpack.c.l.b16 %v1972
    %v2363 = vunpack.c.h.b16 %v1972
    %v2364 = vunpack.c.l.b16 %v1973
    %v2365 = vunpack.c.h.b16 %v1973
    %v2366 = vunpack.c.l.b16 %v1974
    %v2367 = vunpack.c.h.b16 %v1974
    %v2368 = vunpack.c.l.b16 %v1975
    %v2369 = vunpack.c.h.b16 %v1975
    %v2370 = vunpack.c.l.b16 %v1976
    %v2371 = vunpack.c.h.b16 %v1976
    %v2372 = vunpack.c.l.b16 %v1977
    %v2373 = vunpack.c.h.b16 %v1977
    %v2374 = vunpack.c.l.b16 %v1978
    %v2375 = vunpack.c.h.b16 %v1978
    %v2376 = vunpack.c.l.b16 %v1979
    %v2377 = vunpack.c.h.b16 %v1979
    %v2378 = vunpack.c.l.b16 %v1980
    %v2379 = vunpack.c.h.b16 %v1980
    %v2380 = vunpack.c.l.b16 %v1981
    %v2381 = vunpack.c.h.b16 %v1981
    %v2382 = vunpack.c.l.b16 %v1982
    %v2383 = vunpack.c.h.b16 %v1982
    %v2384 = vunpack.c.l.b16 %v1983
    %v2385 = vunpack.c.h.b16 %v1983
    %v2386 = vunpack.c.l.b16 %v1984
    %v2387 = vunpack.c.h.b16 %v1984
    %v2388 = vunpack.c.l.b16 %v1985
    %v2389 = vunpack.c.h.b16 %v1985
    %v2390 = vunpack.c.l.b16 %v1986
    %v2391 = vunpack.c.h.b16 %v1986
    %v2392 = vunpack.c.l.b16 %v1987
    %v2393 = vunpack.c.h.b16 %v1987
    %v2394 = vunpack.c.l.b16 %v1988
    %v2395 = vunpack.c.h.b16 %v1988
    %v2396 = vpack.c.b16 %v2144, %v2140
    %v2397 = vpack.c.b16 %v2145, %v2141
    %v2398 = vpack.c.b16 %v2146, %v2142
    %v2399 = vpack.c.b16 %v2147, %v2143
    %v2400 = vpack.c.b16 %v2152, %v2148
    %v2401 = vpack.c.b16 %v2153, %v2149
    %v2402 = vpack.c.b16 %v2154, %v2150
    %v2403 = vpack.c.b16 %v2155, %v2151
    %v2404 = vpack.c.b16 %v2160, %v2156
    %v2405 = vpack.c.b16 %v2161, %v2157
    %v2406 = vpack.c.b16 %v2162, %v2158
    %v2407 = vpack.c.b16 %v2163, %v2159
    %v2408 = vpack.c.b16 %v2168, %v2164
    %v2409 = vpack.c.b16 %v2169, %v2165
    %v2410 = vpack.c.b16 %v2170, %v2166
    %v2411 = vpack.c.b16 %v2171, %v2167
    %v2412 = vpack.c.b16 %v2176, %v2172
    %v2413 = vpack.c.b16 %v2177, %v2173
    %v2414 = vpack.c.b16 %v2178, %v2174
    %v2415 = vpack.c.b16 %v2179, %v2175
    %v2416 = vpack.c.b16 %v2184, %v2180
    %v2417 = vpack.c.b16 %v2185, %v2181
    %v2418 = vpack.c.b16 %v2186, %v2182
    %v2419 = vpack.c.b16 %v2187, %v2183
    %v2420 = vpack.c.b16 %v2192, %v2188
    %v2421 = vpack.c.b16 %v2193, %v2189
    %v2422 = vpack.c.b16 %v2194, %v2190
    %v2423 = vpack.c.b16 %v2195, %v2191
    %v2424 = vpack.c.b16 %v2200, %v2196
    %v2425 = vpack.c.b16 %v2201, %v2197
    %v2426 = vpack.c.b16 %v2202, %v2198
    %v2427 = vpack.c.b16 %v2203, %v2199
    %v2428 = vpack.c.b16 %v2208, %v2204
    %v2429 = vpack.c.b16 %v2209, %v2205
    %v2430 = vpack.c.b16 %v2210, %v2206
    %v2431 = vpack.c.b16 %v2211, %v2207
    %v2432 = vpack.c.b16 %v2216, %v2212
    %v2433 = vpack.c.b16 %v2217, %v2213
    %v2434 = vpack.c.b16 %v2218, %v2214
    %v2435 = vpack.c.b16 %v2219, %v2215
    %v2436 = vpack.c.b16 %v2224, %v2220
    %v2437 = vpack.c.b16 %v2225, %v2221
    %v2438 = vpack.c.b16 %v2226, %v2222
    %v2439 = vpack.c.b16 %v2227, %v2223
    %v2440 = vpack.c.b16 %v2232, %v2228
    %v2441 = vpack.c.b16 %v2233, %v2229
    %v2442 = vpack.c.b16 %v2234, %v2230
    %v2443 = vpack.c.b16 %v2235, %v2231
    %v2444 = vpack.c.b16 %v2240, %v2236
    %v2445 = vpack.c.b16 %v2241, %v2237
    %v2446 = vpack.c.b16 %v2242, %v2238
    %v2447 = vpack.c.b16 %v2243, %v2239
    %v2448 = vpack.c.b16 %v2248, %v2244
    %v2449 = vpack.c.b16 %v2249, %v2245
    %v2450 = vpack.c.b16 %v2250, %v2246
    %v2451 = vpack.c.b16 %v2251, %v2247
    %v2452 = vpack.c.b16 %v2256, %v2252
    %v2453 = vpack.c.b16 %v2257, %v2253
    %v2454 = vpack.c.b16 %v2258, %v2254
    %v2455 = vpack.c.b16 %v2259, %v2255
    %v2456 = vpack.c.b16 %v2264, %v2260
    %v2457 = vpack.c.b16 %v2265, %v2261
    %v2458 = vpack.c.b16 %v2266, %v2262
    %v2459 = vpack.c.b16 %v2267, %v2263
    %v2460 = vpack.c.b16 %v2272, %v2268
    %v2461 = vpack.c.b16 %v2273, %v2269
    %v2462 = vpack.c.b16 %v2274, %v2270
    %v2463 = vpack.c.b16 %v2275, %v2271
    %v2464 = vpack.c.b16 %v2280, %v2276
    %v2465 = vpack.c.b16 %v2281, %v2277
    %v2466 = vpack.c.b16 %v2282, %v2278
    %v2467 = vpack.c.b16 %v2283, %v2279
    %v2468 = vpack.c.b16 %v2288, %v2284
    %v2469 = vpack.c.b16 %v2289, %v2285
    %v2470 = vpack.c.b16 %v2290, %v2286
    %v2471 = vpack.c.b16 %v2291, %v2287
    %v2472 = vpack.c.b16 %v2296, %v2292
    %v2473 = vpack.c.b16 %v2297, %v2293
    %v2474 = vpack.c.b16 %v2298, %v2294
    %v2475 = vpack.c.b16 %v2299, %v2295
    %v2476 = vpack.c.b16 %v2304, %v2300
    %v2477 = vpack.c.b16 %v2305, %v2301
    %v2478 = vpack.c.b16 %v2306, %v2302
    %v2479 = vpack.c.b16 %v2307, %v2303
    %v2480 = vpack.c.b16 %v2312, %v2308
    %v2481 = vpack.c.b16 %v2313, %v2309
    %v2482 = vpack.c.b16 %v2314, %v2310
    %v2483 = vpack.c.b16 %v2315, %v2311
    %v2484 = vpack.c.b16 %v2320, %v2316
    %v2485 = vpack.c.b16 %v2321, %v2317
    %v2486 = vpack.c.b16 %v2322, %v2318
    %v2487 = vpack.c.b16 %v2323, %v2319
    %v2488 = vpack.c.b16 %v2328, %v2324
    %v2489 = vpack.c.b16 %v2329, %v2325
    %v2490 = vpack.c.b16 %v2330, %v2326
    %v2491 = vpack.c.b16 %v2331, %v2327
    %v2492 = vpack.c.b16 %v2336, %v2332
    %v2493 = vpack.c.b16 %v2337, %v2333
    %v2494 = vpack.c.b16 %v2338, %v2334
    %v2495 = vpack.c.b16 %v2339, %v2335
    %v2496 = vpack.c.b16 %v2344, %v2340
    %v2497 = vpack.c.b16 %v2345, %v2341
    %v2498 = vpack.c.b16 %v2346, %v2342
    %v2499 = vpack.c.b16 %v2347, %v2343
    %v2500 = vpack.c.b16 %v2352, %v2348
    %v2501 = vpack.c.b16 %v2353, %v2349
    %v2502 = vpack.c.b16 %v2354, %v2350
    %v2503 = vpack.c.b16 %v2355, %v2351
    %v2504 = vpack.c.b16 %v2360, %v2356
    %v2505 = vpack.c.b16 %v2361, %v2357
    %v2506 = vpack.c.b16 %v2362, %v2358
    %v2507 = vpack.c.b16 %v2363, %v2359
    %v2508 = vpack.c.b16 %v2368, %v2364
    %v2509 = vpack.c.b16 %v2369, %v2365
    %v2510 = vpack.c.b16 %v2370, %v2366
    %v2511 = vpack.c.b16 %v2371, %v2367
    %v2512 = vpack.c.b16 %v2376, %v2372
    %v2513 = vpack.c.b16 %v2377, %v2373
    %v2514 = vpack.c.b16 %v2378, %v2374
    %v2515 = vpack.c.b16 %v2379, %v2375
    %v2516 = vpack.c.b16 %v2384, %v2380
    %v2517 = vpack.c.b16 %v2385, %v2381
    %v2518 = vpack.c.b16 %v2386, %v2382
    %v2519 = vpack.c.b16 %v2387, %v2383
    %v2520 = vpack.c.b16 %v2392, %v2388
    %v2521 = vpack.c.b16 %v2393, %v2389
    %v2522 = vpack.c.b16 %v2394, %v2390
    %v2523 = vpack.c.b16 %v2395, %v2391
    %2652 = vmatprep.subr.bf16.mxu0 %v2397
    %2653 = vmatpush1.bf16.msra.mxu0 %v2396
    %2654 = vmatprep.subr.bf16.mxu0 %v2401
    %2655 = vmatpush1.bf16.msra.mxu0 %v2400
    %2656 = vmatprep.subr.bf16.mxu0 %v2405
    %2657 = vmatpush1.bf16.msra.mxu0 %v2404
    %2658 = vmatprep.subr.bf16.mxu0 %v2409
    %2659 = vmatpush1.bf16.msra.mxu0 %v2408
    %2660 = vmatprep.subr.bf16.mxu0 %v2413
    %2661 = vmatpush1.bf16.msra.mxu0 %v2412
    %2662 = vmatprep.subr.bf16.mxu0 %v2417
    %2663 = vmatpush1.bf16.msra.mxu0 %v2416
    %2664 = vmatprep.subr.bf16.mxu0 %v2421
    %2665 = vmatpush1.bf16.msra.mxu0 %v2420
    %2666 = vmatprep.subr.bf16.mxu0 %v2425
    %2667 = vmatpush1.bf16.msra.mxu0 %v2424
    %2668 = vmatprep.subr.bf16.mxu0 %v2429
    %2669 = vmatpush1.bf16.msra.mxu0 %v2428
    %2670 = vmatprep.subr.bf16.mxu0 %v2433
    %2671 = vmatpush1.bf16.msra.mxu0 %v2432
    %2672 = vmatprep.subr.bf16.mxu0 %v2437
    %2673 = vmatpush1.bf16.msra.mxu0 %v2436
    %2674 = vmatprep.subr.bf16.mxu0 %v2441
    %2675 = vmatpush1.bf16.msra.mxu0 %v2440
    %2676 = vmatprep.subr.bf16.mxu0 %v2445
    %2677 = vmatpush1.bf16.msra.mxu0 %v2444
    %2678 = vmatprep.subr.bf16.mxu0 %v2449
    %2679 = vmatpush1.bf16.msra.mxu0 %v2448
    %2680 = vmatprep.subr.bf16.mxu0 %v2453
    %2681 = vmatpush1.bf16.msra.mxu0 %v2452
    %2682 = vmatprep.subr.bf16.mxu0 %v2457
    %2683 = vmatpush1.bf16.msra.mxu0 %v2456
    %2684 = vmatprep.mubr.bf16.mxu0 %v1857
    %2685 = vmatmul.mubr.bf16.gmra.mrb[0].mxu0 %v1856
    %v2686 = vpop.f32.mrb[0].mxu0
    %v2687 = vadd.f32 %v1995, %v2686
    %v2688 = vpop.f32.mrb[0].mxu0
    %v2689 = vadd.f32 %v1999, %v2688
    %v2690 = vpop.f32.mrb[0].mxu0
    %v2691 = vpop.f32.mrb[0].mxu0
    %2692 = vdwg.mxu0
    %2693 = vmatprep.subr.bf16.mxu0 %v2461
    %2694 = vmatpush1.bf16.msra.mxu0 %v2460
    %2695 = vmatprep.subr.bf16.mxu0 %v2465
    %2696 = vmatpush1.bf16.msra.mxu0 %v2464
    %2697 = vmatprep.subr.bf16.mxu0 %v2469
    %2698 = vmatpush1.bf16.msra.mxu0 %v2468
    %2699 = vmatprep.subr.bf16.mxu0 %v2473
    %2700 = vmatpush1.bf16.msra.mxu0 %v2472
    %2701 = vmatprep.subr.bf16.mxu0 %v2477
    %2702 = vmatpush1.bf16.msra.mxu0 %v2476
    %2703 = vmatprep.subr.bf16.mxu0 %v2481
    %2704 = vmatpush1.bf16.msra.mxu0 %v2480
    %2705 = vmatprep.subr.bf16.mxu0 %v2485
    %2706 = vmatpush1.bf16.msra.mxu0 %v2484
    %2707 = vmatprep.subr.bf16.mxu0 %v2489
    %2708 = vmatpush1.bf16.msra.mxu0 %v2488
    %2709 = vmatprep.subr.bf16.mxu0 %v2493
    %2710 = vmatpush1.bf16.msra.mxu0 %v2492
    %2711 = vmatprep.subr.bf16.mxu0 %v2497
    %2712 = vmatpush1.bf16.msra.mxu0 %v2496
    %2713 = vmatprep.subr.bf16.mxu0 %v2501
    %2714 = vmatpush1.bf16.msra.mxu0 %v2500
    %2715 = vmatprep.subr.bf16.mxu0 %v2505
    %2716 = vmatpush1.bf16.msra.mxu0 %v2504
    %2717 = vmatprep.subr.bf16.mxu0 %v2509
    %2718 = vmatpush1.bf16.msra.mxu0 %v2508
    %2719 = vmatprep.subr.bf16.mxu0 %v2513
    %2720 = vmatpush1.bf16.msra.mxu0 %v2512
    %2721 = vmatprep.subr.bf16.mxu0 %v2517
    %2722 = vmatpush1.bf16.msra.mxu0 %v2516
    %2723 = vmatprep.subr.bf16.mxu0 %v2521
    %2724 = vmatpush1.bf16.msra.mxu0 %v2520
    %2725 = vmatprep.mubr.bf16.mxu0 %v1859
    %2726 = vmatmul.mubr.bf16.gmra.mrb[0].mxu0 %v1858
    %v2727 = vpop.f32.mrb[0].mxu0
    %v2728 = vadd.f32 %v2687, %v2727
    %v2729 = vpop.f32.mrb[0].mxu0
    %v2730 = vadd.f32 %v2689, %v2729
    %v2731 = vpop.f32.mrb[0].mxu0
    %v2732 = vpop.f32.mrb[0].mxu0
    %2733 = vdwg.mxu0
    %2734 = vmatprep.subr.bf16.mxu0 %v2399
    %2735 = vmatpush1.bf16.msra.mxu0 %v2398
    %2736 = vmatprep.subr.bf16.mxu0 %v2403
    %2737 = vmatpush1.bf16.msra.mxu0 %v2402
    %2738 = vmatprep.subr.bf16.mxu0 %v2407
    %2739 = vmatpush1.bf16.msra.mxu0 %v2406
    %2740 = vmatprep.subr.bf16.mxu0 %v2411
    %2741 = vmatpush1.bf16.msra.mxu0 %v2410
    %2742 = vmatprep.subr.bf16.mxu0 %v2415
    %2743 = vmatpush1.bf16.msra.mxu0 %v2414
    %2744 = vmatprep.subr.bf16.mxu0 %v2419
    %2745 = vmatpush1.bf16.msra.mxu0 %v2418
    %2746 = vmatprep.subr.bf16.mxu0 %v2423
    %2747 = vmatpush1.bf16.msra.mxu0 %v2422
    %2748 = vmatprep.subr.bf16.mxu0 %v2427
    %2749 = vmatpush1.bf16.msra.mxu0 %v2426
    %2750 = vmatprep.subr.bf16.mxu0 %v2431
    %2751 = vmatpush1.bf16.msra.mxu0 %v2430
    %2752 = vmatprep.subr.bf16.mxu0 %v2435
    %2753 = vmatpush1.bf16.msra.mxu0 %v2434
    %2754 = vmatprep.subr.bf16.mxu0 %v2439
    %2755 = vmatpush1.bf16.msra.mxu0 %v2438
    %2756 = vmatprep.subr.bf16.mxu0 %v2443
    %2757 = vmatpush1.bf16.msra.mxu0 %v2442
    %2758 = vmatprep.subr.bf16.mxu0 %v2447
    %2759 = vmatpush1.bf16.msra.mxu0 %v2446
    %2760 = vmatprep.subr.bf16.mxu0 %v2451
    %2761 = vmatpush1.bf16.msra.mxu0 %v2450
    %2762 = vmatprep.subr.bf16.mxu0 %v2455
    %2763 = vmatpush1.bf16.msra.mxu0 %v2454
    %2764 = vmatprep.subr.bf16.mxu0 %v2459
    %2765 = vmatpush1.bf16.msra.mxu0 %v2458
    %2766 = vmatprep.mubr.bf16.mxu0 %v1857
    %2767 = vmatmul.mubr.bf16.gmra.mrb[0].mxu0 %v1856
    %v2768 = vpop.f32.mrb[0].mxu0
    %v2769 = vadd.f32 %v2003, %v2768
    %v2770 = vpop.f32.mrb[0].mxu0
    %v2771 = vadd.f32 %v2007, %v2770
    %v2772 = vpop.f32.mrb[0].mxu0
    %v2773 = vpop.f32.mrb[0].mxu0
    %2774 = vdwg.mxu0
    %2775 = vmatprep.subr.bf16.mxu0 %v2463
    %2776 = vmatpush1.bf16.msra.mxu0 %v2462
    %2777 = vmatprep.subr.bf16.mxu0 %v2467
    %2778 = vmatpush1.bf16.msra.mxu0 %v2466
    %2779 = vmatprep.subr.bf16.mxu0 %v2471
    %2780 = vmatpush1.bf16.msra.mxu0 %v2470
    %2781 = vmatprep.subr.bf16.mxu0 %v2475
    %2782 = vmatpush1.bf16.msra.mxu0 %v2474
    %2783 = vmatprep.subr.bf16.mxu0 %v2479
    %2784 = vmatpush1.bf16.msra.mxu0 %v2478
    %2785 = vmatprep.subr.bf16.mxu0 %v2483
    %2786 = vmatpush1.bf16.msra.mxu0 %v2482
    %2787 = vmatprep.subr.bf16.mxu0 %v2487
    %2788 = vmatpush1.bf16.msra.mxu0 %v2486
    %2789 = vmatprep.subr.bf16.mxu0 %v2491
    %2790 = vmatpush1.bf16.msra.mxu0 %v2490
    %2791 = vmatprep.subr.bf16.mxu0 %v2495
    %2792 = vmatpush1.bf16.msra.mxu0 %v2494
    %2793 = vmatprep.subr.bf16.mxu0 %v2499
    %2794 = vmatpush1.bf16.msra.mxu0 %v2498
    %2795 = vmatprep.subr.bf16.mxu0 %v2503
    %2796 = vmatpush1.bf16.msra.mxu0 %v2502
    %2797 = vmatprep.subr.bf16.mxu0 %v2507
    %2798 = vmatpush1.bf16.msra.mxu0 %v2506
    %2799 = vmatprep.subr.bf16.mxu0 %v2511
    %2800 = vmatpush1.bf16.msra.mxu0 %v2510
    %2801 = vmatprep.subr.bf16.mxu0 %v2515
    %2802 = vmatpush1.bf16.msra.mxu0 %v2514
    %2803 = vmatprep.subr.bf16.mxu0 %v2519
    %2804 = vmatpush1.bf16.msra.mxu0 %v2518
    %2805 = vmatprep.subr.bf16.mxu0 %v2523
    %2806 = vmatpush1.bf16.msra.mxu0 %v2522
    %2807 = vmatprep.mubr.bf16.mxu0 %v1859
    %2808 = vmatmul.mubr.bf16.gmra.mrb[0].mxu0 %v1858
    %v2809 = vpop.f32.mrb[0].mxu0
    %v2810 = vadd.f32 %v2769, %v2809
    %v2811 = vpop.f32.mrb[0].mxu0
    %v2812 = vadd.f32 %v2771, %v2811
    %v2813 = vpop.f32.mrb[0].mxu0
    %v2814 = vpop.f32.mrb[0].mxu0
    %2815 = vdwg.mxu0
    %v2816 = vmax.f32 %v2728, 0.0
    %v2817 = vmax.f32 %v2730, 0.0
    %v2818 = vmax.f32 %v2810, 0.0
    %v2819 = vmax.f32 %v2812, 0.0
    %v2820 = vpack.c.bf16 %v2816, %v2816
    %v2821 = vpack.c.bf16 %v2817, %v2817
    %v2822 = vpack.c.bf16 %v2818, %v2818
    %v2823 = vpack.c.bf16 %v2819, %v2819
    %s2824 = scalar_lea.vmem [#allocation12], 256
    %v2825 = vld [vmem:[%s2824] sm:$0xf]
    %v2826 = vld [vmem:[%s2824 + $0x4] sm:$0xf]
    %v2827 = vld [vmem:[%s2824 + $0x8] sm:$0xf]
    %v2828 = vld [vmem:[%s2824 + $0xc] sm:$0xf]
    %v2829 = vld [vmem:[%s2824 + $0x10] sm:$0xf]
    %v2830 = vld [vmem:[%s2824 + $0x14] sm:$0xf]
    %v2831 = vld [vmem:[%s2824 + $0x18] sm:$0xf]
    %v2832 = vld [vmem:[%s2824 + $0x1c] sm:$0xf]
    %v2833 = vld [vmem:[%s2824 + $0x20] sm:$0xf]
    %v2834 = vld [vmem:[%s2824 + $0x24] sm:$0xf]
    %v2835 = vld [vmem:[%s2824 + $0x28] sm:$0xf]
    %v2836 = vld [vmem:[%s2824 + $0x2c] sm:$0xf]
    %v2837 = vld [vmem:[%s2824 + $0x30] sm:$0xf]
    %v2838 = vld [vmem:[%s2824 + $0x34] sm:$0xf]
    %v2839 = vld [vmem:[%s2824 + $0x38] sm:$0xf]
    %v2840 = vld [vmem:[%s2824 + $0x3c] sm:$0xf]
    %v2841 = vld [vmem:[%s2824 + $0x40] sm:$0xf]
    %v2842 = vld [vmem:[%s2824 + $0x44] sm:$0xf]
    %v2843 = vld [vmem:[%s2824 + $0x48] sm:$0xf]
    %v2844 = vld [vmem:[%s2824 + $0x4c] sm:$0xf]
    %v2845 = vld [vmem:[%s2824 + $0x50] sm:$0xf]
    %v2846 = vld [vmem:[%s2824 + $0x54] sm:$0xf]
    %v2847 = vld [vmem:[%s2824 + $0x58] sm:$0xf]
    %v2848 = vld [vmem:[%s2824 + $0x5c] sm:$0xf]
    %v2849 = vld [vmem:[%s2824 + $0x60] sm:$0xf]
    %v2850 = vld [vmem:[%s2824 + $0x64] sm:$0xf]
    %v2851 = vld [vmem:[%s2824 + $0x68] sm:$0xf]
    %v2852 = vld [vmem:[%s2824 + $0x6c] sm:$0xf]
    %v2853 = vld [vmem:[%s2824 + $0x70] sm:$0xf]
    %v2854 = vld [vmem:[%s2824 + $0x74] sm:$0xf]
    %v2855 = vld [vmem:[%s2824 + $0x78] sm:$0xf]
    %v2856 = vld [vmem:[%s2824 + $0x7c] sm:$0xf]
    %v2857 = vld [vmem:[%s2824 + $0x80] sm:$0xf]
    %v2858 = vld [vmem:[%s2824 + $0x84] sm:$0xf]
    %v2859 = vld [vmem:[%s2824 + $0x88] sm:$0xf]
    %v2860 = vld [vmem:[%s2824 + $0x8c] sm:$0xf]
    %v2861 = vld [vmem:[%s2824 + $0x90] sm:$0xf]
    %v2862 = vld [vmem:[%s2824 + $0x94] sm:$0xf]
    %v2863 = vld [vmem:[%s2824 + $0x98] sm:$0xf]
    %v2864 = vld [vmem:[%s2824 + $0x9c] sm:$0xf]
    %v2865 = vld [vmem:[%s2824 + $0xa0] sm:$0xf]
    %v2866 = vld [vmem:[%s2824 + $0xa4] sm:$0xf]
    %v2867 = vld [vmem:[%s2824 + $0xa8] sm:$0xf]
    %v2868 = vld [vmem:[%s2824 + $0xac] sm:$0xf]
    %v2869 = vld [vmem:[%s2824 + $0xb0] sm:$0xf]
    %v2870 = vld [vmem:[%s2824 + $0xb4] sm:$0xf]
    %v2871 = vld [vmem:[%s2824 + $0xb8] sm:$0xf]
    %v2872 = vld [vmem:[%s2824 + $0xbc] sm:$0xf]
    %v2873 = vld [vmem:[%s2824 + $0xc0] sm:$0xf]
    %v2874 = vld [vmem:[%s2824 + $0xc4] sm:$0xf]
    %v2875 = vld [vmem:[%s2824 + $0xc8] sm:$0xf]
    %v2876 = vld [vmem:[%s2824 + $0xcc] sm:$0xf]
    %v2877 = vld [vmem:[%s2824 + $0xd0] sm:$0xf]
    %v2878 = vld [vmem:[%s2824 + $0xd4] sm:$0xf]
    %v2879 = vld [vmem:[%s2824 + $0xd8] sm:$0xf]
    %v2880 = vld [vmem:[%s2824 + $0xdc] sm:$0xf]
    %v2881 = vld [vmem:[%s2824 + $0xe0] sm:$0xf]
    %v2882 = vld [vmem:[%s2824 + $0xe4] sm:$0xf]
    %v2883 = vld [vmem:[%s2824 + $0xe8] sm:$0xf]
    %v2884 = vld [vmem:[%s2824 + $0xec] sm:$0xf]
    %v2885 = vld [vmem:[%s2824 + $0xf0] sm:$0xf]
    %v2886 = vld [vmem:[%s2824 + $0xf4] sm:$0xf]
    %v2887 = vld [vmem:[%s2824 + $0xf8] sm:$0xf]
    %v2888 = vld [vmem:[%s2824 + $0xfc] sm:$0xf]
    %s2889 = scalar_lea.vmem [#allocation13], 1
    %v2890 = vld [vmem:[%s2889] sm:$0x1]
    %v2892 = vlaneseq
    %v2893 = vshrl.u32 %v2892, 7
    %v2894 = vsub.s32 0, %v2893
    %v2895 = vrot.slane %v2890, %v2894
    %v2961 = vunpack.c.l.b16 %v2825
    %v2962 = vunpack.c.l.b16 %v2826
    %v2963 = vunpack.c.l.b16 %v2827
    %v2964 = vunpack.c.l.b16 %v2828
    %v2965 = vunpack.c.l.b16 %v2829
    %v2966 = vunpack.c.l.b16 %v2830
    %v2967 = vunpack.c.l.b16 %v2831
    %v2968 = vunpack.c.l.b16 %v2832
    %v2969 = vunpack.c.l.b16 %v2833
    %v2970 = vunpack.c.l.b16 %v2834
    %v2971 = vunpack.c.l.b16 %v2835
    %v2972 = vunpack.c.l.b16 %v2836
    %v2973 = vunpack.c.l.b16 %v2837
    %v2974 = vunpack.c.l.b16 %v2838
    %v2975 = vunpack.c.l.b16 %v2839
    %v2976 = vunpack.c.l.b16 %v2840
    %v2977 = vunpack.c.l.b16 %v2841
    %v2978 = vunpack.c.l.b16 %v2842
    %v2979 = vunpack.c.l.b16 %v2843
    %v2980 = vunpack.c.l.b16 %v2844
    %v2981 = vunpack.c.l.b16 %v2845
    %v2982 = vunpack.c.l.b16 %v2846
    %v2983 = vunpack.c.l.b16 %v2847
    %v2984 = vunpack.c.l.b16 %v2848
    %v2985 = vunpack.c.l.b16 %v2849
    %v2986 = vunpack.c.l.b16 %v2850
    %v2987 = vunpack.c.l.b16 %v2851
    %v2988 = vunpack.c.l.b16 %v2852
    %v2989 = vunpack.c.l.b16 %v2853
    %v2990 = vunpack.c.l.b16 %v2854
    %v2991 = vunpack.c.l.b16 %v2855
    %v2992 = vunpack.c.l.b16 %v2856
    %v2993 = vunpack.c.l.b16 %v2857
    %v2994 = vunpack.c.l.b16 %v2858
    %v2995 = vunpack.c.l.b16 %v2859
    %v2996 = vunpack.c.l.b16 %v2860
    %v2997 = vunpack.c.l.b16 %v2861
    %v2998 = vunpack.c.l.b16 %v2862
    %v2999 = vunpack.c.l.b16 %v2863
    %v3000 = vunpack.c.l.b16 %v2864
    %v3001 = vunpack.c.l.b16 %v2865
    %v3002 = vunpack.c.l.b16 %v2866
    %v3003 = vunpack.c.l.b16 %v2867
    %v3004 = vunpack.c.l.b16 %v2868
    %v3005 = vunpack.c.l.b16 %v2869
    %v3006 = vunpack.c.l.b16 %v2870
    %v3007 = vunpack.c.l.b16 %v2871
    %v3008 = vunpack.c.l.b16 %v2872
    %v3009 = vunpack.c.l.b16 %v2873
    %v3010 = vunpack.c.l.b16 %v2874
    %v3011 = vunpack.c.l.b16 %v2875
    %v3012 = vunpack.c.l.b16 %v2876
    %v3013 = vunpack.c.l.b16 %v2877
    %v3014 = vunpack.c.l.b16 %v2878
    %v3015 = vunpack.c.l.b16 %v2879
    %v3016 = vunpack.c.l.b16 %v2880
    %v3017 = vunpack.c.l.b16 %v2881
    %v3018 = vunpack.c.l.b16 %v2882
    %v3019 = vunpack.c.l.b16 %v2883
    %v3020 = vunpack.c.l.b16 %v2884
    %v3021 = vunpack.c.l.b16 %v2885
    %v3022 = vunpack.c.l.b16 %v2886
    %v3023 = vunpack.c.l.b16 %v2887
    %v3024 = vunpack.c.l.b16 %v2888
    %v3025 = vpack.c.b16 %v2962, %v2961
    %v3026 = vpack.c.b16 %v2964, %v2963
    %v3027 = vpack.c.b16 %v2966, %v2965
    %v3028 = vpack.c.b16 %v2968, %v2967
    %v3029 = vpack.c.b16 %v2970, %v2969
    %v3030 = vpack.c.b16 %v2972, %v2971
    %v3031 = vpack.c.b16 %v2974, %v2973
    %v3032 = vpack.c.b16 %v2976, %v2975
    %v3033 = vpack.c.b16 %v2978, %v2977
    %v3034 = vpack.c.b16 %v2980, %v2979
    %v3035 = vpack.c.b16 %v2982, %v2981
    %v3036 = vpack.c.b16 %v2984, %v2983
    %v3037 = vpack.c.b16 %v2986, %v2985
    %v3038 = vpack.c.b16 %v2988, %v2987
    %v3039 = vpack.c.b16 %v2990, %v2989
    %v3040 = vpack.c.b16 %v2992, %v2991
    %v3041 = vpack.c.b16 %v2994, %v2993
    %v3042 = vpack.c.b16 %v2996, %v2995
    %v3043 = vpack.c.b16 %v2998, %v2997
    %v3044 = vpack.c.b16 %v3000, %v2999
    %v3045 = vpack.c.b16 %v3002, %v3001
    %v3046 = vpack.c.b16 %v3004, %v3003
    %v3047 = vpack.c.b16 %v3006, %v3005
    %v3048 = vpack.c.b16 %v3008, %v3007
    %v3049 = vpack.c.b16 %v3010, %v3009
    %v3050 = vpack.c.b16 %v3012, %v3011
    %v3051 = vpack.c.b16 %v3014, %v3013
    %v3052 = vpack.c.b16 %v3016, %v3015
    %v3053 = vpack.c.b16 %v3018, %v3017
    %v3054 = vpack.c.b16 %v3020, %v3019
    %v3055 = vpack.c.b16 %v3022, %v3021
    %v3056 = vpack.c.b16 %v3024, %v3023
    %3089 = vmatprep.subr.bf16.mxu0 0
    %3090 = vmatpush1.bf16.msra.mxu0 %v3025
    %3091 = vmatprep.subr.bf16.mxu0 0
    %3092 = vmatpush1.bf16.msra.mxu0 %v3026
    %3093 = vmatprep.subr.bf16.mxu0 0
    %3094 = vmatpush1.bf16.msra.mxu0 %v3027
    %3095 = vmatprep.subr.bf16.mxu0 0
    %3096 = vmatpush1.bf16.msra.mxu0 %v3028
    %3097 = vmatprep.subr.bf16.mxu0 0
    %3098 = vmatpush1.bf16.msra.mxu0 %v3029
    %3099 = vmatprep.subr.bf16.mxu0 0
    %3100 = vmatpush1.bf16.msra.mxu0 %v3030
    %3101 = vmatprep.subr.bf16.mxu0 0
    %3102 = vmatpush1.bf16.msra.mxu0 %v3031
    %3103 = vmatprep.subr.bf16.mxu0 0
    %3104 = vmatpush1.bf16.msra.mxu0 %v3032
    %3105 = vmatprep.subr.bf16.mxu0 0
    %3106 = vmatpush1.bf16.msra.mxu0 %v3033
    %3107 = vmatprep.subr.bf16.mxu0 0
    %3108 = vmatpush1.bf16.msra.mxu0 %v3034
    %3109 = vmatprep.subr.bf16.mxu0 0
    %3110 = vmatpush1.bf16.msra.mxu0 %v3035
    %3111 = vmatprep.subr.bf16.mxu0 0
    %3112 = vmatpush1.bf16.msra.mxu0 %v3036
    %3113 = vmatprep.subr.bf16.mxu0 0
    %3114 = vmatpush1.bf16.msra.mxu0 %v3037
    %3115 = vmatprep.subr.bf16.mxu0 0
    %3116 = vmatpush1.bf16.msra.mxu0 %v3038
    %3117 = vmatprep.subr.bf16.mxu0 0
    %3118 = vmatpush1.bf16.msra.mxu0 %v3039
    %3119 = vmatprep.subr.bf16.mxu0 0
    %3120 = vmatpush1.bf16.msra.mxu0 %v3040
    %3121 = vmatprep.mubr.bf16.mxu0 %v2821
    %3122 = vmatmul.mubr.bf16.gmra.mrb[0].mxu0 %v2820
    %v3123 = vpop.f32.mrb[0].mxu0
    %v3124 = vadd.f32 %v2895, %v3123
    %v3125 = vpop.f32.mrb[0].mxu0
    %v3126 = vpop.f32.mrb[0].mxu0
    %v3127 = vpop.f32.mrb[0].mxu0
    %3128 = vdwg.mxu0
    %3129 = vmatprep.subr.bf16.mxu0 0
    %3130 = vmatpush1.bf16.msra.mxu0 %v3041
    %3131 = vmatprep.subr.bf16.mxu0 0
    %3132 = vmatpush1.bf16.msra.mxu0 %v3042
    %3133 = vmatprep.subr.bf16.mxu0 0
    %3134 = vmatpush1.bf16.msra.mxu0 %v3043
    %3135 = vmatprep.subr.bf16.mxu0 0
    %3136 = vmatpush1.bf16.msra.mxu0 %v3044
    %3137 = vmatprep.subr.bf16.mxu0 0
    %3138 = vmatpush1.bf16.msra.mxu0 %v3045
    %3139 = vmatprep.subr.bf16.mxu0 0
    %3140 = vmatpush1.bf16.msra.mxu0 %v3046
    %3141 = vmatprep.subr.bf16.mxu0 0
    %3142 = vmatpush1.bf16.msra.mxu0 %v3047
    %3143 = vmatprep.subr.bf16.mxu0 0
    %3144 = vmatpush1.bf16.msra.mxu0 %v3048
    %3145 = vmatprep.subr.bf16.mxu0 0
    %3146 = vmatpush1.bf16.msra.mxu0 %v3049
    %3147 = vmatprep.subr.bf16.mxu0 0
    %3148 = vmatpush1.bf16.msra.mxu0 %v3050
    %3149 = vmatprep.subr.bf16.mxu0 0
    %3150 = vmatpush1.bf16.msra.mxu0 %v3051
    %3151 = vmatprep.subr.bf16.mxu0 0
    %3152 = vmatpush1.bf16.msra.mxu0 %v3052
    %3153 = vmatprep.subr.bf16.mxu0 0
    %3154 = vmatpush1.bf16.msra.mxu0 %v3053
    %3155 = vmatprep.subr.bf16.mxu0 0
    %3156 = vmatpush1.bf16.msra.mxu0 %v3054
    %3157 = vmatprep.subr.bf16.mxu0 0
    %3158 = vmatpush1.bf16.msra.mxu0 %v3055
    %3159 = vmatprep.subr.bf16.mxu0 0
    %3160 = vmatpush1.bf16.msra.mxu0 %v3056
    %3161 = vmatprep.mubr.bf16.mxu0 %v2823
    %3162 = vmatmul.mubr.bf16.gmra.mrb[0].mxu0 %v2822
    %v3163 = vpop.f32.mrb[0].mxu0
    %v3164 = vadd.f32 %v3124, %v3163
    %v3165 = vpop.f32.mrb[0].mxu0
    %v3166 = vpop.f32.mrb[0].mxu0
    %v3167 = vpop.f32.mrb[0].mxu0
    %3168 = vdwg.mxu0
    %v3169 = vmax.f32 %v3164, 0.0
    %s3170 = sld [smem:[#allocation2 + $0x1]]
    %v3171 = vstv %s3170
    %v3172 = vmul.f32 %v3171, %v3169
    %v3173 = vadd.f32 %v1692, %v3172
    %s3174 = scalar_lea.vmem %s1, 8
    %v3175 = vld [vmem:[%s3174] sm:$0xf]
    %s3176 = scalar_lea.vmem [#allocation6], 128
    %v3177 = vld [vmem:[%s3176] sm:$0xff]
    %v3178 = vld [vmem:[%s3176 + $0x8] sm:$0xff]
    %v3179 = vld [vmem:[%s3176 + $0x10] sm:$0xff]
    %v3180 = vld [vmem:[%s3176 + $0x18] sm:$0xff]
    %v3181 = vld [vmem:[%s3176 + $0x20] sm:$0xff]
    %v3182 = vld [vmem:[%s3176 + $0x28] sm:$0xff]
    %v3183 = vld [vmem:[%s3176 + $0x30] sm:$0xff]
    %v3184 = vld [vmem:[%s3176 + $0x38] sm:$0xff]
    %s3185 = scalar_lea.vmem [#allocation7], 8
    %v3186 = vld [vmem:[%s3185] sm:$0xf]
    %v3188 = vlaneseq
    %v3189 = vshrl.u32 %v3188, 7
    %v3190 = vsub.s32 0, %v3189
    %v3191 = vrot.slane %v3186, %v3190
    %v3192 = vlaneseq
    %v3193 = vshrl.u32 %v3192, 7
    %v3194 = vsub.s32 1, %v3193
    %v3195 = vrot.slane %v3186, %v3194
    %v3196 = vlaneseq
    %v3197 = vshrl.u32 %v3196, 7
    %v3198 = vsub.s32 2, %v3197
    %v3199 = vrot.slane %v3186, %v3198
    %v3200 = vlaneseq
    %v3201 = vshrl.u32 %v3200, 7
    %v3202 = vsub.s32 3, %v3201
    %v3203 = vrot.slane %v3186, %v3202
    %v3216 = vunpack.c.l.b16 %v3177
    %v3217 = vunpack.c.h.b16 %v3177
    %v3218 = vunpack.c.l.b16 %v3178
    %v3219 = vunpack.c.h.b16 %v3178
    %v3220 = vunpack.c.l.b16 %v3179
    %v3221 = vunpack.c.h.b16 %v3179
    %v3222 = vunpack.c.l.b16 %v3180
    %v3223 = vunpack.c.h.b16 %v3180
    %v3224 = vunpack.c.l.b16 %v3181
    %v3225 = vunpack.c.h.b16 %v3181
    %v3226 = vunpack.c.l.b16 %v3182
    %v3227 = vunpack.c.h.b16 %v3182
    %v3228 = vunpack.c.l.b16 %v3183
    %v3229 = vunpack.c.h.b16 %v3183
    %v3230 = vunpack.c.l.b16 %v3184
    %v3231 = vunpack.c.h.b16 %v3184
    %v3232 = vpack.c.b16 %v3220, %v3216
    %v3233 = vpack.c.b16 %v3221, %v3217
    %v3234 = vpack.c.b16 %v3222, %v3218
    %v3235 = vpack.c.b16 %v3223, %v3219
    %v3236 = vpack.c.b16 %v3228, %v3224
    %v3237 = vpack.c.b16 %v3229, %v3225
    %v3238 = vpack.c.b16 %v3230, %v3226
    %v3239 = vpack.c.b16 %v3231, %v3227
    %v3249 = vsel %vm290, %v3175, 0
    %3251 = vmatprep.subr.bf16.mxu0 %v3233
    %3252 = vmatpush1.bf16.msra.mxu0 %v3232
    %3253 = vmatprep.subr.bf16.mxu0 %v3237
    %3254 = vmatpush1.bf16.msra.mxu0 %v3236
    %3255 = vmatprep.subr.bf16.mxu0 0
    %3256 = vmatpush1.bf16.msra.mxu0 0
    %3257 = vmatprep.subr.bf16.mxu0 0
    %3258 = vmatpush1.bf16.msra.mxu0 0
    %3259 = vmatprep.subr.bf16.mxu0 0
    %3260 = vmatpush1.bf16.msra.mxu0 0
    %3261 = vmatprep.subr.bf16.mxu0 0
    %3262 = vmatpush1.bf16.msra.mxu0 0
    %3263 = vmatprep.subr.bf16.mxu0 0
    %3264 = vmatpush1.bf16.msra.mxu0 0
    %3265 = vmatprep.subr.bf16.mxu0 0
    %3266 = vmatpush1.bf16.msra.mxu0 0
    %3267 = vmatprep.subr.bf16.mxu0 0
    %3268 = vmatpush1.bf16.msra.mxu0 0
    %3269 = vmatprep.subr.bf16.mxu0 0
    %3270 = vmatpush1.bf16.msra.mxu0 0
    %3271 = vmatprep.subr.bf16.mxu0 0
    %3272 = vmatpush1.bf16.msra.mxu0 0
    %3273 = vmatprep.subr.bf16.mxu0 0
    %3274 = vmatpush1.bf16.msra.mxu0 0
    %3275 = vmatprep.subr.bf16.mxu0 0
    %3276 = vmatpush1.bf16.msra.mxu0 0
    %3277 = vmatprep.subr.bf16.mxu0 0
    %3278 = vmatpush1.bf16.msra.mxu0 0
    %3279 = vmatprep.subr.bf16.mxu0 0
    %3280 = vmatpush1.bf16.msra.mxu0 0
    %3281 = vmatprep.subr.bf16.mxu0 0
    %3282 = vmatpush1.bf16.msra.mxu0 0
    %3283 = vmatprep.mubr.bf16.mxu0 0
    %3284 = vmatmul.mubr.bf16.gmra.mrb[0].mxu0 %v3249
    %v3285 = vpop.f32.mrb[0].mxu0
    %v3286 = vadd.f32 %v3191, %v3285
    %v3287 = vpop.f32.mrb[0].mxu0
    %v3288 = vadd.f32 %v3195, %v3287
    %v3289 = vpop.f32.mrb[0].mxu0
    %v3290 = vpop.f32.mrb[0].mxu0
    %3291 = vdwg.mxu0
    %3292 = vmatprep.subr.bf16.mxu0 %v3235
    %3293 = vmatpush1.bf16.msra.mxu0 %v3234
    %3294 = vmatprep.subr.bf16.mxu0 %v3239
    %3295 = vmatpush1.bf16.msra.mxu0 %v3238
    %3296 = vmatprep.subr.bf16.mxu0 0
    %3297 = vmatpush1.bf16.msra.mxu0 0
    %3298 = vmatprep.subr.bf16.mxu0 0
    %3299 = vmatpush1.bf16.msra.mxu0 0
    %3300 = vmatprep.subr.bf16.mxu0 0
    %3301 = vmatpush1.bf16.msra.mxu0 0
    %3302 = vmatprep.subr.bf16.mxu0 0
    %3303 = vmatpush1.bf16.msra.mxu0 0
    %3304 = vmatprep.subr.bf16.mxu0 0
    %3305 = vmatpush1.bf16.msra.mxu0 0
    %3306 = vmatprep.subr.bf16.mxu0 0
    %3307 = vmatpush1.bf16.msra.mxu0 0
    %3308 = vmatprep.subr.bf16.mxu0 0
    %3309 = vmatpush1.bf16.msra.mxu0 0
    %3310 = vmatprep.subr.bf16.mxu0 0
    %3311 = vmatpush1.bf16.msra.mxu0 0
    %3312 = vmatprep.subr.bf16.mxu0 0
    %3313 = vmatpush1.bf16.msra.mxu0 0
    %3314 = vmatprep.subr.bf16.mxu0 0
    %3315 = vmatpush1.bf16.msra.mxu0 0
    %3316 = vmatprep.subr.bf16.mxu0 0
    %3317 = vmatpush1.bf16.msra.mxu0 0
    %3318 = vmatprep.subr.bf16.mxu0 0
    %3319 = vmatpush1.bf16.msra.mxu0 0
    %3320 = vmatprep.subr.bf16.mxu0 0
    %3321 = vmatpush1.bf16.msra.mxu0 0
    %3322 = vmatprep.subr.bf16.mxu0 0
    %3323 = vmatpush1.bf16.msra.mxu0 0
    %3324 = vmatprep.mubr.bf16.mxu0 0
    %3325 = vmatmul.mubr.bf16.gmra.mrb[0].mxu0 %v3249
    %v3326 = vpop.f32.mrb[0].mxu0
    %v3327 = vadd.f32 %v3199, %v3326
    %v3328 = vpop.f32.mrb[0].mxu0
    %v3329 = vadd.f32 %v3203, %v3328
    %v3330 = vpop.f32.mrb[0].mxu0
    %v3331 = vpop.f32.mrb[0].mxu0
    %3332 = vdwg.mxu0
    %v3333 = vmax.f32 %v3286, 0.0
    %v3334 = vmax.f32 %v3288, 0.0
    %v3335 = vmax.f32 %v3327, 0.0
    %v3336 = vmax.f32 %v3329, 0.0
    %v3337 = vpack.c.bf16 %v3333, %v3333
    %v3338 = vpack.c.bf16 %v3334, %v3334
    %v3339 = vpack.c.bf16 %v3335, %v3335
    %v3340 = vpack.c.bf16 %v3336, %v3336
    %s3341 = scalar_lea.vmem [#allocation9], 2048
    %v3342 = vld [vmem:[%s3341] sm:$0xff]
    %v3343 = vld [vmem:[%s3341 + $0x8] sm:$0xff]
    %v3344 = vld [vmem:[%s3341 + $0x10] sm:$0xff]
    %v3345 = vld [vmem:[%s3341 + $0x18] sm:$0xff]
    %v3346 = vld [vmem:[%s3341 + $0x20] sm:$0xff]
    %v3347 = vld [vmem:[%s3341 + $0x28] sm:$0xff]
    %v3348 = vld [vmem:[%s3341 + $0x30] sm:$0xff]
    %v3349 = vld [vmem:[%s3341 + $0x38] sm:$0xff]
    %v3350 = vld [vmem:[%s3341 + $0x40] sm:$0xff]
    %v3351 = vld [vmem:[%s3341 + $0x48] sm:$0xff]
    %v3352 = vld [vmem:[%s3341 + $0x50] sm:$0xff]
    %v3353 = vld [vmem:[%s3341 + $0x58] sm:$0xff]
    %v3354 = vld [vmem:[%s3341 + $0x60] sm:$0xff]
    %v3355 = vld [vmem:[%s3341 + $0x68] sm:$0xff]
    %v3356 = vld [vmem:[%s3341 + $0x70] sm:$0xff]
    %v3357 = vld [vmem:[%s3341 + $0x78] sm:$0xff]
    %v3358 = vld [vmem:[%s3341 + $0x80] sm:$0xff]
    %v3359 = vld [vmem:[%s3341 + $0x88] sm:$0xff]
    %v3360 = vld [vmem:[%s3341 + $0x90] sm:$0xff]
    %v3361 = vld [vmem:[%s3341 + $0x98] sm:$0xff]
    %v3362 = vld [vmem:[%s3341 + $0xa0] sm:$0xff]
    %v3363 = vld [vmem:[%s3341 + $0xa8] sm:$0xff]
    %v3364 = vld [vmem:[%s3341 + $0xb0] sm:$0xff]
    %v3365 = vld [vmem:[%s3341 + $0xb8] sm:$0xff]
    %v3366 = vld [vmem:[%s3341 + $0xc0] sm:$0xff]
    %v3367 = vld [vmem:[%s3341 + $0xc8] sm:$0xff]
    %v3368 = vld [vmem:[%s3341 + $0xd0] sm:$0xff]
    %v3369 = vld [vmem:[%s3341 + $0xd8] sm:$0xff]
    %v3370 = vld [vmem:[%s3341 + $0xe0] sm:$0xff]
    %v3371 = vld [vmem:[%s3341 + $0xe8] sm:$0xff]
    %v3372 = vld [vmem:[%s3341 + $0xf0] sm:$0xff]
    %v3373 = vld [vmem:[%s3341 + $0xf8] sm:$0xff]
    %v3374 = vld [vmem:[%s3341 + $0x100] sm:$0xff]
    %v3375 = vld [vmem:[%s3341 + $0x108] sm:$0xff]
    %v3376 = vld [vmem:[%s3341 + $0x110] sm:$0xff]
    %v3377 = vld [vmem:[%s3341 + $0x118] sm:$0xff]
    %v3378 = vld [vmem:[%s3341 + $0x120] sm:$0xff]
    %v3379 = vld [vmem:[%s3341 + $0x128] sm:$0xff]
    %v3380 = vld [vmem:[%s3341 + $0x130] sm:$0xff]
    %v3381 = vld [vmem:[%s3341 + $0x138] sm:$0xff]
    %v3382 = vld [vmem:[%s3341 + $0x140] sm:$0xff]
    %v3383 = vld [vmem:[%s3341 + $0x148] sm:$0xff]
    %v3384 = vld [vmem:[%s3341 + $0x150] sm:$0xff]
    %v3385 = vld [vmem:[%s3341 + $0x158] sm:$0xff]
    %v3386 = vld [vmem:[%s3341 + $0x160] sm:$0xff]
    %v3387 = vld [vmem:[%s3341 + $0x168] sm:$0xff]
    %v3388 = vld [vmem:[%s3341 + $0x170] sm:$0xff]
    %v3389 = vld [vmem:[%s3341 + $0x178] sm:$0xff]
    %v3390 = vld [vmem:[%s3341 + $0x180] sm:$0xff]
    %v3391 = vld [vmem:[%s3341 + $0x188] sm:$0xff]
    %v3392 = vld [vmem:[%s3341 + $0x190] sm:$0xff]
    %v3393 = vld [vmem:[%s3341 + $0x198] sm:$0xff]
    %v3394 = vld [vmem:[%s3341 + $0x1a0] sm:$0xff]
    %v3395 = vld [vmem:[%s3341 + $0x1a8] sm:$0xff]
    %v3396 = vld [vmem:[%s3341 + $0x1b0] sm:$0xff]
    %v3397 = vld [vmem:[%s3341 + $0x1b8] sm:$0xff]
    %v3398 = vld [vmem:[%s3341 + $0x1c0] sm:$0xff]
    %v3399 = vld [vmem:[%s3341 + $0x1c8] sm:$0xff]
    %v3400 = vld [vmem:[%s3341 + $0x1d0] sm:$0xff]
    %v3401 = vld [vmem:[%s3341 + $0x1d8] sm:$0xff]
    %v3402 = vld [vmem:[%s3341 + $0x1e0] sm:$0xff]
    %v3403 = vld [vmem:[%s3341 + $0x1e8] sm:$0xff]
    %v3404 = vld [vmem:[%s3341 + $0x1f0] sm:$0xff]
    %v3405 = vld [vmem:[%s3341 + $0x1f8] sm:$0xff]
    %v3406 = vld [vmem:[%s3341 + $0x200] sm:$0xff]
    %v3407 = vld [vmem:[%s3341 + $0x208] sm:$0xff]
    %v3408 = vld [vmem:[%s3341 + $0x210] sm:$0xff]
    %v3409 = vld [vmem:[%s3341 + $0x218] sm:$0xff]
    %v3410 = vld [vmem:[%s3341 + $0x220] sm:$0xff]
    %v3411 = vld [vmem:[%s3341 + $0x228] sm:$0xff]
    %v3412 = vld [vmem:[%s3341 + $0x230] sm:$0xff]
    %v3413 = vld [vmem:[%s3341 + $0x238] sm:$0xff]
    %v3414 = vld [vmem:[%s3341 + $0x240] sm:$0xff]
    %v3415 = vld [vmem:[%s3341 + $0x248] sm:$0xff]
    %v3416 = vld [vmem:[%s3341 + $0x250] sm:$0xff]
    %v3417 = vld [vmem:[%s3341 + $0x258] sm:$0xff]
    %v3418 = vld [vmem:[%s3341 + $0x260] sm:$0xff]
    %v3419 = vld [vmem:[%s3341 + $0x268] sm:$0xff]
    %v3420 = vld [vmem:[%s3341 + $0x270] sm:$0xff]
    %v3421 = vld [vmem:[%s3341 + $0x278] sm:$0xff]
    %v3422 = vld [vmem:[%s3341 + $0x280] sm:$0xff]
    %v3423 = vld [vmem:[%s3341 + $0x288] sm:$0xff]
    %v3424 = vld [vmem:[%s3341 + $0x290] sm:$0xff]
    %v3425 = vld [vmem:[%s3341 + $0x298] sm:$0xff]
    %v3426 = vld [vmem:[%s3341 + $0x2a0] sm:$0xff]
    %v3427 = vld [vmem:[%s3341 + $0x2a8] sm:$0xff]
    %v3428 = vld [vmem:[%s3341 + $0x2b0] sm:$0xff]
    %v3429 = vld [vmem:[%s3341 + $0x2b8] sm:$0xff]
    %v3430 = vld [vmem:[%s3341 + $0x2c0] sm:$0xff]
    %v3431 = vld [vmem:[%s3341 + $0x2c8] sm:$0xff]
    %v3432 = vld [vmem:[%s3341 + $0x2d0] sm:$0xff]
    %v3433 = vld [vmem:[%s3341 + $0x2d8] sm:$0xff]
    %v3434 = vld [vmem:[%s3341 + $0x2e0] sm:$0xff]
    %v3435 = vld [vmem:[%s3341 + $0x2e8] sm:$0xff]
    %v3436 = vld [vmem:[%s3341 + $0x2f0] sm:$0xff]
    %v3437 = vld [vmem:[%s3341 + $0x2f8] sm:$0xff]
    %v3438 = vld [vmem:[%s3341 + $0x300] sm:$0xff]
    %v3439 = vld [vmem:[%s3341 + $0x308] sm:$0xff]
    %v3440 = vld [vmem:[%s3341 + $0x310] sm:$0xff]
    %v3441 = vld [vmem:[%s3341 + $0x318] sm:$0xff]
    %v3442 = vld [vmem:[%s3341 + $0x320] sm:$0xff]
    %v3443 = vld [vmem:[%s3341 + $0x328] sm:$0xff]
    %v3444 = vld [vmem:[%s3341 + $0x330] sm:$0xff]
    %v3445 = vld [vmem:[%s3341 + $0x338] sm:$0xff]
    %v3446 = vld [vmem:[%s3341 + $0x340] sm:$0xff]
    %v3447 = vld [vmem:[%s3341 + $0x348] sm:$0xff]
    %v3448 = vld [vmem:[%s3341 + $0x350] sm:$0xff]
    %v3449 = vld [vmem:[%s3341 + $0x358] sm:$0xff]
    %v3450 = vld [vmem:[%s3341 + $0x360] sm:$0xff]
    %v3451 = vld [vmem:[%s3341 + $0x368] sm:$0xff]
    %v3452 = vld [vmem:[%s3341 + $0x370] sm:$0xff]
    %v3453 = vld [vmem:[%s3341 + $0x378] sm:$0xff]
    %v3454 = vld [vmem:[%s3341 + $0x380] sm:$0xff]
    %v3455 = vld [vmem:[%s3341 + $0x388] sm:$0xff]
    %v3456 = vld [vmem:[%s3341 + $0x390] sm:$0xff]
    %v3457 = vld [vmem:[%s3341 + $0x398] sm:$0xff]
    %v3458 = vld [vmem:[%s3341 + $0x3a0] sm:$0xff]
    %v3459 = vld [vmem:[%s3341 + $0x3a8] sm:$0xff]
    %v3460 = vld [vmem:[%s3341 + $0x3b0] sm:$0xff]
    %v3461 = vld [vmem:[%s3341 + $0x3b8] sm:$0xff]
    %v3462 = vld [vmem:[%s3341 + $0x3c0] sm:$0xff]
    %v3463 = vld [vmem:[%s3341 + $0x3c8] sm:$0xff]
    %v3464 = vld [vmem:[%s3341 + $0x3d0] sm:$0xff]
    %v3465 = vld [vmem:[%s3341 + $0x3d8] sm:$0xff]
    %v3466 = vld [vmem:[%s3341 + $0x3e0] sm:$0xff]
    %v3467 = vld [vmem:[%s3341 + $0x3e8] sm:$0xff]
    %v3468 = vld [vmem:[%s3341 + $0x3f0] sm:$0xff]
    %v3469 = vld [vmem:[%s3341 + $0x3f8] sm:$0xff]
    %s3470 = scalar_lea.vmem [#allocation10], 8
    %v3471 = vld [vmem:[%s3470] sm:$0xf]
    %v3473 = vlaneseq
    %v3474 = vshrl.u32 %v3473, 7
    %v3475 = vsub.s32 0, %v3474
    %v3476 = vrot.slane %v3471, %v3475
    %v3477 = vlaneseq
    %v3478 = vshrl.u32 %v3477, 7
    %v3479 = vsub.s32 1, %v3478
    %v3480 = vrot.slane %v3471, %v3479
    %v3481 = vlaneseq
    %v3482 = vshrl.u32 %v3481, 7
    %v3483 = vsub.s32 2, %v3482
    %v3484 = vrot.slane %v3471, %v3483
    %v3485 = vlaneseq
    %v3486 = vshrl.u32 %v3485, 7
    %v3487 = vsub.s32 3, %v3486
    %v3488 = vrot.slane %v3471, %v3487
    %v3621 = vunpack.c.l.b16 %v3342
    %v3622 = vunpack.c.h.b16 %v3342
    %v3623 = vunpack.c.l.b16 %v3343
    %v3624 = vunpack.c.h.b16 %v3343
    %v3625 = vunpack.c.l.b16 %v3344
    %v3626 = vunpack.c.h.b16 %v3344
    %v3627 = vunpack.c.l.b16 %v3345
    %v3628 = vunpack.c.h.b16 %v3345
    %v3629 = vunpack.c.l.b16 %v3346
    %v3630 = vunpack.c.h.b16 %v3346
    %v3631 = vunpack.c.l.b16 %v3347
    %v3632 = vunpack.c.h.b16 %v3347
    %v3633 = vunpack.c.l.b16 %v3348
    %v3634 = vunpack.c.h.b16 %v3348
    %v3635 = vunpack.c.l.b16 %v3349
    %v3636 = vunpack.c.h.b16 %v3349
    %v3637 = vunpack.c.l.b16 %v3350
    %v3638 = vunpack.c.h.b16 %v3350
    %v3639 = vunpack.c.l.b16 %v3351
    %v3640 = vunpack.c.h.b16 %v3351
    %v3641 = vunpack.c.l.b16 %v3352
    %v3642 = vunpack.c.h.b16 %v3352
    %v3643 = vunpack.c.l.b16 %v3353
    %v3644 = vunpack.c.h.b16 %v3353
    %v3645 = vunpack.c.l.b16 %v3354
    %v3646 = vunpack.c.h.b16 %v3354
    %v3647 = vunpack.c.l.b16 %v3355
    %v3648 = vunpack.c.h.b16 %v3355
    %v3649 = vunpack.c.l.b16 %v3356
    %v3650 = vunpack.c.h.b16 %v3356
    %v3651 = vunpack.c.l.b16 %v3357
    %v3652 = vunpack.c.h.b16 %v3357
    %v3653 = vunpack.c.l.b16 %v3358
    %v3654 = vunpack.c.h.b16 %v3358
    %v3655 = vunpack.c.l.b16 %v3359
    %v3656 = vunpack.c.h.b16 %v3359
    %v3657 = vunpack.c.l.b16 %v3360
    %v3658 = vunpack.c.h.b16 %v3360
    %v3659 = vunpack.c.l.b16 %v3361
    %v3660 = vunpack.c.h.b16 %v3361
    %v3661 = vunpack.c.l.b16 %v3362
    %v3662 = vunpack.c.h.b16 %v3362
    %v3663 = vunpack.c.l.b16 %v3363
    %v3664 = vunpack.c.h.b16 %v3363
    %v3665 = vunpack.c.l.b16 %v3364
    %v3666 = vunpack.c.h.b16 %v3364
    %v3667 = vunpack.c.l.b16 %v3365
    %v3668 = vunpack.c.h.b16 %v3365
    %v3669 = vunpack.c.l.b16 %v3366
    %v3670 = vunpack.c.h.b16 %v3366
    %v3671 = vunpack.c.l.b16 %v3367
    %v3672 = vunpack.c.h.b16 %v3367
    %v3673 = vunpack.c.l.b16 %v3368
    %v3674 = vunpack.c.h.b16 %v3368
    %v3675 = vunpack.c.l.b16 %v3369
    %v3676 = vunpack.c.h.b16 %v3369
    %v3677 = vunpack.c.l.b16 %v3370
    %v3678 = vunpack.c.h.b16 %v3370
    %v3679 = vunpack.c.l.b16 %v3371
    %v3680 = vunpack.c.h.b16 %v3371
    %v3681 = vunpack.c.l.b16 %v3372
    %v3682 = vunpack.c.h.b16 %v3372
    %v3683 = vunpack.c.l.b16 %v3373
    %v3684 = vunpack.c.h.b16 %v3373
    %v3685 = vunpack.c.l.b16 %v3374
    %v3686 = vunpack.c.h.b16 %v3374
    %v3687 = vunpack.c.l.b16 %v3375
    %v3688 = vunpack.c.h.b16 %v3375
    %v3689 = vunpack.c.l.b16 %v3376
    %v3690 = vunpack.c.h.b16 %v3376
    %v3691 = vunpack.c.l.b16 %v3377
    %v3692 = vunpack.c.h.b16 %v3377
    %v3693 = vunpack.c.l.b16 %v3378
    %v3694 = vunpack.c.h.b16 %v3378
    %v3695 = vunpack.c.l.b16 %v3379
    %v3696 = vunpack.c.h.b16 %v3379
    %v3697 = vunpack.c.l.b16 %v3380
    %v3698 = vunpack.c.h.b16 %v3380
    %v3699 = vunpack.c.l.b16 %v3381
    %v3700 = vunpack.c.h.b16 %v3381
    %v3701 = vunpack.c.l.b16 %v3382
    %v3702 = vunpack.c.h.b16 %v3382
    %v3703 = vunpack.c.l.b16 %v3383
    %v3704 = vunpack.c.h.b16 %v3383
    %v3705 = vunpack.c.l.b16 %v3384
    %v3706 = vunpack.c.h.b16 %v3384
    %v3707 = vunpack.c.l.b16 %v3385
    %v3708 = vunpack.c.h.b16 %v3385
    %v3709 = vunpack.c.l.b16 %v3386
    %v3710 = vunpack.c.h.b16 %v3386
    %v3711 = vunpack.c.l.b16 %v3387
    %v3712 = vunpack.c.h.b16 %v3387
    %v3713 = vunpack.c.l.b16 %v3388
    %v3714 = vunpack.c.h.b16 %v3388
    %v3715 = vunpack.c.l.b16 %v3389
    %v3716 = vunpack.c.h.b16 %v3389
    %v3717 = vunpack.c.l.b16 %v3390
    %v3718 = vunpack.c.h.b16 %v3390
    %v3719 = vunpack.c.l.b16 %v3391
    %v3720 = vunpack.c.h.b16 %v3391
    %v3721 = vunpack.c.l.b16 %v3392
    %v3722 = vunpack.c.h.b16 %v3392
    %v3723 = vunpack.c.l.b16 %v3393
    %v3724 = vunpack.c.h.b16 %v3393
    %v3725 = vunpack.c.l.b16 %v3394
    %v3726 = vunpack.c.h.b16 %v3394
    %v3727 = vunpack.c.l.b16 %v3395
    %v3728 = vunpack.c.h.b16 %v3395
    %v3729 = vunpack.c.l.b16 %v3396
    %v3730 = vunpack.c.h.b16 %v3396
    %v3731 = vunpack.c.l.b16 %v3397
    %v3732 = vunpack.c.h.b16 %v3397
    %v3733 = vunpack.c.l.b16 %v3398
    %v3734 = vunpack.c.h.b16 %v3398
    %v3735 = vunpack.c.l.b16 %v3399
    %v3736 = vunpack.c.h.b16 %v3399
    %v3737 = vunpack.c.l.b16 %v3400
    %v3738 = vunpack.c.h.b16 %v3400
    %v3739 = vunpack.c.l.b16 %v3401
    %v3740 = vunpack.c.h.b16 %v3401
    %v3741 = vunpack.c.l.b16 %v3402
    %v3742 = vunpack.c.h.b16 %v3402
    %v3743 = vunpack.c.l.b16 %v3403
    %v3744 = vunpack.c.h.b16 %v3403
    %v3745 = vunpack.c.l.b16 %v3404
    %v3746 = vunpack.c.h.b16 %v3404
    %v3747 = vunpack.c.l.b16 %v3405
    %v3748 = vunpack.c.h.b16 %v3405
    %v3749 = vunpack.c.l.b16 %v3406
    %v3750 = vunpack.c.h.b16 %v3406
    %v3751 = vunpack.c.l.b16 %v3407
    %v3752 = vunpack.c.h.b16 %v3407
    %v3753 = vunpack.c.l.b16 %v3408
    %v3754 = vunpack.c.h.b16 %v3408
    %v3755 = vunpack.c.l.b16 %v3409
    %v3756 = vunpack.c.h.b16 %v3409
    %v3757 = vunpack.c.l.b16 %v3410
    %v3758 = vunpack.c.h.b16 %v3410
    %v3759 = vunpack.c.l.b16 %v3411
    %v3760 = vunpack.c.h.b16 %v3411
    %v3761 = vunpack.c.l.b16 %v3412
    %v3762 = vunpack.c.h.b16 %v3412
    %v3763 = vunpack.c.l.b16 %v3413
    %v3764 = vunpack.c.h.b16 %v3413
    %v3765 = vunpack.c.l.b16 %v3414
    %v3766 = vunpack.c.h.b16 %v3414
    %v3767 = vunpack.c.l.b16 %v3415
    %v3768 = vunpack.c.h.b16 %v3415
    %v3769 = vunpack.c.l.b16 %v3416
    %v3770 = vunpack.c.h.b16 %v3416
    %v3771 = vunpack.c.l.b16 %v3417
    %v3772 = vunpack.c.h.b16 %v3417
    %v3773 = vunpack.c.l.b16 %v3418
    %v3774 = vunpack.c.h.b16 %v3418
    %v3775 = vunpack.c.l.b16 %v3419
    %v3776 = vunpack.c.h.b16 %v3419
    %v3777 = vunpack.c.l.b16 %v3420
    %v3778 = vunpack.c.h.b16 %v3420
    %v3779 = vunpack.c.l.b16 %v3421
    %v3780 = vunpack.c.h.b16 %v3421
    %v3781 = vunpack.c.l.b16 %v3422
    %v3782 = vunpack.c.h.b16 %v3422
    %v3783 = vunpack.c.l.b16 %v3423
    %v3784 = vunpack.c.h.b16 %v3423
    %v3785 = vunpack.c.l.b16 %v3424
    %v3786 = vunpack.c.h.b16 %v3424
    %v3787 = vunpack.c.l.b16 %v3425
    %v3788 = vunpack.c.h.b16 %v3425
    %v3789 = vunpack.c.l.b16 %v3426
    %v3790 = vunpack.c.h.b16 %v3426
    %v3791 = vunpack.c.l.b16 %v3427
    %v3792 = vunpack.c.h.b16 %v3427
    %v3793 = vunpack.c.l.b16 %v3428
    %v3794 = vunpack.c.h.b16 %v3428
    %v3795 = vunpack.c.l.b16 %v3429
    %v3796 = vunpack.c.h.b16 %v3429
    %v3797 = vunpack.c.l.b16 %v3430
    %v3798 = vunpack.c.h.b16 %v3430
    %v3799 = vunpack.c.l.b16 %v3431
    %v3800 = vunpack.c.h.b16 %v3431
    %v3801 = vunpack.c.l.b16 %v3432
    %v3802 = vunpack.c.h.b16 %v3432
    %v3803 = vunpack.c.l.b16 %v3433
    %v3804 = vunpack.c.h.b16 %v3433
    %v3805 = vunpack.c.l.b16 %v3434
    %v3806 = vunpack.c.h.b16 %v3434
    %v3807 = vunpack.c.l.b16 %v3435
    %v3808 = vunpack.c.h.b16 %v3435
    %v3809 = vunpack.c.l.b16 %v3436
    %v3810 = vunpack.c.h.b16 %v3436
    %v3811 = vunpack.c.l.b16 %v3437
    %v3812 = vunpack.c.h.b16 %v3437
    %v3813 = vunpack.c.l.b16 %v3438
    %v3814 = vunpack.c.h.b16 %v3438
    %v3815 = vunpack.c.l.b16 %v3439
    %v3816 = vunpack.c.h.b16 %v3439
    %v3817 = vunpack.c.l.b16 %v3440
    %v3818 = vunpack.c.h.b16 %v3440
    %v3819 = vunpack.c.l.b16 %v3441
    %v3820 = vunpack.c.h.b16 %v3441
    %v3821 = vunpack.c.l.b16 %v3442
    %v3822 = vunpack.c.h.b16 %v3442
    %v3823 = vunpack.c.l.b16 %v3443
    %v3824 = vunpack.c.h.b16 %v3443
    %v3825 = vunpack.c.l.b16 %v3444
    %v3826 = vunpack.c.h.b16 %v3444
    %v3827 = vunpack.c.l.b16 %v3445
    %v3828 = vunpack.c.h.b16 %v3445
    %v3829 = vunpack.c.l.b16 %v3446
    %v3830 = vunpack.c.h.b16 %v3446
    %v3831 = vunpack.c.l.b16 %v3447
    %v3832 = vunpack.c.h.b16 %v3447
    %v3833 = vunpack.c.l.b16 %v3448
    %v3834 = vunpack.c.h.b16 %v3448
    %v3835 = vunpack.c.l.b16 %v3449
    %v3836 = vunpack.c.h.b16 %v3449
    %v3837 = vunpack.c.l.b16 %v3450
    %v3838 = vunpack.c.h.b16 %v3450
    %v3839 = vunpack.c.l.b16 %v3451
    %v3840 = vunpack.c.h.b16 %v3451
    %v3841 = vunpack.c.l.b16 %v3452
    %v3842 = vunpack.c.h.b16 %v3452
    %v3843 = vunpack.c.l.b16 %v3453
    %v3844 = vunpack.c.h.b16 %v3453
    %v3845 = vunpack.c.l.b16 %v3454
    %v3846 = vunpack.c.h.b16 %v3454
    %v3847 = vunpack.c.l.b16 %v3455
    %v3848 = vunpack.c.h.b16 %v3455
    %v3849 = vunpack.c.l.b16 %v3456
    %v3850 = vunpack.c.h.b16 %v3456
    %v3851 = vunpack.c.l.b16 %v3457
    %v3852 = vunpack.c.h.b16 %v3457
    %v3853 = vunpack.c.l.b16 %v3458
    %v3854 = vunpack.c.h.b16 %v3458
    %v3855 = vunpack.c.l.b16 %v3459
    %v3856 = vunpack.c.h.b16 %v3459
    %v3857 = vunpack.c.l.b16 %v3460
    %v3858 = vunpack.c.h.b16 %v3460
    %v3859 = vunpack.c.l.b16 %v3461
    %v3860 = vunpack.c.h.b16 %v3461
    %v3861 = vunpack.c.l.b16 %v3462
    %v3862 = vunpack.c.h.b16 %v3462
    %v3863 = vunpack.c.l.b16 %v3463
    %v3864 = vunpack.c.h.b16 %v3463
    %v3865 = vunpack.c.l.b16 %v3464
    %v3866 = vunpack.c.h.b16 %v3464
    %v3867 = vunpack.c.l.b16 %v3465
    %v3868 = vunpack.c.h.b16 %v3465
    %v3869 = vunpack.c.l.b16 %v3466
    %v3870 = vunpack.c.h.b16 %v3466
    %v3871 = vunpack.c.l.b16 %v3467
    %v3872 = vunpack.c.h.b16 %v3467
    %v3873 = vunpack.c.l.b16 %v3468
    %v3874 = vunpack.c.h.b16 %v3468
    %v3875 = vunpack.c.l.b16 %v3469
    %v3876 = vunpack.c.h.b16 %v3469
    %v3877 = vpack.c.b16 %v3625, %v3621
    %v3878 = vpack.c.b16 %v3626, %v3622
    %v3879 = vpack.c.b16 %v3627, %v3623
    %v3880 = vpack.c.b16 %v3628, %v3624
    %v3881 = vpack.c.b16 %v3633, %v3629
    %v3882 = vpack.c.b16 %v3634, %v3630
    %v3883 = vpack.c.b16 %v3635, %v3631
    %v3884 = vpack.c.b16 %v3636, %v3632
    %v3885 = vpack.c.b16 %v3641, %v3637
    %v3886 = vpack.c.b16 %v3642, %v3638
    %v3887 = vpack.c.b16 %v3643, %v3639
    %v3888 = vpack.c.b16 %v3644, %v3640
    %v3889 = vpack.c.b16 %v3649, %v3645
    %v3890 = vpack.c.b16 %v3650, %v3646
    %v3891 = vpack.c.b16 %v3651, %v3647
    %v3892 = vpack.c.b16 %v3652, %v3648
    %v3893 = vpack.c.b16 %v3657, %v3653
    %v3894 = vpack.c.b16 %v3658, %v3654
    %v3895 = vpack.c.b16 %v3659, %v3655
    %v3896 = vpack.c.b16 %v3660, %v3656
    %v3897 = vpack.c.b16 %v3665, %v3661
    %v3898 = vpack.c.b16 %v3666, %v3662
    %v3899 = vpack.c.b16 %v3667, %v3663
    %v3900 = vpack.c.b16 %v3668, %v3664
    %v3901 = vpack.c.b16 %v3673, %v3669
    %v3902 = vpack.c.b16 %v3674, %v3670
    %v3903 = vpack.c.b16 %v3675, %v3671
    %v3904 = vpack.c.b16 %v3676, %v3672
    %v3905 = vpack.c.b16 %v3681, %v3677
    %v3906 = vpack.c.b16 %v3682, %v3678
    %v3907 = vpack.c.b16 %v3683, %v3679
    %v3908 = vpack.c.b16 %v3684, %v3680
    %v3909 = vpack.c.b16 %v3689, %v3685
    %v3910 = vpack.c.b16 %v3690, %v3686
    %v3911 = vpack.c.b16 %v3691, %v3687
    %v3912 = vpack.c.b16 %v3692, %v3688
    %v3913 = vpack.c.b16 %v3697, %v3693
    %v3914 = vpack.c.b16 %v3698, %v3694
    %v3915 = vpack.c.b16 %v3699, %v3695
    %v3916 = vpack.c.b16 %v3700, %v3696
    %v3917 = vpack.c.b16 %v3705, %v3701
    %v3918 = vpack.c.b16 %v3706, %v3702
    %v3919 = vpack.c.b16 %v3707, %v3703
    %v3920 = vpack.c.b16 %v3708, %v3704
    %v3921 = vpack.c.b16 %v3713, %v3709
    %v3922 = vpack.c.b16 %v3714, %v3710
    %v3923 = vpack.c.b16 %v3715, %v3711
    %v3924 = vpack.c.b16 %v3716, %v3712
    %v3925 = vpack.c.b16 %v3721, %v3717
    %v3926 = vpack.c.b16 %v3722, %v3718
    %v3927 = vpack.c.b16 %v3723, %v3719
    %v3928 = vpack.c.b16 %v3724, %v3720
    %v3929 = vpack.c.b16 %v3729, %v3725
    %v3930 = vpack.c.b16 %v3730, %v3726
    %v3931 = vpack.c.b16 %v3731, %v3727
    %v3932 = vpack.c.b16 %v3732, %v3728
    %v3933 = vpack.c.b16 %v3737, %v3733
    %v3934 = vpack.c.b16 %v3738, %v3734
    %v3935 = vpack.c.b16 %v3739, %v3735
    %v3936 = vpack.c.b16 %v3740, %v3736
    %v3937 = vpack.c.b16 %v3745, %v3741
    %v3938 = vpack.c.b16 %v3746, %v3742
    %v3939 = vpack.c.b16 %v3747, %v3743
    %v3940 = vpack.c.b16 %v3748, %v3744
    %v3941 = vpack.c.b16 %v3753, %v3749
    %v3942 = vpack.c.b16 %v3754, %v3750
    %v3943 = vpack.c.b16 %v3755, %v3751
    %v3944 = vpack.c.b16 %v3756, %v3752
    %v3945 = vpack.c.b16 %v3761, %v3757
    %v3946 = vpack.c.b16 %v3762, %v3758
    %v3947 = vpack.c.b16 %v3763, %v3759
    %v3948 = vpack.c.b16 %v3764, %v3760
    %v3949 = vpack.c.b16 %v3769, %v3765
    %v3950 = vpack.c.b16 %v3770, %v3766
    %v3951 = vpack.c.b16 %v3771, %v3767
    %v3952 = vpack.c.b16 %v3772, %v3768
    %v3953 = vpack.c.b16 %v3777, %v3773
    %v3954 = vpack.c.b16 %v3778, %v3774
    %v3955 = vpack.c.b16 %v3779, %v3775
    %v3956 = vpack.c.b16 %v3780, %v3776
    %v3957 = vpack.c.b16 %v3785, %v3781
    %v3958 = vpack.c.b16 %v3786, %v3782
    %v3959 = vpack.c.b16 %v3787, %v3783
    %v3960 = vpack.c.b16 %v3788, %v3784
    %v3961 = vpack.c.b16 %v3793, %v3789
    %v3962 = vpack.c.b16 %v3794, %v3790
    %v3963 = vpack.c.b16 %v3795, %v3791
    %v3964 = vpack.c.b16 %v3796, %v3792
    %v3965 = vpack.c.b16 %v3801, %v3797
    %v3966 = vpack.c.b16 %v3802, %v3798
    %v3967 = vpack.c.b16 %v3803, %v3799
    %v3968 = vpack.c.b16 %v3804, %v3800
    %v3969 = vpack.c.b16 %v3809, %v3805
    %v3970 = vpack.c.b16 %v3810, %v3806
    %v3971 = vpack.c.b16 %v3811, %v3807
    %v3972 = vpack.c.b16 %v3812, %v3808
    %v3973 = vpack.c.b16 %v3817, %v3813
    %v3974 = vpack.c.b16 %v3818, %v3814
    %v3975 = vpack.c.b16 %v3819, %v3815
    %v3976 = vpack.c.b16 %v3820, %v3816
    %v3977 = vpack.c.b16 %v3825, %v3821
    %v3978 = vpack.c.b16 %v3826, %v3822
    %v3979 = vpack.c.b16 %v3827, %v3823
    %v3980 = vpack.c.b16 %v3828, %v3824
    %v3981 = vpack.c.b16 %v3833, %v3829
    %v3982 = vpack.c.b16 %v3834, %v3830
    %v3983 = vpack.c.b16 %v3835, %v3831
    %v3984 = vpack.c.b16 %v3836, %v3832
    %v3985 = vpack.c.b16 %v3841, %v3837
    %v3986 = vpack.c.b16 %v3842, %v3838
    %v3987 = vpack.c.b16 %v3843, %v3839
    %v3988 = vpack.c.b16 %v3844, %v3840
    %v3989 = vpack.c.b16 %v3849, %v3845
    %v3990 = vpack.c.b16 %v3850, %v3846
    %v3991 = vpack.c.b16 %v3851, %v3847
    %v3992 = vpack.c.b16 %v3852, %v3848
    %v3993 = vpack.c.b16 %v3857, %v3853
    %v3994 = vpack.c.b16 %v3858, %v3854
    %v3995 = vpack.c.b16 %v3859, %v3855
    %v3996 = vpack.c.b16 %v3860, %v3856
    %v3997 = vpack.c.b16 %v3865, %v3861
    %v3998 = vpack.c.b16 %v3866, %v3862
    %v3999 = vpack.c.b16 %v3867, %v3863
    %v4000 = vpack.c.b16 %v3868, %v3864
    %v4001 = vpack.c.b16 %v3873, %v3869
    %v4002 = vpack.c.b16 %v3874, %v3870
    %v4003 = vpack.c.b16 %v3875, %v3871
    %v4004 = vpack.c.b16 %v3876, %v3872
    %4133 = vmatprep.subr.bf16.mxu0 %v3878
    %4134 = vmatpush1.bf16.msra.mxu0 %v3877
    %4135 = vmatprep.subr.bf16.mxu0 %v3882
    %4136 = vmatpush1.bf16.msra.mxu0 %v3881
    %4137 = vmatprep.subr.bf16.mxu0 %v3886
    %4138 = vmatpush1.bf16.msra.mxu0 %v3885
    %4139 = vmatprep.subr.bf16.mxu0 %v3890
    %4140 = vmatpush1.bf16.msra.mxu0 %v3889
    %4141 = vmatprep.subr.bf16.mxu0 %v3894
    %4142 = vmatpush1.bf16.msra.mxu0 %v3893
    %4143 = vmatprep.subr.bf16.mxu0 %v3898
    %4144 = vmatpush1.bf16.msra.mxu0 %v3897
    %4145 = vmatprep.subr.bf16.mxu0 %v3902
    %4146 = vmatpush1.bf16.msra.mxu0 %v3901
    %4147 = vmatprep.subr.bf16.mxu0 %v3906
    %4148 = vmatpush1.bf16.msra.mxu0 %v3905
    %4149 = vmatprep.subr.bf16.mxu0 %v3910
    %4150 = vmatpush1.bf16.msra.mxu0 %v3909
    %4151 = vmatprep.subr.bf16.mxu0 %v3914
    %4152 = vmatpush1.bf16.msra.mxu0 %v3913
    %4153 = vmatprep.subr.bf16.mxu0 %v3918
    %4154 = vmatpush1.bf16.msra.mxu0 %v3917
    %4155 = vmatprep.subr.bf16.mxu0 %v3922
    %4156 = vmatpush1.bf16.msra.mxu0 %v3921
    %4157 = vmatprep.subr.bf16.mxu0 %v3926
    %4158 = vmatpush1.bf16.msra.mxu0 %v3925
    %4159 = vmatprep.subr.bf16.mxu0 %v3930
    %4160 = vmatpush1.bf16.msra.mxu0 %v3929
    %4161 = vmatprep.subr.bf16.mxu0 %v3934
    %4162 = vmatpush1.bf16.msra.mxu0 %v3933
    %4163 = vmatprep.subr.bf16.mxu0 %v3938
    %4164 = vmatpush1.bf16.msra.mxu0 %v3937
    %4165 = vmatprep.mubr.bf16.mxu0 %v3338
    %4166 = vmatmul.mubr.bf16.gmra.mrb[0].mxu0 %v3337
    %v4167 = vpop.f32.mrb[0].mxu0
    %v4168 = vadd.f32 %v3476, %v4167
    %v4169 = vpop.f32.mrb[0].mxu0
    %v4170 = vadd.f32 %v3480, %v4169
    %v4171 = vpop.f32.mrb[0].mxu0
    %v4172 = vpop.f32.mrb[0].mxu0
    %4173 = vdwg.mxu0
    %4174 = vmatprep.subr.bf16.mxu0 %v3942
    %4175 = vmatpush1.bf16.msra.mxu0 %v3941
    %4176 = vmatprep.subr.bf16.mxu0 %v3946
    %4177 = vmatpush1.bf16.msra.mxu0 %v3945
    %4178 = vmatprep.subr.bf16.mxu0 %v3950
    %4179 = vmatpush1.bf16.msra.mxu0 %v3949
    %4180 = vmatprep.subr.bf16.mxu0 %v3954
    %4181 = vmatpush1.bf16.msra.mxu0 %v3953
    %4182 = vmatprep.subr.bf16.mxu0 %v3958
    %4183 = vmatpush1.bf16.msra.mxu0 %v3957
    %4184 = vmatprep.subr.bf16.mxu0 %v3962
    %4185 = vmatpush1.bf16.msra.mxu0 %v3961
    %4186 = vmatprep.subr.bf16.mxu0 %v3966
    %4187 = vmatpush1.bf16.msra.mxu0 %v3965
    %4188 = vmatprep.subr.bf16.mxu0 %v3970
    %4189 = vmatpush1.bf16.msra.mxu0 %v3969
    %4190 = vmatprep.subr.bf16.mxu0 %v3974
    %4191 = vmatpush1.bf16.msra.mxu0 %v3973
    %4192 = vmatprep.subr.bf16.mxu0 %v3978
    %4193 = vmatpush1.bf16.msra.mxu0 %v3977
    %4194 = vmatprep.subr.bf16.mxu0 %v3982
    %4195 = vmatpush1.bf16.msra.mxu0 %v3981
    %4196 = vmatprep.subr.bf16.mxu0 %v3986
    %4197 = vmatpush1.bf16.msra.mxu0 %v3985
    %4198 = vmatprep.subr.bf16.mxu0 %v3990
    %4199 = vmatpush1.bf16.msra.mxu0 %v3989
    %4200 = vmatprep.subr.bf16.mxu0 %v3994
    %4201 = vmatpush1.bf16.msra.mxu0 %v3993
    %4202 = vmatprep.subr.bf16.mxu0 %v3998
    %4203 = vmatpush1.bf16.msra.mxu0 %v3997
    %4204 = vmatprep.subr.bf16.mxu0 %v4002
    %4205 = vmatpush1.bf16.msra.mxu0 %v4001
    %4206 = vmatprep.mubr.bf16.mxu0 %v3340
    %4207 = vmatmul.mubr.bf16.gmra.mrb[0].mxu0 %v3339
    %v4208 = vpop.f32.mrb[0].mxu0
    %v4209 = vadd.f32 %v4168, %v4208
    %v4210 = vpop.f32.mrb[0].mxu0
    %v4211 = vadd.f32 %v4170, %v4210
    %v4212 = vpop.f32.mrb[0].mxu0
    %v4213 = vpop.f32.mrb[0].mxu0
    %4214 = vdwg.mxu0
    %4215 = vmatprep.subr.bf16.mxu0 %v3880
    %4216 = vmatpush1.bf16.msra.mxu0 %v3879
    %4217 = vmatprep.subr.bf16.mxu0 %v3884
    %4218 = vmatpush1.bf16.msra.mxu0 %v3883
    %4219 = vmatprep.subr.bf16.mxu0 %v3888
    %4220 = vmatpush1.bf16.msra.mxu0 %v3887
    %4221 = vmatprep.subr.bf16.mxu0 %v3892
    %4222 = vmatpush1.bf16.msra.mxu0 %v3891
    %4223 = vmatprep.subr.bf16.mxu0 %v3896
    %4224 = vmatpush1.bf16.msra.mxu0 %v3895
    %4225 = vmatprep.subr.bf16.mxu0 %v3900
    %4226 = vmatpush1.bf16.msra.mxu0 %v3899
    %4227 = vmatprep.subr.bf16.mxu0 %v3904
    %4228 = vmatpush1.bf16.msra.mxu0 %v3903
    %4229 = vmatprep.subr.bf16.mxu0 %v3908
    %4230 = vmatpush1.bf16.msra.mxu0 %v3907
    %4231 = vmatprep.subr.bf16.mxu0 %v3912
    %4232 = vmatpush1.bf16.msra.mxu0 %v3911
    %4233 = vmatprep.subr.bf16.mxu0 %v3916
    %4234 = vmatpush1.bf16.msra.mxu0 %v3915
    %4235 = vmatprep.subr.bf16.mxu0 %v3920
    %4236 = vmatpush1.bf16.msra.mxu0 %v3919
    %4237 = vmatprep.subr.bf16.mxu0 %v3924
    %4238 = vmatpush1.bf16.msra.mxu0 %v3923
    %4239 = vmatprep.subr.bf16.mxu0 %v3928
    %4240 = vmatpush1.bf16.msra.mxu0 %v3927
    %4241 = vmatprep.subr.bf16.mxu0 %v3932
    %4242 = vmatpush1.bf16.msra.mxu0 %v3931
    %4243 = vmatprep.subr.bf16.mxu0 %v3936
    %4244 = vmatpush1.bf16.msra.mxu0 %v3935
    %4245 = vmatprep.subr.bf16.mxu0 %v3940
    %4246 = vmatpush1.bf16.msra.mxu0 %v3939
    %4247 = vmatprep.mubr.bf16.mxu0 %v3338
    %4248 = vmatmul.mubr.bf16.gmra.mrb[0].mxu0 %v3337
    %v4249 = vpop.f32.mrb[0].mxu0
    %v4250 = vadd.f32 %v3484, %v4249
    %v4251 = vpop.f32.mrb[0].mxu0
    %v4252 = vadd.f32 %v3488, %v4251
    %v4253 = vpop.f32.mrb[0].mxu0
    %v4254 = vpop.f32.mrb[0].mxu0
    %4255 = vdwg.mxu0
    %4256 = vmatprep.subr.bf16.mxu0 %v3944
    %4257 = vmatpush1.bf16.msra.mxu0 %v3943
    %4258 = vmatprep.subr.bf16.mxu0 %v3948
    %4259 = vmatpush1.bf16.msra.mxu0 %v3947
    %4260 = vmatprep.subr.bf16.mxu0 %v3952
    %4261 = vmatpush1.bf16.msra.mxu0 %v3951
    %4262 = vmatprep.subr.bf16.mxu0 %v3956
    %4263 = vmatpush1.bf16.msra.mxu0 %v3955
    %4264 = vmatprep.subr.bf16.mxu0 %v3960
    %4265 = vmatpush1.bf16.msra.mxu0 %v3959
    %4266 = vmatprep.subr.bf16.mxu0 %v3964
    %4267 = vmatpush1.bf16.msra.mxu0 %v3963
    %4268 = vmatprep.subr.bf16.mxu0 %v3968
    %4269 = vmatpush1.bf16.msra.mxu0 %v3967
    %4270 = vmatprep.subr.bf16.mxu0 %v3972
    %4271 = vmatpush1.bf16.msra.mxu0 %v3971
    %4272 = vmatprep.subr.bf16.mxu0 %v3976
    %4273 = vmatpush1.bf16.msra.mxu0 %v3975
    %4274 = vmatprep.subr.bf16.mxu0 %v3980
    %4275 = vmatpush1.bf16.msra.mxu0 %v3979
    %4276 = vmatprep.subr.bf16.mxu0 %v3984
    %4277 = vmatpush1.bf16.msra.mxu0 %v3983
    %4278 = vmatprep.subr.bf16.mxu0 %v3988
    %4279 = vmatpush1.bf16.msra.mxu0 %v3987
    %4280 = vmatprep.subr.bf16.mxu0 %v3992
    %4281 = vmatpush1.bf16.msra.mxu0 %v3991
    %4282 = vmatprep.subr.bf16.mxu0 %v3996
    %4283 = vmatpush1.bf16.msra.mxu0 %v3995
    %4284 = vmatprep.subr.bf16.mxu0 %v4000
    %4285 = vmatpush1.bf16.msra.mxu0 %v3999
    %4286 = vmatprep.subr.bf16.mxu0 %v4004
    %4287 = vmatpush1.bf16.msra.mxu0 %v4003
    %4288 = vmatprep.mubr.bf16.mxu0 %v3340
    %4289 = vmatmul.mubr.bf16.gmra.mrb[0].mxu0 %v3339
    %v4290 = vpop.f32.mrb[0].mxu0
    %v4291 = vadd.f32 %v4250, %v4290
    %v4292 = vpop.f32.mrb[0].mxu0
    %v4293 = vadd.f32 %v4252, %v4292
    %v4294 = vpop.f32.mrb[0].mxu0
    %v4295 = vpop.f32.mrb[0].mxu0
    %4296 = vdwg.mxu0
    %v4297 = vmax.f32 %v4209, 0.0
    %v4298 = vmax.f32 %v4211, 0.0
    %v4299 = vmax.f32 %v4291, 0.0
    %v4300 = vmax.f32 %v4293, 0.0
    %v4301 = vpack.c.bf16 %v4297, %v4297
    %v4302 = vpack.c.bf16 %v4298, %v4298
    %v4303 = vpack.c.bf16 %v4299, %v4299
    %v4304 = vpack.c.bf16 %v4300, %v4300
    %s4305 = scalar_lea.vmem [#allocation12], 512
    %v4306 = vld [vmem:[%s4305] sm:$0xf]
    %v4307 = vld [vmem:[%s4305 + $0x4] sm:$0xf]
    %v4308 = vld [vmem:[%s4305 + $0x8] sm:$0xf]
    %v4309 = vld [vmem:[%s4305 + $0xc] sm:$0xf]
    %v4310 = vld [vmem:[%s4305 + $0x10] sm:$0xf]
    %v4311 = vld [vmem:[%s4305 + $0x14] sm:$0xf]
    %v4312 = vld [vmem:[%s4305 + $0x18] sm:$0xf]
    %v4313 = vld [vmem:[%s4305 + $0x1c] sm:$0xf]
    %v4314 = vld [vmem:[%s4305 + $0x20] sm:$0xf]
    %v4315 = vld [vmem:[%s4305 + $0x24] sm:$0xf]
    %v4316 = vld [vmem:[%s4305 + $0x28] sm:$0xf]
    %v4317 = vld [vmem:[%s4305 + $0x2c] sm:$0xf]
    %v4318 = vld [vmem:[%s4305 + $0x30] sm:$0xf]
    %v4319 = vld [vmem:[%s4305 + $0x34] sm:$0xf]
    %v4320 = vld [vmem:[%s4305 + $0x38] sm:$0xf]
    %v4321 = vld [vmem:[%s4305 + $0x3c] sm:$0xf]
    %v4322 = vld [vmem:[%s4305 + $0x40] sm:$0xf]
    %v4323 = vld [vmem:[%s4305 + $0x44] sm:$0xf]
    %v4324 = vld [vmem:[%s4305 + $0x48] sm:$0xf]
    %v4325 = vld [vmem:[%s4305 + $0x4c] sm:$0xf]
    %v4326 = vld [vmem:[%s4305 + $0x50] sm:$0xf]
    %v4327 = vld [vmem:[%s4305 + $0x54] sm:$0xf]
    %v4328 = vld [vmem:[%s4305 + $0x58] sm:$0xf]
    %v4329 = vld [vmem:[%s4305 + $0x5c] sm:$0xf]
    %v4330 = vld [vmem:[%s4305 + $0x60] sm:$0xf]
    %v4331 = vld [vmem:[%s4305 + $0x64] sm:$0xf]
    %v4332 = vld [vmem:[%s4305 + $0x68] sm:$0xf]
    %v4333 = vld [vmem:[%s4305 + $0x6c] sm:$0xf]
    %v4334 = vld [vmem:[%s4305 + $0x70] sm:$0xf]
    %v4335 = vld [vmem:[%s4305 + $0x74] sm:$0xf]
    %v4336 = vld [vmem:[%s4305 + $0x78] sm:$0xf]
    %v4337 = vld [vmem:[%s4305 + $0x7c] sm:$0xf]
    %v4338 = vld [vmem:[%s4305 + $0x80] sm:$0xf]
    %v4339 = vld [vmem:[%s4305 + $0x84] sm:$0xf]
    %v4340 = vld [vmem:[%s4305 + $0x88] sm:$0xf]
    %v4341 = vld [vmem:[%s4305 + $0x8c] sm:$0xf]
    %v4342 = vld [vmem:[%s4305 + $0x90] sm:$0xf]
    %v4343 = vld [vmem:[%s4305 + $0x94] sm:$0xf]
    %v4344 = vld [vmem:[%s4305 + $0x98] sm:$0xf]
    %v4345 = vld [vmem:[%s4305 + $0x9c] sm:$0xf]
    %v4346 = vld [vmem:[%s4305 + $0xa0] sm:$0xf]
    %v4347 = vld [vmem:[%s4305 + $0xa4] sm:$0xf]
    %v4348 = vld [vmem:[%s4305 + $0xa8] sm:$0xf]
    %v4349 = vld [vmem:[%s4305 + $0xac] sm:$0xf]
    %v4350 = vld [vmem:[%s4305 + $0xb0] sm:$0xf]
    %v4351 = vld [vmem:[%s4305 + $0xb4] sm:$0xf]
    %v4352 = vld [vmem:[%s4305 + $0xb8] sm:$0xf]
    %v4353 = vld [vmem:[%s4305 + $0xbc] sm:$0xf]
    %v4354 = vld [vmem:[%s4305 + $0xc0] sm:$0xf]
    %v4355 = vld [vmem:[%s4305 + $0xc4] sm:$0xf]
    %v4356 = vld [vmem:[%s4305 + $0xc8] sm:$0xf]
    %v4357 = vld [vmem:[%s4305 + $0xcc] sm:$0xf]
    %v4358 = vld [vmem:[%s4305 + $0xd0] sm:$0xf]
    %v4359 = vld [vmem:[%s4305 + $0xd4] sm:$0xf]
    %v4360 = vld [vmem:[%s4305 + $0xd8] sm:$0xf]
    %v4361 = vld [vmem:[%s4305 + $0xdc] sm:$0xf]
    %v4362 = vld [vmem:[%s4305 + $0xe0] sm:$0xf]
    %v4363 = vld [vmem:[%s4305 + $0xe4] sm:$0xf]
    %v4364 = vld [vmem:[%s4305 + $0xe8] sm:$0xf]
    %v4365 = vld [vmem:[%s4305 + $0xec] sm:$0xf]
    %v4366 = vld [vmem:[%s4305 + $0xf0] sm:$0xf]
    %v4367 = vld [vmem:[%s4305 + $0xf4] sm:$0xf]
    %v4368 = vld [vmem:[%s4305 + $0xf8] sm:$0xf]
    %v4369 = vld [vmem:[%s4305 + $0xfc] sm:$0xf]
    %s4370 = scalar_lea.vmem [#allocation13], 2
    %v4371 = vld [vmem:[%s4370] sm:$0x1]
    %v4373 = vlaneseq
    %v4374 = vshrl.u32 %v4373, 7
    %v4375 = vsub.s32 0, %v4374
    %v4376 = vrot.slane %v4371, %v4375
    %v4442 = vunpack.c.l.b16 %v4306
    %v4443 = vunpack.c.l.b16 %v4307
    %v4444 = vunpack.c.l.b16 %v4308
    %v4445 = vunpack.c.l.b16 %v4309
    %v4446 = vunpack.c.l.b16 %v4310
    %v4447 = vunpack.c.l.b16 %v4311
    %v4448 = vunpack.c.l.b16 %v4312
    %v4449 = vunpack.c.l.b16 %v4313
    %v4450 = vunpack.c.l.b16 %v4314
    %v4451 = vunpack.c.l.b16 %v4315
    %v4452 = vunpack.c.l.b16 %v4316
    %v4453 = vunpack.c.l.b16 %v4317
    %v4454 = vunpack.c.l.b16 %v4318
    %v4455 = vunpack.c.l.b16 %v4319
    %v4456 = vunpack.c.l.b16 %v4320
    %v4457 = vunpack.c.l.b16 %v4321
    %v4458 = vunpack.c.l.b16 %v4322
    %v4459 = vunpack.c.l.b16 %v4323
    %v4460 = vunpack.c.l.b16 %v4324
    %v4461 = vunpack.c.l.b16 %v4325
    %v4462 = vunpack.c.l.b16 %v4326
    %v4463 = vunpack.c.l.b16 %v4327
    %v4464 = vunpack.c.l.b16 %v4328
    %v4465 = vunpack.c.l.b16 %v4329
    %v4466 = vunpack.c.l.b16 %v4330
    %v4467 = vunpack.c.l.b16 %v4331
    %v4468 = vunpack.c.l.b16 %v4332
    %v4469 = vunpack.c.l.b16 %v4333
    %v4470 = vunpack.c.l.b16 %v4334
    %v4471 = vunpack.c.l.b16 %v4335
    %v4472 = vunpack.c.l.b16 %v4336
    %v4473 = vunpack.c.l.b16 %v4337
    %v4474 = vunpack.c.l.b16 %v4338
    %v4475 = vunpack.c.l.b16 %v4339
    %v4476 = vunpack.c.l.b16 %v4340
    %v4477 = vunpack.c.l.b16 %v4341
    %v4478 = vunpack.c.l.b16 %v4342
    %v4479 = vunpack.c.l.b16 %v4343
    %v4480 = vunpack.c.l.b16 %v4344
    %v4481 = vunpack.c.l.b16 %v4345
    %v4482 = vunpack.c.l.b16 %v4346
    %v4483 = vunpack.c.l.b16 %v4347
    %v4484 = vunpack.c.l.b16 %v4348
    %v4485 = vunpack.c.l.b16 %v4349
    %v4486 = vunpack.c.l.b16 %v4350
    %v4487 = vunpack.c.l.b16 %v4351
    %v4488 = vunpack.c.l.b16 %v4352
    %v4489 = vunpack.c.l.b16 %v4353
    %v4490 = vunpack.c.l.b16 %v4354
    %v4491 = vunpack.c.l.b16 %v4355
    %v4492 = vunpack.c.l.b16 %v4356
    %v4493 = vunpack.c.l.b16 %v4357
    %v4494 = vunpack.c.l.b16 %v4358
    %v4495 = vunpack.c.l.b16 %v4359
    %v4496 = vunpack.c.l.b16 %v4360
    %v4497 = vunpack.c.l.b16 %v4361
    %v4498 = vunpack.c.l.b16 %v4362
    %v4499 = vunpack.c.l.b16 %v4363
    %v4500 = vunpack.c.l.b16 %v4364
    %v4501 = vunpack.c.l.b16 %v4365
    %v4502 = vunpack.c.l.b16 %v4366
    %v4503 = vunpack.c.l.b16 %v4367
    %v4504 = vunpack.c.l.b16 %v4368
    %v4505 = vunpack.c.l.b16 %v4369
    %v4506 = vpack.c.b16 %v4443, %v4442
    %v4507 = vpack.c.b16 %v4445, %v4444
    %v4508 = vpack.c.b16 %v4447, %v4446
    %v4509 = vpack.c.b16 %v4449, %v4448
    %v4510 = vpack.c.b16 %v4451, %v4450
    %v4511 = vpack.c.b16 %v4453, %v4452
    %v4512 = vpack.c.b16 %v4455, %v4454
    %v4513 = vpack.c.b16 %v4457, %v4456
    %v4514 = vpack.c.b16 %v4459, %v4458
    %v4515 = vpack.c.b16 %v4461, %v4460
    %v4516 = vpack.c.b16 %v4463, %v4462
    %v4517 = vpack.c.b16 %v4465, %v4464
    %v4518 = vpack.c.b16 %v4467, %v4466
    %v4519 = vpack.c.b16 %v4469, %v4468
    %v4520 = vpack.c.b16 %v4471, %v4470
    %v4521 = vpack.c.b16 %v4473, %v4472
    %v4522 = vpack.c.b16 %v4475, %v4474
    %v4523 = vpack.c.b16 %v4477, %v4476
    %v4524 = vpack.c.b16 %v4479, %v4478
    %v4525 = vpack.c.b16 %v4481, %v4480
    %v4526 = vpack.c.b16 %v4483, %v4482
    %v4527 = vpack.c.b16 %v4485, %v4484
    %v4528 = vpack.c.b16 %v4487, %v4486
    %v4529 = vpack.c.b16 %v4489, %v4488
    %v4530 = vpack.c.b16 %v4491, %v4490
    %v4531 = vpack.c.b16 %v4493, %v4492
    %v4532 = vpack.c.b16 %v4495, %v4494
    %v4533 = vpack.c.b16 %v4497, %v4496
    %v4534 = vpack.c.b16 %v4499, %v4498
    %v4535 = vpack.c.b16 %v4501, %v4500
    %v4536 = vpack.c.b16 %v4503, %v4502
    %v4537 = vpack.c.b16 %v4505, %v4504
    %4570 = vmatprep.subr.bf16.mxu0 0
    %4571 = vmatpush1.bf16.msra.mxu0 %v4506
    %4572 = vmatprep.subr.bf16.mxu0 0
    %4573 = vmatpush1.bf16.msra.mxu0 %v4507
    %4574 = vmatprep.subr.bf16.mxu0 0
    %4575 = vmatpush1.bf16.msra.mxu0 %v4508
    %4576 = vmatprep.subr.bf16.mxu0 0
    %4577 = vmatpush1.bf16.msra.mxu0 %v4509
    %4578 = vmatprep.subr.bf16.mxu0 0
    %4579 = vmatpush1.bf16.msra.mxu0 %v4510
    %4580 = vmatprep.subr.bf16.mxu0 0
    %4581 = vmatpush1.bf16.msra.mxu0 %v4511
    %4582 = vmatprep.subr.bf16.mxu0 0
    %4583 = vmatpush1.bf16.msra.mxu0 %v4512
    %4584 = vmatprep.subr.bf16.mxu0 0
    %4585 = vmatpush1.bf16.msra.mxu0 %v4513
    %4586 = vmatprep.subr.bf16.mxu0 0
    %4587 = vmatpush1.bf16.msra.mxu0 %v4514
    %4588 = vmatprep.subr.bf16.mxu0 0
    %4589 = vmatpush1.bf16.msra.mxu0 %v4515
    %4590 = vmatprep.subr.bf16.mxu0 0
    %4591 = vmatpush1.bf16.msra.mxu0 %v4516
    %4592 = vmatprep.subr.bf16.mxu0 0
    %4593 = vmatpush1.bf16.msra.mxu0 %v4517
    %4594 = vmatprep.subr.bf16.mxu0 0
    %4595 = vmatpush1.bf16.msra.mxu0 %v4518
    %4596 = vmatprep.subr.bf16.mxu0 0
    %4597 = vmatpush1.bf16.msra.mxu0 %v4519
    %4598 = vmatprep.subr.bf16.mxu0 0
    %4599 = vmatpush1.bf16.msra.mxu0 %v4520
    %4600 = vmatprep.subr.bf16.mxu0 0
    %4601 = vmatpush1.bf16.msra.mxu0 %v4521
    %4602 = vmatprep.mubr.bf16.mxu0 %v4302
    %4603 = vmatmul.mubr.bf16.gmra.mrb[0].mxu0 %v4301
    %v4604 = vpop.f32.mrb[0].mxu0
    %v4605 = vadd.f32 %v4376, %v4604
    %v4606 = vpop.f32.mrb[0].mxu0
    %v4607 = vpop.f32.mrb[0].mxu0
    %v4608 = vpop.f32.mrb[0].mxu0
    %4609 = vdwg.mxu0
    %4610 = vmatprep.subr.bf16.mxu0 0
    %4611 = vmatpush1.bf16.msra.mxu0 %v4522
    %4612 = vmatprep.subr.bf16.mxu0 0
    %4613 = vmatpush1.bf16.msra.mxu0 %v4523
    %4614 = vmatprep.subr.bf16.mxu0 0
    %4615 = vmatpush1.bf16.msra.mxu0 %v4524
    %4616 = vmatprep.subr.bf16.mxu0 0
    %4617 = vmatpush1.bf16.msra.mxu0 %v4525
    %4618 = vmatprep.subr.bf16.mxu0 0
    %4619 = vmatpush1.bf16.msra.mxu0 %v4526
    %4620 = vmatprep.subr.bf16.mxu0 0
    %4621 = vmatpush1.bf16.msra.mxu0 %v4527
    %4622 = vmatprep.subr.bf16.mxu0 0
    %4623 = vmatpush1.bf16.msra.mxu0 %v4528
    %4624 = vmatprep.subr.bf16.mxu0 0
    %4625 = vmatpush1.bf16.msra.mxu0 %v4529
    %4626 = vmatprep.subr.bf16.mxu0 0
    %4627 = vmatpush1.bf16.msra.mxu0 %v4530
    %4628 = vmatprep.subr.bf16.mxu0 0
    %4629 = vmatpush1.bf16.msra.mxu0 %v4531
    %4630 = vmatprep.subr.bf16.mxu0 0
    %4631 = vmatpush1.bf16.msra.mxu0 %v4532
    %4632 = vmatprep.subr.bf16.mxu0 0
    %4633 = vmatpush1.bf16.msra.mxu0 %v4533
    %4634 = vmatprep.subr.bf16.mxu0 0
    %4635 = vmatpush1.bf16.msra.mxu0 %v4534
    %4636 = vmatprep.subr.bf16.mxu0 0
    %4637 = vmatpush1.bf16.msra.mxu0 %v4535
    %4638 = vmatprep.subr.bf16.mxu0 0
    %4639 = vmatpush1.bf16.msra.mxu0 %v4536
    %4640 = vmatprep.subr.bf16.mxu0 0
    %4641 = vmatpush1.bf16.msra.mxu0 %v4537
    %4642 = vmatprep.mubr.bf16.mxu0 %v4304
    %4643 = vmatmul.mubr.bf16.gmra.mrb[0].mxu0 %v4303
    %v4644 = vpop.f32.mrb[0].mxu0
    %v4645 = vadd.f32 %v4605, %v4644
    %v4646 = vpop.f32.mrb[0].mxu0
    %v4647 = vpop.f32.mrb[0].mxu0
    %v4648 = vpop.f32.mrb[0].mxu0
    %4649 = vdwg.mxu0
    %v4650 = vmax.f32 %v4645, 0.0
    %s4651 = sld [smem:[#allocation2 + $0x2]]
    %v4652 = vstv %s4651
    %v4653 = vmul.f32 %v4652, %v4650
    %v4654 = vadd.f32 %v3173, %v4653
    %v4655 = vld [vmem:[#allocation15] sm:$0xff]
    %v4656 = vld [vmem:[#allocation15 + $0x8] sm:$0xff]
    %v4657 = vld [vmem:[#allocation15 + $0x10] sm:$0xff]
    %v4658 = vld [vmem:[#allocation15 + $0x18] sm:$0xff]
    %v4659 = vld [vmem:[#allocation15 + $0x20] sm:$0xff]
    %v4660 = vld [vmem:[#allocation15 + $0x28] sm:$0xff]
    %v4661 = vld [vmem:[#allocation15 + $0x30] sm:$0xff]
    %v4662 = vld [vmem:[#allocation15 + $0x38] sm:$0xff]
    %v4663 = vld [vmem:[#allocation15 + $0x40] sm:$0xff]
    %v4664 = vld [vmem:[#allocation15 + $0x48] sm:$0xff]
    %v4665 = vld [vmem:[#allocation15 + $0x50] sm:$0xff]
    %v4666 = vld [vmem:[#allocation15 + $0x58] sm:$0xff]
    %v4667 = vld [vmem:[#allocation15 + $0x60] sm:$0xff]
    %v4668 = vld [vmem:[#allocation15 + $0x68] sm:$0xff]
    %v4669 = vld [vmem:[#allocation15 + $0x70] sm:$0xff]
    %v4670 = vld [vmem:[#allocation15 + $0x78] sm:$0xff]
    %v4671 = vld [vmem:[#allocation16] sm:$0x1]
    %v4673 = vlaneseq
    %v4674 = vshrl.u32 %v4673, 7
    %v4675 = vsub.s32 0, %v4674
    %v4676 = vrot.slane %v4671, %v4675
    %4678 = vmatprep.subr.mxu0 0.0
    %4679 = vmatpush1.msra.mxu0 %v4655
    %4680 = vmatprep.subr.mxu0 0.0
    %4681 = vmatpush1.msra.mxu0 %v4656
    %4682 = vmatprep.subr.mxu0 0.0
    %4683 = vmatpush1.msra.mxu0 %v4657
    %4684 = vmatprep.subr.mxu0 0.0
    %4685 = vmatpush1.msra.mxu0 %v4658
    %4686 = vmatprep.subr.mxu0 0.0
    %4687 = vmatpush1.msra.mxu0 %v4659
    %4688 = vmatprep.subr.mxu0 0.0
    %4689 = vmatpush1.msra.mxu0 %v4660
    %4690 = vmatprep.subr.mxu0 0.0
    %4691 = vmatpush1.msra.mxu0 %v4661
    %4692 = vmatprep.subr.mxu0 0.0
    %4693 = vmatpush1.msra.mxu0 %v4662
    %4694 = vmatprep.subr.mxu0 0.0
    %4695 = vmatpush1.msra.mxu0 %v4663
    %4696 = vmatprep.subr.mxu0 0.0
    %4697 = vmatpush1.msra.mxu0 %v4664
    %4698 = vmatprep.subr.mxu0 0.0
    %4699 = vmatpush1.msra.mxu0 %v4665
    %4700 = vmatprep.subr.mxu0 0.0
    %4701 = vmatpush1.msra.mxu0 %v4666
    %4702 = vmatprep.subr.mxu0 0.0
    %4703 = vmatpush1.msra.mxu0 %v4667
    %4704 = vmatprep.subr.mxu0 0.0
    %4705 = vmatpush1.msra.mxu0 %v4668
    %4706 = vmatprep.subr.mxu0 0.0
    %4707 = vmatpush1.msra.mxu0 %v4669
    %4708 = vmatprep.subr.mxu0 0.0
    %4709 = vmatpush1.msra.mxu0 %v4670
    %4710 = vmatprep.subr.mxu0 0.0
    %4711 = vmatpush1.msra.mxu0 0.0
    %4712 = vmatprep.subr.mxu0 0.0
    %4713 = vmatpush1.msra.mxu0 0.0
    %4714 = vmatprep.subr.mxu0 0.0
    %4715 = vmatpush1.msra.mxu0 0.0
    %4716 = vmatprep.subr.mxu0 0.0
    %4717 = vmatpush1.msra.mxu0 0.0
    %4718 = vmatprep.subr.mxu0 0.0
    %4719 = vmatpush1.msra.mxu0 0.0
    %4720 = vmatprep.subr.mxu0 0.0
    %4721 = vmatpush1.msra.mxu0 0.0
    %4722 = vmatprep.subr.mxu0 0.0
    %4723 = vmatpush1.msra.mxu0 0.0
    %4724 = vmatprep.subr.mxu0 0.0
    %4725 = vmatpush1.msra.mxu0 0.0
    %4726 = vmatprep.subr.mxu0 0.0
    %4727 = vmatpush1.msra.mxu0 0.0
    %4728 = vmatprep.subr.mxu0 0.0
    %4729 = vmatpush1.msra.mxu0 0.0
    %4730 = vmatprep.subr.mxu0 0.0
    %4731 = vmatpush1.msra.mxu0 0.0
    %4732 = vmatprep.subr.mxu0 0.0
    %4733 = vmatpush1.msra.mxu0 0.0
    %4734 = vmatprep.subr.mxu0 0.0
    %4735 = vmatpush1.msra.mxu0 0.0
    %4736 = vmatprep.subr.mxu0 0.0
    %4737 = vmatpush1.msra.mxu0 0.0
    %4738 = vmatprep.subr.mxu0 0.0
    %4739 = vmatpush1.msra.mxu0 0.0
    %4740 = vmatprep.subr.mxu0 0.0
    %4741 = vmatpush1.msra.mxu0 0.0
    %4742 = vmatprep.mubr.f32.mxu0 0.0
    %4743 = vmatmul.mubr.f32.gmra.mrb[0].mxu0 %v4654
    %v4744 = vpop.f32.mrb[0].mxu0
    %v4745 = vadd.f32 %v4676, %v4744
    %v4746 = vpop.f32.mrb[0].mxu0
    %4747 = vdwg.mxu0
    %v4748 = vmax.f32 %v4745, 0.0
    %v4749 = vrot.slane %v4748, 4
    %v4750 = vadd.f32 %v4748, %v4749
    %v4751 = vrot.slane %v4750, 2
    %v4752 = vadd.f32 %v4750, %v4751
    %v4753 = vrot.slane %v4752, 1
    %v4754 = vadd.f32 %v4752, %v4753
    %v4755 = vrcp.pop 8.0
    %v4756 = vmul.f32 %v4754, %v4755
    %v4757 = vsub.f32 %v4748, %v4756
    %v4758 = vmul.f32 %v4757, %v4757
    %v4759 = vrot.slane %v4758, 4
    %v4760 = vadd.f32 %v4758, %v4759
    %v4761 = vrot.slane %v4760, 2
    %v4762 = vadd.f32 %v4760, %v4761
    %v4763 = vrot.slane %v4762, 1
    %v4764 = vadd.f32 %v4762, %v4763
    %v4765 = vmul.f32 %v4764, %v4755
    %v4766 = vld [vmem:[#allocation18] sm:$0x1]
    %v4768 = vlaneseq
    %v4769 = vshrl.u32 %v4768, 7
    %v4770 = vsub.s32 0, %v4769
    %v4771 = vrot.slane %v4766, %v4770
    %v4773 = vmul.f32 %v4771, %v4757
    %v4774 = vadd.f32 %v4765, 1e-05
    %v4775 = vrsqrt.pop %v4774
    %v4776 = vmul.f32 %v4773, %v4775
    %v4777 = vld [vmem:[#allocation19] sm:$0x1]
    %v4779 = vlaneseq
    %v4780 = vshrl.u32 %v4779, 7
    %v4781 = vsub.s32 0, %v4780
    %v4782 = vrot.slane %v4777, %v4781
    %v4784 = vadd.f32 %v4776, %v4782
    %4785 = vst [vmem:[#allocation24] sm:$0xff] %v4784
    %v4786 = vld [vmem:[#allocation21] sm:$0xff]
    %v4787 = vld [vmem:[#allocation21 + $0x8] sm:$0xff]
    %v4788 = vld [vmem:[#allocation21 + $0x10] sm:$0xff]
    %v4789 = vld [vmem:[#allocation21 + $0x18] sm:$0xff]
    %v4790 = vld [vmem:[#allocation21 + $0x20] sm:$0xff]
    %v4791 = vld [vmem:[#allocation21 + $0x28] sm:$0xff]
    %v4792 = vld [vmem:[#allocation21 + $0x30] sm:$0xff]
    %v4793 = vld [vmem:[#allocation21 + $0x38] sm:$0xff]
    %v4794 = vld [vmem:[#allocation21 + $0x40] sm:$0xff]
    %v4795 = vld [vmem:[#allocation21 + $0x48] sm:$0xff]
    %v4796 = vld [vmem:[#allocation21 + $0x50] sm:$0xff]
    %v4797 = vld [vmem:[#allocation21 + $0x58] sm:$0xff]
    %v4798 = vld [vmem:[#allocation21 + $0x60] sm:$0xff]
    %v4799 = vld [vmem:[#allocation21 + $0x68] sm:$0xff]
    %v4800 = vld [vmem:[#allocation21 + $0x70] sm:$0xff]
    %v4801 = vld [vmem:[#allocation21 + $0x78] sm:$0xff]
    %v4802 = vld [vmem:[#allocation22] sm:$0x1]
    %v4804 = vlaneseq
    %v4805 = vshrl.u32 %v4804, 7
    %v4806 = vsub.s32 0, %v4805
    %v4807 = vrot.slane %v4802, %v4806
    %4809 = vmatprep.subr.mxu0 0.0
    %4810 = vmatpush1.msra.mxu0 %v4786
    %4811 = vmatprep.subr.mxu0 0.0
    %4812 = vmatpush1.msra.mxu0 %v4787
    %4813 = vmatprep.subr.mxu0 0.0
    %4814 = vmatpush1.msra.mxu0 %v4788
    %4815 = vmatprep.subr.mxu0 0.0
    %4816 = vmatpush1.msra.mxu0 %v4789
    %4817 = vmatprep.subr.mxu0 0.0
    %4818 = vmatpush1.msra.mxu0 %v4790
    %4819 = vmatprep.subr.mxu0 0.0
    %4820 = vmatpush1.msra.mxu0 %v4791
    %4821 = vmatprep.subr.mxu0 0.0
    %4822 = vmatpush1.msra.mxu0 %v4792
    %4823 = vmatprep.subr.mxu0 0.0
    %4824 = vmatpush1.msra.mxu0 %v4793
    %4825 = vmatprep.subr.mxu0 0.0
    %4826 = vmatpush1.msra.mxu0 %v4794
    %4827 = vmatprep.subr.mxu0 0.0
    %4828 = vmatpush1.msra.mxu0 %v4795
    %4829 = vmatprep.subr.mxu0 0.0
    %4830 = vmatpush1.msra.mxu0 %v4796
    %4831 = vmatprep.subr.mxu0 0.0
    %4832 = vmatpush1.msra.mxu0 %v4797
    %4833 = vmatprep.subr.mxu0 0.0
    %4834 = vmatpush1.msra.mxu0 %v4798
    %4835 = vmatprep.subr.mxu0 0.0
    %4836 = vmatpush1.msra.mxu0 %v4799
    %4837 = vmatprep.subr.mxu0 0.0
    %4838 = vmatpush1.msra.mxu0 %v4800
    %4839 = vmatprep.subr.mxu0 0.0
    %4840 = vmatpush1.msra.mxu0 %v4801
    %4841 = vmatprep.subr.mxu0 0.0
    %4842 = vmatpush1.msra.mxu0 0.0
    %4843 = vmatprep.subr.mxu0 0.0
    %4844 = vmatpush1.msra.mxu0 0.0
    %4845 = vmatprep.subr.mxu0 0.0
    %4846 = vmatpush1.msra.mxu0 0.0
    %4847 = vmatprep.subr.mxu0 0.0
    %4848 = vmatpush1.msra.mxu0 0.0
    %4849 = vmatprep.subr.mxu0 0.0
    %4850 = vmatpush1.msra.mxu0 0.0
    %4851 = vmatprep.subr.mxu0 0.0
    %4852 = vmatpush1.msra.mxu0 0.0
    %4853 = vmatprep.subr.mxu0 0.0
    %4854 = vmatpush1.msra.mxu0 0.0
    %4855 = vmatprep.subr.mxu0 0.0
    %4856 = vmatpush1.msra.mxu0 0.0
    %4857 = vmatprep.subr.mxu0 0.0
    %4858 = vmatpush1.msra.mxu0 0.0
    %4859 = vmatprep.subr.mxu0 0.0
    %4860 = vmatpush1.msra.mxu0 0.0
    %4861 = vmatprep.subr.mxu0 0.0
    %4862 = vmatpush1.msra.mxu0 0.0
    %4863 = vmatprep.subr.mxu0 0.0
    %4864 = vmatpush1.msra.mxu0 0.0
    %4865 = vmatprep.subr.mxu0 0.0
    %4866 = vmatpush1.msra.mxu0 0.0
    %4867 = vmatprep.subr.mxu0 0.0
    %4868 = vmatpush1.msra.mxu0 0.0
    %4869 = vmatprep.subr.mxu0 0.0
    %4870 = vmatpush1.msra.mxu0 0.0
    %4871 = vmatprep.subr.mxu0 0.0
    %4872 = vmatpush1.msra.mxu0 0.0
    %4873 = vmatprep.mubr.f32.mxu0 0.0
    %4874 = vmatmul.mubr.f32.gmra.mrb[0].mxu0 %v4784
    %v4875 = vpop.f32.mrb[0].mxu0
    %v4876 = vadd.f32 %v4807, %v4875
    %v4877 = vpop.f32.mrb[0].mxu0
    %4878 = vdwg.mxu0
    %4879 = vmax.xlane.f32.xlu0 %v4876
    %v4880 = vpop.xlane.xlu0 %4879
    %v4881 = vsub.f32 %v4876, %v4880
    %v4882 = vmul.f32 %v4881, 1.442695
    %v4883 = vpow.pop %v4882
    %4884 = vadd.xlane.f32.xlu0 %v4883
    %v4885 = vpop.xlane.xlu0 %4884
    %v4886 = vrcp.pop %v4885
    %v4887 = vmul.f32 %v4883, %v4886
    %4888 = vst [vmem:[%s14] sm:$0xff] %v4887
    // Predicated region
    $region110: #{mvc_forward.1} parent=1 // pred_check
      _
    $region111: #{mvc_forward.1} parent=1 // pred_check_branch
      %4890 = sbr.rel (0) target = $region113
    $region112: #{mvc_forward.1} parent=1 // pred_region
      _
    $region113: #{mvc_forward.1} parent=1 // pred_fallthru
      _
    // Predicated region
    $region114: #{mvc_forward.1} parent=1 // pred_check
      _
    $region115: #{mvc_forward.1} parent=1 // pred_check_branch
      %4892 = sbr.rel (0) target = $region117
    $region116: #{mvc_forward.1} parent=1 // pred_region
      %s4894 = ssub.s32 128, 128
      %4895 = vsyncadd [#allocation4], %s4894
      %s4897 = sshll.u32 [#allocation24], 4
      %s4898 = int_to_ptr.vmem [resolvable:$true] %s4897
      %4900 = dma.vmem_to_hbm [thread:$0]  %s4898, 128, %s15, [#allocation4]
    $region117: #{mvc_forward.1} parent=1 // pred_fallthru
      _
    // Predicated region
    $region118: #{mvc_forward.1} parent=1 // pred_check
      _
    $region119: #{mvc_forward.1} parent=1 // pred_check_branch
      %4902 = sbr.rel (0) target = $region121
    $region120: #{mvc_forward.1} parent=1 // pred_region
      _
    $region121: #{mvc_forward.1} parent=1 // pred_fallthru
      _
    // Predicated region
    $region122: #{mvc_forward.1} parent=1 // pred_check
      _
    $region123: #{mvc_forward.1} parent=1 // pred_check_branch
      %4904 = sbr.rel (0) target = $region125
    $region124: #{mvc_forward.1} parent=1 // pred_region
      %4905 = dma.done [#allocation4], 128
    $region125: #{mvc_forward.1} parent=1 // pred_fallthru
      _
    %4906 = vsyncpa [#allocation3], 1
    %4907 = vsyncpa [#allocation8], 1
    %4908 = vsyncpa [#allocation11], 1
    %4909 = vsyncpa [#allocation14], 1
    %4910 = vsyncpa [#allocation17], 1
    %4911 = vsyncpa [#allocation20], 1
    %4912 = vsyncpa [#allocation23], 1
    %4913 = vsyncpa [#allocation4], 1
    %4914 = vsyncpa [#allocation5], 1

</llo_original>
